<compile_context>
chip_gen: v7x
topology: tpu7x:2x2x1
jax: 0.10.0
libtpu: 0.0.40
codegen_flags: <defaults>
</compile_context>

<pallas_src>
import functools
import math

import jax
import jax.numpy as jnp
from jax.experimental import pallas as pl
from jax.experimental.pallas import tpu as pltpu  # noqa: F401  (not needed; whole-array VMEM residency)


# ----------------------------------------------------------------------------
# Fused kernel: warm-up + sample_times x pred_steps autoregressive loop
# ----------------------------------------------------------------------------
def _forward_kernel(xg_ref, u_ref, cdfw_ref, wih0_ref, wcat_ref, bhead_ref,
                    samples_ref, *, pred_start, pred_steps, sample_times, lag):
    f32 = jnp.float32
    _, B, fourH = xg_ref.shape          # xg: (T, B, 4H) = x @ W_ih^T + biases
    H = fourH // 4
    K = cdfw_ref.shape[-1]              # num_spline
    W = wcat_ref.shape[1]               # 4H + 1 + K

    # ---- loop-invariant loads / broadcasts (hoisted once) -------------------
    wcat = wcat_ref[...]                                        # (H, 4H+1+K)
    bhead = jnp.broadcast_to(bhead_ref[...], (B, K + 1))        # (B, 1+K)
    wih0 = jnp.broadcast_to(wih0_ref[...], (B, fourH))          # (B, 4H) feedback row
    zcol = jnp.zeros((B, 1), f32)
    half_k = 0.5 * K                                            # 1/(2*sigma), sigma=1/K

    def cell(gates, c):
        # torch.nn.LSTM gate order [i, f, g, o]; one full-width sigmoid,
        # tanh only on the g slice (3 EUP chains/step total incl. tanh(c)).
        sg = jax.nn.sigmoid(gates)                              # (B, 4H)
        i_g = sg[:, 0:H]
        f_g = sg[:, H:2 * H]
        o_g = sg[:, 3 * H:4 * H]
        g_g = jnp.tanh(gates[:, 2 * H:3 * H])
        c_new = f_g * c + i_g * g_g
        h_new = o_g * jnp.tanh(c_new)
        return h_new, c_new

    def softplus(z):                    # torch.nn.Softplus(beta=1, threshold=20)
        return jnp.where(z > 20.0, z, jnp.log1p(jnp.exp(jnp.minimum(z, 20.0))))

    c = jnp.zeros((B, H), f32)
    # hp carries h @ W_cat: [:, :4H] = recurrent gate contribution for the NEXT
    # step, [:, 4H:] = head pre-activation for the CURRENT step.  h0 = 0 -> 0.
    hp = jnp.zeros((B, W), f32)

    # ---- warm-up: LSTM cell only (heads/spline structurally skipped) --------
    for t in range(pred_start):
        gates = hp[:, :fourH] + xg_ref[t]
        h, c = cell(gates, c)
        hp = jnp.dot(h, wcat, preferred_element_type=f32)       # one MXU push

    # ---- autoregressive sampling (h/c/hp carry across samples, as in ref) ---
    for j in range(sample_times):
        prev_pred = None
        for t in range(pred_steps):
            gates = hp[:, :fourH] + xg_ref[pred_start + t]
            if lag >= 1 and t >= 1:
                # feedback: feature 0 of this step's input <- previous pred
                # (its original contribution was zeroed in the hoisted xg)
                gates = gates + prev_pred * wih0
            h, c = cell(gates, c)

            # single fused MXU push: next-step gates + this step's head
            hp = jnp.dot(h, wcat, preferred_element_type=f32)   # (B, 4H+1+K)
            head = softplus(hp[:, fourH:] + bhead)              # (B, 1+K)
            beta_0 = head[:, 0:1]                                # (B, 1)
            gamma = head[:, 1:]                                  # (B, K)

            # quantile-spline coefficients (pad/shift via static lane concat)
            prev_g = jnp.concatenate([beta_0, gamma[:, :K - 1]], axis=1)
            b1 = (gamma - prev_g) * half_k
            b2 = b1 - jnp.concatenate([zcol, b1[:, :K - 1]], axis=1)
            beta = jnp.concatenate(
                [b2[:, :K - 1],
                 gamma[:, K - 1:]
                 - jnp.sum(b2[:, :K - 1], axis=1, keepdims=True)], axis=1)

            # CDF inverse at the pre-drawn uniform sample:
            # cdfw = (u - ksi)^2 * (ksi < u) was pre-broadcast in the wrapper.
            pred = (beta_0 * u_ref[j, t]
                    + jnp.sum(cdfw_ref[j, t] * beta, axis=1, keepdims=True))

            samples_ref[j, :, t:t + 1] = pred      # direct per-step store
            prev_pred = pred


# ----------------------------------------------------------------------------
# Parameter construction (deterministic, mirrors nn.LSTM / nn.Linear shapes)
# ----------------------------------------------------------------------------
def init_params(key, In, H, K):
    ks = jax.random.split(key, 8)
    bnd = 1.0 / math.sqrt(H)

    def u(k, shape, b):
        return jax.random.uniform(k, shape, jnp.float32, -b, b)

    w_ih = u(ks[0], (4 * H, In), bnd)
    w_hh = u(ks[1], (4 * H, H), bnd)
    b_ih = u(ks[2], (4 * H,), bnd).at[H:2 * H].set(1.0)   # forget-gate bias = 1
    b_hh = u(ks[3], (4 * H,), bnd).at[H:2 * H].set(1.0)

    w_b0 = u(ks[4], (1, H), bnd)
    b_b0 = u(ks[5], (1,), bnd)
    w_gm = u(ks[6], (K, H), bnd)
    b_gm = u(ks[7], (K,), bnd)

    whead = jnp.concatenate([w_b0.T, w_gm.T], axis=1)            # (H, 1+K)
    return dict(
        wih_t=jnp.transpose(w_ih),                               # (In, 4H)
        wcat=jnp.concatenate([jnp.transpose(w_hh), whead], 1),   # (H, 4H+1+K)
        bgate=(b_ih + b_hh).reshape(1, 4 * H),                   # (1, 4H)
        bhead=jnp.concatenate([b_b0, b_gm]).reshape(1, 1 + K),   # (1, 1+K)
    )


# ----------------------------------------------------------------------------
# Net.forward (inference path, labels_batch=None) — single fused dispatch
# ----------------------------------------------------------------------------
def make_forward(p):
    pred_start = p["pred_start"]
    pred_steps = p["pred_steps"]
    sample_times = p["sample_times"]
    lag = p["lag"]
    K = p["num_spline"]

    kernel = functools.partial(
        _forward_kernel,
        pred_start=pred_start, pred_steps=pred_steps,
        sample_times=sample_times, lag=lag)

    @jax.jit
    def forward(train_batch, weights, key):
        B = train_batch.shape[0]
        f32 = jnp.float32
        # train_batch.permute(1, 0, 2) -> (T, B, In)
        x = jnp.transpose(train_batch, (1, 0, 2)).astype(f32)

        # Hoist x @ W_ih out of the recurrence.  Feature 0 of steps
        # pred_start+1.. is always overwritten by the autoregressive feedback
        # before being read, so its contribution is dropped here and added
        # in-kernel as `prev_pred * W_ih[:, 0]`.
        if lag >= 1 and pred_steps > 1:
            x_proj = x.at[pred_start + 1:, :, 0].set(0.0)
        else:
            x_proj = x
        xg = (jnp.einsum("tbi,ih->tbh", x_proj, weights["wih_t"])
              + weights["bgate"][None])                          # (T, B, 4H)

        # All uniform CDF draws up front, plus the pre-broadcast spline
        # weights (u - ksi)^2 * (ksi < u) so the kernel does no per-step
        # iota / compare / dynamic lane broadcast.
        u = jax.random.uniform(key, (sample_times, pred_steps, B, 1), f32)
        ksi = jnp.arange(K, dtype=f32) * (1.0 / K)               # knots [0, 1/K, ...]
        cdfw = jnp.where(ksi < u, (u - ksi) ** 2, 0.0)           # (S, P, B, K)

        samples = pl.pallas_call(
            kernel,
            out_shape=jax.ShapeDtypeStruct(
                (sample_times, B, pred_steps), jnp.float32),
        )(xg, u, cdfw,
          weights["wih_t"][0:1, :],          # W_ih row for feature-0 feedback
          weights["wcat"], weights["bhead"])

        sample_mu = jnp.mean(samples, axis=0)
        # torch .std(dim=0) is unbiased (ddof=1); NaN at sample_times==1, as in torch.
        sample_std = jnp.std(samples, axis=0, ddof=1)
        return samples, sample_mu, sample_std

    return forward


# ----------------------------------------------------------------------------
if __name__ == "__main__":
    params = dict(
        lstm_input_size=4,
        lstm_hidden_dim=32,
        lstm_layers=1,
        num_spline=8,
        pred_start=4,
        pred_steps=4,
        sample_times=3,
        lag=1,
    )
    B = 2
    T = params["pred_start"] + params["pred_steps"]

    root = jax.random.PRNGKey(0)
    k_w, k_x, k_s = jax.random.split(root, 3)

    weights = init_params(k_w, params["lstm_input_size"],
                          params["lstm_hidden_dim"], params["num_spline"])
    train_batch = jax.random.normal(
        k_x, (B, T, params["lstm_input_size"]), jnp.float32)

    forward = make_forward(params)
    samples, mu, std = forward(train_batch, weights, k_s)
    jax.block_until_ready((samples, mu, std))

    assert samples.shape == (params["sample_times"], B, params["pred_steps"])
    assert mu.shape == (B, params["pred_steps"])
    assert std.shape == (B, params["pred_steps"])
    assert bool(jnp.all(jnp.isfinite(samples)))
    assert bool(jnp.all(jnp.isfinite(mu))) and bool(jnp.all(jnp.isfinite(std)))
    print("KERNEL_OK")
</pallas_src>

<mosaic_0001>
module attributes {stable_mosaic.version = 11 : i64} {
  func.func @_forward_kernel(%arg0: memref<8x2x128xf32, #tpu.memory_space<vmem>>, %arg1: memref<3x4x2x1xf32, #tpu.memory_space<vmem>>, %arg2: memref<3x4x2x8xf32, #tpu.memory_space<vmem>>, %arg3: memref<1x128xf32, #tpu.memory_space<vmem>>, %arg4: memref<32x137xf32, #tpu.memory_space<vmem>>, %arg5: memref<1x9xf32, #tpu.memory_space<vmem>>, %arg6: memref<3x2x4xf32, #tpu.memory_space<vmem>>) attributes {dimension_semantics = [], scalar_prefetch = 0 : i64, scratch_operands = 0 : i64, tpu.core_type = #tpu.core_type<tc>} {
    %c0 = arith.constant 0 : index
    %c0_0 = arith.constant 0 : index
    %0 = vector.load %arg4[%c0, %c0_0] : memref<32x137xf32, #tpu.memory_space<vmem>>, vector<32x137xf32>
    %c0_1 = arith.constant 0 : index
    %c0_2 = arith.constant 0 : index
    %1 = vector.load %arg5[%c0_1, %c0_2] : memref<1x9xf32, #tpu.memory_space<vmem>>, vector<1x9xf32>
    %2 = vector.shape_cast %1 : vector<1x9xf32> to vector<1x9xf32>
    %3 = vector.broadcast %2 : vector<1x9xf32> to vector<2x9xf32>
    %c0_3 = arith.constant 0 : index
    %c0_4 = arith.constant 0 : index
    %4 = vector.load %arg3[%c0_3, %c0_4] : memref<1x128xf32, #tpu.memory_space<vmem>>, vector<1x128xf32>
    %5 = vector.shape_cast %4 : vector<1x128xf32> to vector<1x128xf32>
    %6 = vector.broadcast %5 : vector<1x128xf32> to vector<2x128xf32>
    %cst = arith.constant 0.000000e+00 : f32
    %7 = vector.broadcast %cst : f32 to vector<2x1xf32>
    %cst_5 = arith.constant 0.000000e+00 : f32
    %8 = vector.broadcast %cst_5 : f32 to vector<2x32xf32>
    %cst_6 = arith.constant 0.000000e+00 : f32
    %9 = vector.broadcast %cst_6 : f32 to vector<2x137xf32>
    %10 = vector.extract_strided_slice %9 {offsets = [0, 0], sizes = [2, 128], strides = [1, 1]} : vector<2x137xf32> to vector<2x128xf32>
    %c0_7 = arith.constant 0 : index
    %c0_8 = arith.constant 0 : index
    %c0_9 = arith.constant 0 : index
    %11 = vector.load %arg0[%c0_7, %c0_8, %c0_9] : memref<8x2x128xf32, #tpu.memory_space<vmem>>, vector<1x2x128xf32>
    %12 = vector.shape_cast %11 : vector<1x2x128xf32> to vector<2x128xf32>
    %13 = arith.addf %10, %12 : vector<2x128xf32>
    %14 = arith.negf %13 : vector<2x128xf32>
    %15 = math.exp %14 : vector<2x128xf32>
    %cst_10 = arith.constant 1.000000e+00 : f32
    %16 = vector.broadcast %cst_10 : f32 to vector<2x128xf32>
    %17 = arith.addf %16, %15 : vector<2x128xf32>
    %18 = arith.divf %16, %17 : vector<2x128xf32>
    %19 = vector.extract_strided_slice %18 {offsets = [0, 0], sizes = [2, 32], strides = [1, 1]} : vector<2x128xf32> to vector<2x32xf32>
    %20 = vector.extract_strided_slice %18 {offsets = [0, 32], sizes = [2, 32], strides = [1, 1]} : vector<2x128xf32> to vector<2x32xf32>
    %21 = vector.extract_strided_slice %18 {offsets = [0, 96], sizes = [2, 32], strides = [1, 1]} : vector<2x128xf32> to vector<2x32xf32>
    %22 = vector.extract_strided_slice %13 {offsets = [0, 64], sizes = [2, 32], strides = [1, 1]} : vector<2x128xf32> to vector<2x32xf32>
    %23 = math.tanh %22 : vector<2x32xf32>
    %24 = arith.mulf %20, %8 : vector<2x32xf32>
    %25 = arith.mulf %19, %23 : vector<2x32xf32>
    %26 = arith.addf %24, %25 : vector<2x32xf32>
    %27 = math.tanh %26 : vector<2x32xf32>
    %28 = arith.mulf %21, %27 : vector<2x32xf32>
    %cst_11 = arith.constant dense<0.000000e+00> : vector<2x137xf32>
    %29 = tpu.matmul %28, %0, %cst_11 {dimension_numbers = #tpu.dot_dimension_numbers<[1], [0], [0], [1], [0, 0, 1, 1], [], []>} : vector<2x32xf32>, vector<32x137xf32>, vector<2x137xf32> -> vector<2x137xf32>
    %30 = vector.extract_strided_slice %29 {offsets = [0, 0], sizes = [2, 128], strides = [1, 1]} : vector<2x137xf32> to vector<2x128xf32>
    %c1 = arith.constant 1 : index
    %c0_12 = arith.constant 0 : index
    %c0_13 = arith.constant 0 : index
    %31 = vector.load %arg0[%c1, %c0_12, %c0_13] : memref<8x2x128xf32, #tpu.memory_space<vmem>>, vector<1x2x128xf32>
    %32 = vector.shape_cast %31 : vector<1x2x128xf32> to vector<2x128xf32>
    %33 = arith.addf %30, %32 : vector<2x128xf32>
    %34 = arith.negf %33 : vector<2x128xf32>
    %35 = math.exp %34 : vector<2x128xf32>
    %cst_14 = arith.constant 1.000000e+00 : f32
    %36 = vector.broadcast %cst_14 : f32 to vector<2x128xf32>
    %37 = arith.addf %36, %35 : vector<2x128xf32>
    %38 = arith.divf %36, %37 : vector<2x128xf32>
    %39 = vector.extract_strided_slice %38 {offsets = [0, 0], sizes = [2, 32], strides = [1, 1]} : vector<2x128xf32> to vector<2x32xf32>
    %40 = vector.extract_strided_slice %38 {offsets = [0, 32], sizes = [2, 32], strides = [1, 1]} : vector<2x128xf32> to vector<2x32xf32>
    %41 = vector.extract_strided_slice %38 {offsets = [0, 96], sizes = [2, 32], strides = [1, 1]} : vector<2x128xf32> to vector<2x32xf32>
    %42 = vector.extract_strided_slice %33 {offsets = [0, 64], sizes = [2, 32], strides = [1, 1]} : vector<2x128xf32> to vector<2x32xf32>
    %43 = math.tanh %42 : vector<2x32xf32>
    %44 = arith.mulf %40, %26 : vector<2x32xf32>
    %45 = arith.mulf %39, %43 : vector<2x32xf32>
    %46 = arith.addf %44, %45 : vector<2x32xf32>
    %47 = math.tanh %46 : vector<2x32xf32>
    %48 = arith.mulf %41, %47 : vector<2x32xf32>
    %cst_15 = arith.constant dense<0.000000e+00> : vector<2x137xf32>
    %49 = tpu.matmul %48, %0, %cst_15 {dimension_numbers = #tpu.dot_dimension_numbers<[1], [0], [0], [1], [0, 0, 1, 1], [], []>} : vector<2x32xf32>, vector<32x137xf32>, vector<2x137xf32> -> vector<2x137xf32>
    %50 = vector.extract_strided_slice %49 {offsets = [0, 0], sizes = [2, 128], strides = [1, 1]} : vector<2x137xf32> to vector<2x128xf32>
    %c2 = arith.constant 2 : index
    %c0_16 = arith.constant 0 : index
    %c0_17 = arith.constant 0 : index
    %51 = vector.load %arg0[%c2, %c0_16, %c0_17] : memref<8x2x128xf32, #tpu.memory_space<vmem>>, vector<1x2x128xf32>
    %52 = vector.shape_cast %51 : vector<1x2x128xf32> to vector<2x128xf32>
    %53 = arith.addf %50, %52 : vector<2x128xf32>
    %54 = arith.negf %53 : vector<2x128xf32>
    %55 = math.exp %54 : vector<2x128xf32>
    %cst_18 = arith.constant 1.000000e+00 : f32
    %56 = vector.broadcast %cst_18 : f32 to vector<2x128xf32>
    %57 = arith.addf %56, %55 : vector<2x128xf32>
    %58 = arith.divf %56, %57 : vector<2x128xf32>
    %59 = vector.extract_strided_slice %58 {offsets = [0, 0], sizes = [2, 32], strides = [1, 1]} : vector<2x128xf32> to vector<2x32xf32>
    %60 = vector.extract_strided_slice %58 {offsets = [0, 32], sizes = [2, 32], strides = [1, 1]} : vector<2x128xf32> to vector<2x32xf32>
    %61 = vector.extract_strided_slice %58 {offsets = [0, 96], sizes = [2, 32], strides = [1, 1]} : vector<2x128xf32> to vector<2x32xf32>
    %62 = vector.extract_strided_slice %53 {offsets = [0, 64], sizes = [2, 32], strides = [1, 1]} : vector<2x128xf32> to vector<2x32xf32>
    %63 = math.tanh %62 : vector<2x32xf32>
    %64 = arith.mulf %60, %46 : vector<2x32xf32>
    %65 = arith.mulf %59, %63 : vector<2x32xf32>
    %66 = arith.addf %64, %65 : vector<2x32xf32>
    %67 = math.tanh %66 : vector<2x32xf32>
    %68 = arith.mulf %61, %67 : vector<2x32xf32>
    %cst_19 = arith.constant dense<0.000000e+00> : vector<2x137xf32>
    %69 = tpu.matmul %68, %0, %cst_19 {dimension_numbers = #tpu.dot_dimension_numbers<[1], [0], [0], [1], [0, 0, 1, 1], [], []>} : vector<2x32xf32>, vector<32x137xf32>, vector<2x137xf32> -> vector<2x137xf32>
    %70 = vector.extract_strided_slice %69 {offsets = [0, 0], sizes = [2, 128], strides = [1, 1]} : vector<2x137xf32> to vector<2x128xf32>
    %c3 = arith.constant 3 : index
    %c0_20 = arith.constant 0 : index
    %c0_21 = arith.constant 0 : index
    %71 = vector.load %arg0[%c3, %c0_20, %c0_21] : memref<8x2x128xf32, #tpu.memory_space<vmem>>, vector<1x2x128xf32>
    %72 = vector.shape_cast %71 : vector<1x2x128xf32> to vector<2x128xf32>
    %73 = arith.addf %70, %72 : vector<2x128xf32>
    %74 = arith.negf %73 : vector<2x128xf32>
    %75 = math.exp %74 : vector<2x128xf32>
    %cst_22 = arith.constant 1.000000e+00 : f32
    %76 = vector.broadcast %cst_22 : f32 to vector<2x128xf32>
    %77 = arith.addf %76, %75 : vector<2x128xf32>
    %78 = arith.divf %76, %77 : vector<2x128xf32>
    %79 = vector.extract_strided_slice %78 {offsets = [0, 0], sizes = [2, 32], strides = [1, 1]} : vector<2x128xf32> to vector<2x32xf32>
    %80 = vector.extract_strided_slice %78 {offsets = [0, 32], sizes = [2, 32], strides = [1, 1]} : vector<2x128xf32> to vector<2x32xf32>
    %81 = vector.extract_strided_slice %78 {offsets = [0, 96], sizes = [2, 32], strides = [1, 1]} : vector<2x128xf32> to vector<2x32xf32>
    %82 = vector.extract_strided_slice %73 {offsets = [0, 64], sizes = [2, 32], strides = [1, 1]} : vector<2x128xf32> to vector<2x32xf32>
    %83 = math.tanh %82 : vector<2x32xf32>
    %84 = arith.mulf %80, %66 : vector<2x32xf32>
    %85 = arith.mulf %79, %83 : vector<2x32xf32>
    %86 = arith.addf %84, %85 : vector<2x32xf32>
    %87 = math.tanh %86 : vector<2x32xf32>
    %88 = arith.mulf %81, %87 : vector<2x32xf32>
    %cst_23 = arith.constant dense<0.000000e+00> : vector<2x137xf32>
    %89 = tpu.matmul %88, %0, %cst_23 {dimension_numbers = #tpu.dot_dimension_numbers<[1], [0], [0], [1], [0, 0, 1, 1], [], []>} : vector<2x32xf32>, vector<32x137xf32>, vector<2x137xf32> -> vector<2x137xf32>
    %90 = vector.extract_strided_slice %89 {offsets = [0, 0], sizes = [2, 128], strides = [1, 1]} : vector<2x137xf32> to vector<2x128xf32>
    %c4 = arith.constant 4 : index
    %c0_24 = arith.constant 0 : index
    %c0_25 = arith.constant 0 : index
    %91 = vector.load %arg0[%c4, %c0_24, %c0_25] : memref<8x2x128xf32, #tpu.memory_space<vmem>>, vector<1x2x128xf32>
    %92 = vector.shape_cast %91 : vector<1x2x128xf32> to vector<2x128xf32>
    %93 = arith.addf %90, %92 : vector<2x128xf32>
    %94 = arith.negf %93 : vector<2x128xf32>
    %95 = math.exp %94 : vector<2x128xf32>
    %cst_26 = arith.constant 1.000000e+00 : f32
    %96 = vector.broadcast %cst_26 : f32 to vector<2x128xf32>
    %97 = arith.addf %96, %95 : vector<2x128xf32>
    %98 = arith.divf %96, %97 : vector<2x128xf32>
    %99 = vector.extract_strided_slice %98 {offsets = [0, 0], sizes = [2, 32], strides = [1, 1]} : vector<2x128xf32> to vector<2x32xf32>
    %100 = vector.extract_strided_slice %98 {offsets = [0, 32], sizes = [2, 32], strides = [1, 1]} : vector<2x128xf32> to vector<2x32xf32>
    %101 = vector.extract_strided_slice %98 {offsets = [0, 96], sizes = [2, 32], strides = [1, 1]} : vector<2x128xf32> to vector<2x32xf32>
    %102 = vector.extract_strided_slice %93 {offsets = [0, 64], sizes = [2, 32], strides = [1, 1]} : vector<2x128xf32> to vector<2x32xf32>
    %103 = math.tanh %102 : vector<2x32xf32>
    %104 = arith.mulf %100, %86 : vector<2x32xf32>
    %105 = arith.mulf %99, %103 : vector<2x32xf32>
    %106 = arith.addf %104, %105 : vector<2x32xf32>
    %107 = math.tanh %106 : vector<2x32xf32>
    %108 = arith.mulf %101, %107 : vector<2x32xf32>
    %cst_27 = arith.constant dense<0.000000e+00> : vector<2x137xf32>
    %109 = tpu.matmul %108, %0, %cst_27 {dimension_numbers = #tpu.dot_dimension_numbers<[1], [0], [0], [1], [0, 0, 1, 1], [], []>} : vector<2x32xf32>, vector<32x137xf32>, vector<2x137xf32> -> vector<2x137xf32>
    %110 = vector.extract_strided_slice %109 {offsets = [0, 128], sizes = [2, 9], strides = [1, 1]} : vector<2x137xf32> to vector<2x9xf32>
    %111 = arith.addf %110, %3 : vector<2x9xf32>
    %cst_28 = arith.constant 2.000000e+01 : f32
    %112 = vector.broadcast %cst_28 : f32 to vector<2x9xf32>
    %113 = arith.cmpf ogt, %111, %112 : vector<2x9xf32>
    %cst_29 = arith.constant 2.000000e+01 : f32
    %114 = vector.broadcast %cst_29 : f32 to vector<2x9xf32>
    %115 = arith.minimumf %111, %114 : vector<2x9xf32>
    %116 = math.exp %115 : vector<2x9xf32>
    %117 = math.log1p %116 : vector<2x9xf32>
    %118 = arith.select %113, %111, %117 : vector<2x9xi1>, vector<2x9xf32>
    %119 = vector.extract_strided_slice %118 {offsets = [0, 0], sizes = [2, 1], strides = [1, 1]} : vector<2x9xf32> to vector<2x1xf32>
    %120 = vector.extract_strided_slice %118 {offsets = [0, 1], sizes = [2, 8], strides = [1, 1]} : vector<2x9xf32> to vector<2x8xf32>
    %121 = vector.extract_strided_slice %120 {offsets = [0, 0], sizes = [2, 7], strides = [1, 1]} : vector<2x8xf32> to vector<2x7xf32>
    %122 = tpu.concatenate %119, %121 in 1 : vector<2x1xf32>, vector<2x7xf32> -> vector<2x8xf32>
    %123 = arith.subf %120, %122 : vector<2x8xf32>
    %cst_30 = arith.constant 4.000000e+00 : f32
    %124 = vector.broadcast %cst_30 : f32 to vector<2x8xf32>
    %125 = arith.mulf %123, %124 : vector<2x8xf32>
    %126 = vector.extract_strided_slice %125 {offsets = [0, 0], sizes = [2, 7], strides = [1, 1]} : vector<2x8xf32> to vector<2x7xf32>
    %127 = tpu.concatenate %7, %126 in 1 : vector<2x1xf32>, vector<2x7xf32> -> vector<2x8xf32>
    %128 = arith.subf %125, %127 : vector<2x8xf32>
    %129 = vector.extract_strided_slice %128 {offsets = [0, 0], sizes = [2, 7], strides = [1, 1]} : vector<2x8xf32> to vector<2x7xf32>
    %130 = vector.extract_strided_slice %120 {offsets = [0, 7], sizes = [2, 1], strides = [1, 1]} : vector<2x8xf32> to vector<2x1xf32>
    %131 = vector.extract_strided_slice %128 {offsets = [0, 0], sizes = [2, 7], strides = [1, 1]} : vector<2x8xf32> to vector<2x7xf32>
    %cst_31 = arith.constant dense<0.000000e+00> : vector<2xf32>
    %132 = vector.multi_reduction <add>, %131, %cst_31 [1] : vector<2x7xf32> to vector<2xf32>
    %133 = vector.shape_cast %132 : vector<2xf32> to vector<2x1xf32>
    %134 = arith.subf %130, %133 : vector<2x1xf32>
    %135 = tpu.concatenate %129, %134 in 1 : vector<2x7xf32>, vector<2x1xf32> -> vector<2x8xf32>
    %c0_32 = arith.constant 0 : index
    %c0_33 = arith.constant 0 : index
    %c0_34 = arith.constant 0 : index
    %c0_35 = arith.constant 0 : index
    %136 = vector.load %arg1[%c0_32, %c0_33, %c0_34, %c0_35] : memref<3x4x2x1xf32, #tpu.memory_space<vmem>>, vector<1x1x2x1xf32>
    %137 = vector.shape_cast %136 : vector<1x1x2x1xf32> to vector<2x1xf32>
    %138 = arith.mulf %119, %137 : vector<2x1xf32>
    %c0_36 = arith.constant 0 : index
    %c0_37 = arith.constant 0 : index
    %c0_38 = arith.constant 0 : index
    %c0_39 = arith.constant 0 : index
    %139 = vector.load %arg2[%c0_36, %c0_37, %c0_38, %c0_39] : memref<3x4x2x8xf32, #tpu.memory_space<vmem>>, vector<1x1x2x8xf32>
    %140 = vector.shape_cast %139 : vector<1x1x2x8xf32> to vector<2x8xf32>
    %141 = arith.mulf %140, %135 : vector<2x8xf32>
    %cst_40 = arith.constant dense<0.000000e+00> : vector<2xf32>
    %142 = vector.multi_reduction <add>, %141, %cst_40 [1] : vector<2x8xf32> to vector<2xf32>
    %143 = vector.shape_cast %142 : vector<2xf32> to vector<2x1xf32>
    %144 = arith.addf %138, %143 : vector<2x1xf32>
    %c0_41 = arith.constant 0 : index
    %c0_42 = arith.constant 0 : index
    %c0_43 = arith.constant 0 : index
    %145 = vector.load %arg6[%c0_41, %c0_42, %c0_43] : memref<3x2x4xf32, #tpu.memory_space<vmem>>, vector<1x2x1xf32>
    %146 = vector.shape_cast %145 : vector<1x2x1xf32> to vector<2x1xf32>
    %147 = vector.shape_cast %144 : vector<2x1xf32> to vector<1x2x1xf32>
    tpu.vector_store %arg6[%c0_41, %c0_42, %c0_43], %147 {strides = array<i32>} : memref<3x2x4xf32, #tpu.memory_space<vmem>>, vector<1x2x1xf32>,
    %148 = vector.extract_strided_slice %109 {offsets = [0, 0], sizes = [2, 128], strides = [1, 1]} : vector<2x137xf32> to vector<2x128xf32>
    %c5 = arith.constant 5 : index
    %c0_44 = arith.constant 0 : index
    %c0_45 = arith.constant 0 : index
    %149 = vector.load %arg0[%c5, %c0_44, %c0_45] : memref<8x2x128xf32, #tpu.memory_space<vmem>>, vector<1x2x128xf32>
    %150 = vector.shape_cast %149 : vector<1x2x128xf32> to vector<2x128xf32>
    %151 = arith.addf %148, %150 : vector<2x128xf32>
    %152 = vector.broadcast %144 : vector<2x1xf32> to vector<2x128xf32>
    %153 = arith.mulf %152, %6 : vector<2x128xf32>
    %154 = arith.addf %151, %153 : vector<2x128xf32>
    %155 = arith.negf %154 : vector<2x128xf32>
    %156 = math.exp %155 : vector<2x128xf32>
    %cst_46 = arith.constant 1.000000e+00 : f32
    %157 = vector.broadcast %cst_46 : f32 to vector<2x128xf32>
    %158 = arith.addf %157, %156 : vector<2x128xf32>
    %159 = arith.divf %157, %158 : vector<2x128xf32>
    %160 = vector.extract_strided_slice %159 {offsets = [0, 0], sizes = [2, 32], strides = [1, 1]} : vector<2x128xf32> to vector<2x32xf32>
    %161 = vector.extract_strided_slice %159 {offsets = [0, 32], sizes = [2, 32], strides = [1, 1]} : vector<2x128xf32> to vector<2x32xf32>
    %162 = vector.extract_strided_slice %159 {offsets = [0, 96], sizes = [2, 32], strides = [1, 1]} : vector<2x128xf32> to vector<2x32xf32>
    %163 = vector.extract_strided_slice %154 {offsets = [0, 64], sizes = [2, 32], strides = [1, 1]} : vector<2x128xf32> to vector<2x32xf32>
    %164 = math.tanh %163 : vector<2x32xf32>
    %165 = arith.mulf %161, %106 : vector<2x32xf32>
    %166 = arith.mulf %160, %164 : vector<2x32xf32>
    %167 = arith.addf %165, %166 : vector<2x32xf32>
    %168 = math.tanh %167 : vector<2x32xf32>
    %169 = arith.mulf %162, %168 : vector<2x32xf32>
    %cst_47 = arith.constant dense<0.000000e+00> : vector<2x137xf32>
    %170 = tpu.matmul %169, %0, %cst_47 {dimension_numbers = #tpu.dot_dimension_numbers<[1], [0], [0], [1], [0, 0, 1, 1], [], []>} : vector<2x32xf32>, vector<32x137xf32>, vector<2x137xf32> -> vector<2x137xf32>
    %171 = vector.extract_strided_slice %170 {offsets = [0, 128], sizes = [2, 9], strides = [1, 1]} : vector<2x137xf32> to vector<2x9xf32>
    %172 = arith.addf %171, %3 : vector<2x9xf32>
    %cst_48 = arith.constant 2.000000e+01 : f32
    %173 = vector.broadcast %cst_48 : f32 to vector<2x9xf32>
    %174 = arith.cmpf ogt, %172, %173 : vector<2x9xf32>
    %cst_49 = arith.constant 2.000000e+01 : f32
    %175 = vector.broadcast %cst_49 : f32 to vector<2x9xf32>
    %176 = arith.minimumf %172, %175 : vector<2x9xf32>
    %177 = math.exp %176 : vector<2x9xf32>
    %178 = math.log1p %177 : vector<2x9xf32>
    %179 = arith.select %174, %172, %178 : vector<2x9xi1>, vector<2x9xf32>
    %180 = vector.extract_strided_slice %179 {offsets = [0, 0], sizes = [2, 1], strides = [1, 1]} : vector<2x9xf32> to vector<2x1xf32>
    %181 = vector.extract_strided_slice %179 {offsets = [0, 1], sizes = [2, 8], strides = [1, 1]} : vector<2x9xf32> to vector<2x8xf32>
    %182 = vector.extract_strided_slice %181 {offsets = [0, 0], sizes = [2, 7], strides = [1, 1]} : vector<2x8xf32> to vector<2x7xf32>
    %183 = tpu.concatenate %180, %182 in 1 : vector<2x1xf32>, vector<2x7xf32> -> vector<2x8xf32>
    %184 = arith.subf %181, %183 : vector<2x8xf32>
    %cst_50 = arith.constant 4.000000e+00 : f32
    %185 = vector.broadcast %cst_50 : f32 to vector<2x8xf32>
    %186 = arith.mulf %184, %185 : vector<2x8xf32>
    %187 = vector.extract_strided_slice %186 {offsets = [0, 0], sizes = [2, 7], strides = [1, 1]} : vector<2x8xf32> to vector<2x7xf32>
    %188 = tpu.concatenate %7, %187 in 1 : vector<2x1xf32>, vector<2x7xf32> -> vector<2x8xf32>
    %189 = arith.subf %186, %188 : vector<2x8xf32>
    %190 = vector.extract_strided_slice %189 {offsets = [0, 0], sizes = [2, 7], strides = [1, 1]} : vector<2x8xf32> to vector<2x7xf32>
    %191 = vector.extract_strided_slice %181 {offsets = [0, 7], sizes = [2, 1], strides = [1, 1]} : vector<2x8xf32> to vector<2x1xf32>
    %192 = vector.extract_strided_slice %189 {offsets = [0, 0], sizes = [2, 7], strides = [1, 1]} : vector<2x8xf32> to vector<2x7xf32>
    %cst_51 = arith.constant dense<0.000000e+00> : vector<2xf32>
    %193 = vector.multi_reduction <add>, %192, %cst_51 [1] : vector<2x7xf32> to vector<2xf32>
    %194 = vector.shape_cast %193 : vector<2xf32> to vector<2x1xf32>
    %195 = arith.subf %191, %194 : vector<2x1xf32>
    %196 = tpu.concatenate %190, %195 in 1 : vector<2x7xf32>, vector<2x1xf32> -> vector<2x8xf32>
    %c0_52 = arith.constant 0 : index
    %c1_53 = arith.constant 1 : index
    %c0_54 = arith.constant 0 : index
    %c0_55 = arith.constant 0 : index
    %197 = vector.load %arg1[%c0_52, %c1_53, %c0_54, %c0_55] : memref<3x4x2x1xf32, #tpu.memory_space<vmem>>, vector<1x1x2x1xf32>
    %198 = vector.shape_cast %197 : vector<1x1x2x1xf32> to vector<2x1xf32>
    %199 = arith.mulf %180, %198 : vector<2x1xf32>
    %c0_56 = arith.constant 0 : index
    %c1_57 = arith.constant 1 : index
    %c0_58 = arith.constant 0 : index
    %c0_59 = arith.constant 0 : index
    %200 = vector.load %arg2[%c0_56, %c1_57, %c0_58, %c0_59] : memref<3x4x2x8xf32, #tpu.memory_space<vmem>>, vector<1x1x2x8xf32>
    %201 = vector.shape_cast %200 : vector<1x1x2x8xf32> to vector<2x8xf32>
    %202 = arith.mulf %201, %196 : vector<2x8xf32>
    %cst_60 = arith.constant dense<0.000000e+00> : vector<2xf32>
    %203 = vector.multi_reduction <add>, %202, %cst_60 [1] : vector<2x8xf32> to vector<2xf32>
    %204 = vector.shape_cast %203 : vector<2xf32> to vector<2x1xf32>
    %205 = arith.addf %199, %204 : vector<2x1xf32>
    %c0_61 = arith.constant 0 : index
    %c0_62 = arith.constant 0 : index
    %c1_63 = arith.constant 1 : index
    %206 = vector.load %arg6[%c0_61, %c0_62, %c1_63] : memref<3x2x4xf32, #tpu.memory_space<vmem>>, vector<1x2x1xf32>
    %207 = vector.shape_cast %206 : vector<1x2x1xf32> to vector<2x1xf32>
    %208 = vector.shape_cast %205 : vector<2x1xf32> to vector<1x2x1xf32>
    tpu.vector_store %arg6[%c0_61, %c0_62, %c1_63], %208 {strides = array<i32>} : memref<3x2x4xf32, #tpu.memory_space<vmem>>, vector<1x2x1xf32>,
    %209 = vector.extract_strided_slice %170 {offsets = [0, 0], sizes = [2, 128], strides = [1, 1]} : vector<2x137xf32> to vector<2x128xf32>
    %c6 = arith.constant 6 : index
    %c0_64 = arith.constant 0 : index
    %c0_65 = arith.constant 0 : index
    %210 = vector.load %arg0[%c6, %c0_64, %c0_65] : memref<8x2x128xf32, #tpu.memory_space<vmem>>, vector<1x2x128xf32>
    %211 = vector.shape_cast %210 : vector<1x2x128xf32> to vector<2x128xf32>
    %212 = arith.addf %209, %211 : vector<2x128xf32>
    %213 = vector.broadcast %205 : vector<2x1xf32> to vector<2x128xf32>
    %214 = arith.mulf %213, %6 : vector<2x128xf32>
    %215 = arith.addf %212, %214 : vector<2x128xf32>
    %216 = arith.negf %215 : vector<2x128xf32>
    %217 = math.exp %216 : vector<2x128xf32>
    %cst_66 = arith.constant 1.000000e+00 : f32
    %218 = vector.broadcast %cst_66 : f32 to vector<2x128xf32>
    %219 = arith.addf %218, %217 : vector<2x128xf32>
    %220 = arith.divf %218, %219 : vector<2x128xf32>
    %221 = vector.extract_strided_slice %220 {offsets = [0, 0], sizes = [2, 32], strides = [1, 1]} : vector<2x128xf32> to vector<2x32xf32>
    %222 = vector.extract_strided_slice %220 {offsets = [0, 32], sizes = [2, 32], strides = [1, 1]} : vector<2x128xf32> to vector<2x32xf32>
    %223 = vector.extract_strided_slice %220 {offsets = [0, 96], sizes = [2, 32], strides = [1, 1]} : vector<2x128xf32> to vector<2x32xf32>
    %224 = vector.extract_strided_slice %215 {offsets = [0, 64], sizes = [2, 32], strides = [1, 1]} : vector<2x128xf32> to vector<2x32xf32>
    %225 = math.tanh %224 : vector<2x32xf32>
    %226 = arith.mulf %222, %167 : vector<2x32xf32>
    %227 = arith.mulf %221, %225 : vector<2x32xf32>
    %228 = arith.addf %226, %227 : vector<2x32xf32>
    %229 = math.tanh %228 : vector<2x32xf32>
    %230 = arith.mulf %223, %229 : vector<2x32xf32>
    %cst_67 = arith.constant dense<0.000000e+00> : vector<2x137xf32>
    %231 = tpu.matmul %230, %0, %cst_67 {dimension_numbers = #tpu.dot_dimension_numbers<[1], [0], [0], [1], [0, 0, 1, 1], [], []>} : vector<2x32xf32>, vector<32x137xf32>, vector<2x137xf32> -> vector<2x137xf32>
    %232 = vector.extract_strided_slice %231 {offsets = [0, 128], sizes = [2, 9], strides = [1, 1]} : vector<2x137xf32> to vector<2x9xf32>
    %233 = arith.addf %232, %3 : vector<2x9xf32>
    %cst_68 = arith.constant 2.000000e+01 : f32
    %234 = vector.broadcast %cst_68 : f32 to vector<2x9xf32>
    %235 = arith.cmpf ogt, %233, %234 : vector<2x9xf32>
    %cst_69 = arith.constant 2.000000e+01 : f32
    %236 = vector.broadcast %cst_69 : f32 to vector<2x9xf32>
    %237 = arith.minimumf %233, %236 : vector<2x9xf32>
    %238 = math.exp %237 : vector<2x9xf32>
    %239 = math.log1p %238 : vector<2x9xf32>
    %240 = arith.select %235, %233, %239 : vector<2x9xi1>, vector<2x9xf32>
    %241 = vector.extract_strided_slice %240 {offsets = [0, 0], sizes = [2, 1], strides = [1, 1]} : vector<2x9xf32> to vector<2x1xf32>
    %242 = vector.extract_strided_slice %240 {offsets = [0, 1], sizes = [2, 8], strides = [1, 1]} : vector<2x9xf32> to vector<2x8xf32>
    %243 = vector.extract_strided_slice %242 {offsets = [0, 0], sizes = [2, 7], strides = [1, 1]} : vector<2x8xf32> to vector<2x7xf32>
    %244 = tpu.concatenate %241, %243 in 1 : vector<2x1xf32>, vector<2x7xf32> -> vector<2x8xf32>
    %245 = arith.subf %242, %244 : vector<2x8xf32>
    %cst_70 = arith.constant 4.000000e+00 : f32
    %246 = vector.broadcast %cst_70 : f32 to vector<2x8xf32>
    %247 = arith.mulf %245, %246 : vector<2x8xf32>
    %248 = vector.extract_strided_slice %247 {offsets = [0, 0], sizes = [2, 7], strides = [1, 1]} : vector<2x8xf32> to vector<2x7xf32>
    %249 = tpu.concatenate %7, %248 in 1 : vector<2x1xf32>, vector<2x7xf32> -> vector<2x8xf32>
    %250 = arith.subf %247, %249 : vector<2x8xf32>
    %251 = vector.extract_strided_slice %250 {offsets = [0, 0], sizes = [2, 7], strides = [1, 1]} : vector<2x8xf32> to vector<2x7xf32>
    %252 = vector.extract_strided_slice %242 {offsets = [0, 7], sizes = [2, 1], strides = [1, 1]} : vector<2x8xf32> to vector<2x1xf32>
    %253 = vector.extract_strided_slice %250 {offsets = [0, 0], sizes = [2, 7], strides = [1, 1]} : vector<2x8xf32> to vector<2x7xf32>
    %cst_71 = arith.constant dense<0.000000e+00> : vector<2xf32>
    %254 = vector.multi_reduction <add>, %253, %cst_71 [1] : vector<2x7xf32> to vector<2xf32>
    %255 = vector.shape_cast %254 : vector<2xf32> to vector<2x1xf32>
    %256 = arith.subf %252, %255 : vector<2x1xf32>
    %257 = tpu.concatenate %251, %256 in 1 : vector<2x7xf32>, vector<2x1xf32> -> vector<2x8xf32>
    %c0_72 = arith.constant 0 : index
    %c2_73 = arith.constant 2 : index
    %c0_74 = arith.constant 0 : index
    %c0_75 = arith.constant 0 : index
    %258 = vector.load %arg1[%c0_72, %c2_73, %c0_74, %c0_75] : memref<3x4x2x1xf32, #tpu.memory_space<vmem>>, vector<1x1x2x1xf32>
    %259 = vector.shape_cast %258 : vector<1x1x2x1xf32> to vector<2x1xf32>
    %260 = arith.mulf %241, %259 : vector<2x1xf32>
    %c0_76 = arith.constant 0 : index
    %c2_77 = arith.constant 2 : index
    %c0_78 = arith.constant 0 : index
    %c0_79 = arith.constant 0 : index
    %261 = vector.load %arg2[%c0_76, %c2_77, %c0_78, %c0_79] : memref<3x4x2x8xf32, #tpu.memory_space<vmem>>, vector<1x1x2x8xf32>
    %262 = vector.shape_cast %261 : vector<1x1x2x8xf32> to vector<2x8xf32>
    %263 = arith.mulf %262, %257 : vector<2x8xf32>
    %cst_80 = arith.constant dense<0.000000e+00> : vector<2xf32>
    %264 = vector.multi_reduction <add>, %263, %cst_80 [1] : vector<2x8xf32> to vector<2xf32>
    %265 = vector.shape_cast %264 : vector<2xf32> to vector<2x1xf32>
    %266 = arith.addf %260, %265 : vector<2x1xf32>
    %c0_81 = arith.constant 0 : index
    %c0_82 = arith.constant 0 : index
    %c2_83 = arith.constant 2 : index
    %267 = vector.load %arg6[%c0_81, %c0_82, %c2_83] : memref<3x2x4xf32, #tpu.memory_space<vmem>>, vector<1x2x1xf32>
    %268 = vector.shape_cast %267 : vector<1x2x1xf32> to vector<2x1xf32>
    %269 = vector.shape_cast %266 : vector<2x1xf32> to vector<1x2x1xf32>
    tpu.vector_store %arg6[%c0_81, %c0_82, %c2_83], %269 {strides = array<i32>} : memref<3x2x4xf32, #tpu.memory_space<vmem>>, vector<1x2x1xf32>,
    %270 = vector.extract_strided_slice %231 {offsets = [0, 0], sizes = [2, 128], strides = [1, 1]} : vector<2x137xf32> to vector<2x128xf32>
    %c7 = arith.constant 7 : index
    %c0_84 = arith.constant 0 : index
    %c0_85 = arith.constant 0 : index
    %271 = vector.load %arg0[%c7, %c0_84, %c0_85] : memref<8x2x128xf32, #tpu.memory_space<vmem>>, vector<1x2x128xf32>
    %272 = vector.shape_cast %271 : vector<1x2x128xf32> to vector<2x128xf32>
    %273 = arith.addf %270, %272 : vector<2x128xf32>
    %274 = vector.broadcast %266 : vector<2x1xf32> to vector<2x128xf32>
    %275 = arith.mulf %274, %6 : vector<2x128xf32>
    %276 = arith.addf %273, %275 : vector<2x128xf32>
    %277 = arith.negf %276 : vector<2x128xf32>
    %278 = math.exp %277 : vector<2x128xf32>
    %cst_86 = arith.constant 1.000000e+00 : f32
    %279 = vector.broadcast %cst_86 : f32 to vector<2x128xf32>
    %280 = arith.addf %279, %278 : vector<2x128xf32>
    %281 = arith.divf %279, %280 : vector<2x128xf32>
    %282 = vector.extract_strided_slice %281 {offsets = [0, 0], sizes = [2, 32], strides = [1, 1]} : vector<2x128xf32> to vector<2x32xf32>
    %283 = vector.extract_strided_slice %281 {offsets = [0, 32], sizes = [2, 32], strides = [1, 1]} : vector<2x128xf32> to vector<2x32xf32>
    %284 = vector.extract_strided_slice %281 {offsets = [0, 96], sizes = [2, 32], strides = [1, 1]} : vector<2x128xf32> to vector<2x32xf32>
    %285 = vector.extract_strided_slice %276 {offsets = [0, 64], sizes = [2, 32], strides = [1, 1]} : vector<2x128xf32> to vector<2x32xf32>
    %286 = math.tanh %285 : vector<2x32xf32>
    %287 = arith.mulf %283, %228 : vector<2x32xf32>
    %288 = arith.mulf %282, %286 : vector<2x32xf32>
    %289 = arith.addf %287, %288 : vector<2x32xf32>
    %290 = math.tanh %289 : vector<2x32xf32>
    %291 = arith.mulf %284, %290 : vector<2x32xf32>
    %cst_87 = arith.constant dense<0.000000e+00> : vector<2x137xf32>
    %292 = tpu.matmul %291, %0, %cst_87 {dimension_numbers = #tpu.dot_dimension_numbers<[1], [0], [0], [1], [0, 0, 1, 1], [], []>} : vector<2x32xf32>, vector<32x137xf32>, vector<2x137xf32> -> vector<2x137xf32>
    %293 = vector.extract_strided_slice %292 {offsets = [0, 128], sizes = [2, 9], strides = [1, 1]} : vector<2x137xf32> to vector<2x9xf32>
    %294 = arith.addf %293, %3 : vector<2x9xf32>
    %cst_88 = arith.constant 2.000000e+01 : f32
    %295 = vector.broadcast %cst_88 : f32 to vector<2x9xf32>
    %296 = arith.cmpf ogt, %294, %295 : vector<2x9xf32>
    %cst_89 = arith.constant 2.000000e+01 : f32
    %297 = vector.broadcast %cst_89 : f32 to vector<2x9xf32>
    %298 = arith.minimumf %294, %297 : vector<2x9xf32>
    %299 = math.exp %298 : vector<2x9xf32>
    %300 = math.log1p %299 : vector<2x9xf32>
    %301 = arith.select %296, %294, %300 : vector<2x9xi1>, vector<2x9xf32>
    %302 = vector.extract_strided_slice %301 {offsets = [0, 0], sizes = [2, 1], strides = [1, 1]} : vector<2x9xf32> to vector<2x1xf32>
    %303 = vector.extract_strided_slice %301 {offsets = [0, 1], sizes = [2, 8], strides = [1, 1]} : vector<2x9xf32> to vector<2x8xf32>
    %304 = vector.extract_strided_slice %303 {offsets = [0, 0], sizes = [2, 7], strides = [1, 1]} : vector<2x8xf32> to vector<2x7xf32>
    %305 = tpu.concatenate %302, %304 in 1 : vector<2x1xf32>, vector<2x7xf32> -> vector<2x8xf32>
    %306 = arith.subf %303, %305 : vector<2x8xf32>
    %cst_90 = arith.constant 4.000000e+00 : f32
    %307 = vector.broadcast %cst_90 : f32 to vector<2x8xf32>
    %308 = arith.mulf %306, %307 : vector<2x8xf32>
    %309 = vector.extract_strided_slice %308 {offsets = [0, 0], sizes = [2, 7], strides = [1, 1]} : vector<2x8xf32> to vector<2x7xf32>
    %310 = tpu.concatenate %7, %309 in 1 : vector<2x1xf32>, vector<2x7xf32> -> vector<2x8xf32>
    %311 = arith.subf %308, %310 : vector<2x8xf32>
    %312 = vector.extract_strided_slice %311 {offsets = [0, 0], sizes = [2, 7], strides = [1, 1]} : vector<2x8xf32> to vector<2x7xf32>
    %313 = vector.extract_strided_slice %303 {offsets = [0, 7], sizes = [2, 1], strides = [1, 1]} : vector<2x8xf32> to vector<2x1xf32>
    %314 = vector.extract_strided_slice %311 {offsets = [0, 0], sizes = [2, 7], strides = [1, 1]} : vector<2x8xf32> to vector<2x7xf32>
    %cst_91 = arith.constant dense<0.000000e+00> : vector<2xf32>
    %315 = vector.multi_reduction <add>, %314, %cst_91 [1] : vector<2x7xf32> to vector<2xf32>
    %316 = vector.shape_cast %315 : vector<2xf32> to vector<2x1xf32>
    %317 = arith.subf %313, %316 : vector<2x1xf32>
    %318 = tpu.concatenate %312, %317 in 1 : vector<2x7xf32>, vector<2x1xf32> -> vector<2x8xf32>
    %c0_92 = arith.constant 0 : index
    %c3_93 = arith.constant 3 : index
    %c0_94 = arith.constant 0 : index
    %c0_95 = arith.constant 0 : index
    %319 = vector.load %arg1[%c0_92, %c3_93, %c0_94, %c0_95] : memref<3x4x2x1xf32, #tpu.memory_space<vmem>>, vector<1x1x2x1xf32>
    %320 = vector.shape_cast %319 : vector<1x1x2x1xf32> to vector<2x1xf32>
    %321 = arith.mulf %302, %320 : vector<2x1xf32>
    %c0_96 = arith.constant 0 : index
    %c3_97 = arith.constant 3 : index
    %c0_98 = arith.constant 0 : index
    %c0_99 = arith.constant 0 : index
    %322 = vector.load %arg2[%c0_96, %c3_97, %c0_98, %c0_99] : memref<3x4x2x8xf32, #tpu.memory_space<vmem>>, vector<1x1x2x8xf32>
    %323 = vector.shape_cast %322 : vector<1x1x2x8xf32> to vector<2x8xf32>
    %324 = arith.mulf %323, %318 : vector<2x8xf32>
    %cst_100 = arith.constant dense<0.000000e+00> : vector<2xf32>
    %325 = vector.multi_reduction <add>, %324, %cst_100 [1] : vector<2x8xf32> to vector<2xf32>
    %326 = vector.shape_cast %325 : vector<2xf32> to vector<2x1xf32>
    %327 = arith.addf %321, %326 : vector<2x1xf32>
    %c0_101 = arith.constant 0 : index
    %c0_102 = arith.constant 0 : index
    %c3_103 = arith.constant 3 : index
    %328 = vector.load %arg6[%c0_101, %c0_102, %c3_103] : memref<3x2x4xf32, #tpu.memory_space<vmem>>, vector<1x2x1xf32>
    %329 = vector.shape_cast %328 : vector<1x2x1xf32> to vector<2x1xf32>
    %330 = vector.shape_cast %327 : vector<2x1xf32> to vector<1x2x1xf32>
    tpu.vector_store %arg6[%c0_101, %c0_102, %c3_103], %330 {strides = array<i32>} : memref<3x2x4xf32, #tpu.memory_space<vmem>>, vector<1x2x1xf32>,
    %331 = vector.extract_strided_slice %292 {offsets = [0, 0], sizes = [2, 128], strides = [1, 1]} : vector<2x137xf32> to vector<2x128xf32>
    %c4_104 = arith.constant 4 : index
    %c0_105 = arith.constant 0 : index
    %c0_106 = arith.constant 0 : index
    %332 = vector.load %arg0[%c4_104, %c0_105, %c0_106] : memref<8x2x128xf32, #tpu.memory_space<vmem>>, vector<1x2x128xf32>
    %333 = vector.shape_cast %332 : vector<1x2x128xf32> to vector<2x128xf32>
    %334 = arith.addf %331, %333 : vector<2x128xf32>
    %335 = arith.negf %334 : vector<2x128xf32>
    %336 = math.exp %335 : vector<2x128xf32>
    %cst_107 = arith.constant 1.000000e+00 : f32
    %337 = vector.broadcast %cst_107 : f32 to vector<2x128xf32>
    %338 = arith.addf %337, %336 : vector<2x128xf32>
    %339 = arith.divf %337, %338 : vector<2x128xf32>
    %340 = vector.extract_strided_slice %339 {offsets = [0, 0], sizes = [2, 32], strides = [1, 1]} : vector<2x128xf32> to vector<2x32xf32>
    %341 = vector.extract_strided_slice %339 {offsets = [0, 32], sizes = [2, 32], strides = [1, 1]} : vector<2x128xf32> to vector<2x32xf32>
    %342 = vector.extract_strided_slice %339 {offsets = [0, 96], sizes = [2, 32], strides = [1, 1]} : vector<2x128xf32> to vector<2x32xf32>
    %343 = vector.extract_strided_slice %334 {offsets = [0, 64], sizes = [2, 32], strides = [1, 1]} : vector<2x128xf32> to vector<2x32xf32>
    %344 = math.tanh %343 : vector<2x32xf32>
    %345 = arith.mulf %341, %289 : vector<2x32xf32>
    %346 = arith.mulf %340, %344 : vector<2x32xf32>
    %347 = arith.addf %345, %346 : vector<2x32xf32>
    %348 = math.tanh %347 : vector<2x32xf32>
    %349 = arith.mulf %342, %348 : vector<2x32xf32>
    %cst_108 = arith.constant dense<0.000000e+00> : vector<2x137xf32>
    %350 = tpu.matmul %349, %0, %cst_108 {dimension_numbers = #tpu.dot_dimension_numbers<[1], [0], [0], [1], [0, 0, 1, 1], [], []>} : vector<2x32xf32>, vector<32x137xf32>, vector<2x137xf32> -> vector<2x137xf32>
    %351 = vector.extract_strided_slice %350 {offsets = [0, 128], sizes = [2, 9], strides = [1, 1]} : vector<2x137xf32> to vector<2x9xf32>
    %352 = arith.addf %351, %3 : vector<2x9xf32>
    %cst_109 = arith.constant 2.000000e+01 : f32
    %353 = vector.broadcast %cst_109 : f32 to vector<2x9xf32>
    %354 = arith.cmpf ogt, %352, %353 : vector<2x9xf32>
    %cst_110 = arith.constant 2.000000e+01 : f32
    %355 = vector.broadcast %cst_110 : f32 to vector<2x9xf32>
    %356 = arith.minimumf %352, %355 : vector<2x9xf32>
    %357 = math.exp %356 : vector<2x9xf32>
    %358 = math.log1p %357 : vector<2x9xf32>
    %359 = arith.select %354, %352, %358 : vector<2x9xi1>, vector<2x9xf32>
    %360 = vector.extract_strided_slice %359 {offsets = [0, 0], sizes = [2, 1], strides = [1, 1]} : vector<2x9xf32> to vector<2x1xf32>
    %361 = vector.extract_strided_slice %359 {offsets = [0, 1], sizes = [2, 8], strides = [1, 1]} : vector<2x9xf32> to vector<2x8xf32>
    %362 = vector.extract_strided_slice %361 {offsets = [0, 0], sizes = [2, 7], strides = [1, 1]} : vector<2x8xf32> to vector<2x7xf32>
    %363 = tpu.concatenate %360, %362 in 1 : vector<2x1xf32>, vector<2x7xf32> -> vector<2x8xf32>
    %364 = arith.subf %361, %363 : vector<2x8xf32>
    %cst_111 = arith.constant 4.000000e+00 : f32
    %365 = vector.broadcast %cst_111 : f32 to vector<2x8xf32>
    %366 = arith.mulf %364, %365 : vector<2x8xf32>
    %367 = vector.extract_strided_slice %366 {offsets = [0, 0], sizes = [2, 7], strides = [1, 1]} : vector<2x8xf32> to vector<2x7xf32>
    %368 = tpu.concatenate %7, %367 in 1 : vector<2x1xf32>, vector<2x7xf32> -> vector<2x8xf32>
    %369 = arith.subf %366, %368 : vector<2x8xf32>
    %370 = vector.extract_strided_slice %369 {offsets = [0, 0], sizes = [2, 7], strides = [1, 1]} : vector<2x8xf32> to vector<2x7xf32>
    %371 = vector.extract_strided_slice %361 {offsets = [0, 7], sizes = [2, 1], strides = [1, 1]} : vector<2x8xf32> to vector<2x1xf32>
    %372 = vector.extract_strided_slice %369 {offsets = [0, 0], sizes = [2, 7], strides = [1, 1]} : vector<2x8xf32> to vector<2x7xf32>
    %cst_112 = arith.constant dense<0.000000e+00> : vector<2xf32>
    %373 = vector.multi_reduction <add>, %372, %cst_112 [1] : vector<2x7xf32> to vector<2xf32>
    %374 = vector.shape_cast %373 : vector<2xf32> to vector<2x1xf32>
    %375 = arith.subf %371, %374 : vector<2x1xf32>
    %376 = tpu.concatenate %370, %375 in 1 : vector<2x7xf32>, vector<2x1xf32> -> vector<2x8xf32>
    %c1_113 = arith.constant 1 : index
    %c0_114 = arith.constant 0 : index
    %c0_115 = arith.constant 0 : index
    %c0_116 = arith.constant 0 : index
    %377 = vector.load %arg1[%c1_113, %c0_114, %c0_115, %c0_116] : memref<3x4x2x1xf32, #tpu.memory_space<vmem>>, vector<1x1x2x1xf32>
    %378 = vector.shape_cast %377 : vector<1x1x2x1xf32> to vector<2x1xf32>
    %379 = arith.mulf %360, %378 : vector<2x1xf32>
    %c1_117 = arith.constant 1 : index
    %c0_118 = arith.constant 0 : index
    %c0_119 = arith.constant 0 : index
    %c0_120 = arith.constant 0 : index
    %380 = vector.load %arg2[%c1_117, %c0_118, %c0_119, %c0_120] : memref<3x4x2x8xf32, #tpu.memory_space<vmem>>, vector<1x1x2x8xf32>
    %381 = vector.shape_cast %380 : vector<1x1x2x8xf32> to vector<2x8xf32>
    %382 = arith.mulf %381, %376 : vector<2x8xf32>
    %cst_121 = arith.constant dense<0.000000e+00> : vector<2xf32>
    %383 = vector.multi_reduction <add>, %382, %cst_121 [1] : vector<2x8xf32> to vector<2xf32>
    %384 = vector.shape_cast %383 : vector<2xf32> to vector<2x1xf32>
    %385 = arith.addf %379, %384 : vector<2x1xf32>
    %c1_122 = arith.constant 1 : index
    %c0_123 = arith.constant 0 : index
    %c0_124 = arith.constant 0 : index
    %386 = vector.load %arg6[%c1_122, %c0_123, %c0_124] : memref<3x2x4xf32, #tpu.memory_space<vmem>>, vector<1x2x1xf32>
    %387 = vector.shape_cast %386 : vector<1x2x1xf32> to vector<2x1xf32>
    %388 = vector.shape_cast %385 : vector<2x1xf32> to vector<1x2x1xf32>
    tpu.vector_store %arg6[%c1_122, %c0_123, %c0_124], %388 {strides = array<i32>} : memref<3x2x4xf32, #tpu.memory_space<vmem>>, vector<1x2x1xf32>,
    %389 = vector.extract_strided_slice %350 {offsets = [0, 0], sizes = [2, 128], strides = [1, 1]} : vector<2x137xf32> to vector<2x128xf32>
    %c5_125 = arith.constant 5 : index
    %c0_126 = arith.constant 0 : index
    %c0_127 = arith.constant 0 : index
    %390 = vector.load %arg0[%c5_125, %c0_126, %c0_127] : memref<8x2x128xf32, #tpu.memory_space<vmem>>, vector<1x2x128xf32>
    %391 = vector.shape_cast %390 : vector<1x2x128xf32> to vector<2x128xf32>
    %392 = arith.addf %389, %391 : vector<2x128xf32>
    %393 = vector.broadcast %385 : vector<2x1xf32> to vector<2x128xf32>
    %394 = arith.mulf %393, %6 : vector<2x128xf32>
    %395 = arith.addf %392, %394 : vector<2x128xf32>
    %396 = arith.negf %395 : vector<2x128xf32>
    %397 = math.exp %396 : vector<2x128xf32>
    %cst_128 = arith.constant 1.000000e+00 : f32
    %398 = vector.broadcast %cst_128 : f32 to vector<2x128xf32>
    %399 = arith.addf %398, %397 : vector<2x128xf32>
    %400 = arith.divf %398, %399 : vector<2x128xf32>
    %401 = vector.extract_strided_slice %400 {offsets = [0, 0], sizes = [2, 32], strides = [1, 1]} : vector<2x128xf32> to vector<2x32xf32>
    %402 = vector.extract_strided_slice %400 {offsets = [0, 32], sizes = [2, 32], strides = [1, 1]} : vector<2x128xf32> to vector<2x32xf32>
    %403 = vector.extract_strided_slice %400 {offsets = [0, 96], sizes = [2, 32], strides = [1, 1]} : vector<2x128xf32> to vector<2x32xf32>
    %404 = vector.extract_strided_slice %395 {offsets = [0, 64], sizes = [2, 32], strides = [1, 1]} : vector<2x128xf32> to vector<2x32xf32>
    %405 = math.tanh %404 : vector<2x32xf32>
    %406 = arith.mulf %402, %347 : vector<2x32xf32>
    %407 = arith.mulf %401, %405 : vector<2x32xf32>
    %408 = arith.addf %406, %407 : vector<2x32xf32>
    %409 = math.tanh %408 : vector<2x32xf32>
    %410 = arith.mulf %403, %409 : vector<2x32xf32>
    %cst_129 = arith.constant dense<0.000000e+00> : vector<2x137xf32>
    %411 = tpu.matmul %410, %0, %cst_129 {dimension_numbers = #tpu.dot_dimension_numbers<[1], [0], [0], [1], [0, 0, 1, 1], [], []>} : vector<2x32xf32>, vector<32x137xf32>, vector<2x137xf32> -> vector<2x137xf32>
    %412 = vector.extract_strided_slice %411 {offsets = [0, 128], sizes = [2, 9], strides = [1, 1]} : vector<2x137xf32> to vector<2x9xf32>
    %413 = arith.addf %412, %3 : vector<2x9xf32>
    %cst_130 = arith.constant 2.000000e+01 : f32
    %414 = vector.broadcast %cst_130 : f32 to vector<2x9xf32>
    %415 = arith.cmpf ogt, %413, %414 : vector<2x9xf32>
    %cst_131 = arith.constant 2.000000e+01 : f32
    %416 = vector.broadcast %cst_131 : f32 to vector<2x9xf32>
    %417 = arith.minimumf %413, %416 : vector<2x9xf32>
    %418 = math.exp %417 : vector<2x9xf32>
    %419 = math.log1p %418 : vector<2x9xf32>
    %420 = arith.select %415, %413, %419 : vector<2x9xi1>, vector<2x9xf32>
    %421 = vector.extract_strided_slice %420 {offsets = [0, 0], sizes = [2, 1], strides = [1, 1]} : vector<2x9xf32> to vector<2x1xf32>
    %422 = vector.extract_strided_slice %420 {offsets = [0, 1], sizes = [2, 8], strides = [1, 1]} : vector<2x9xf32> to vector<2x8xf32>
    %423 = vector.extract_strided_slice %422 {offsets = [0, 0], sizes = [2, 7], strides = [1, 1]} : vector<2x8xf32> to vector<2x7xf32>
    %424 = tpu.concatenate %421, %423 in 1 : vector<2x1xf32>, vector<2x7xf32> -> vector<2x8xf32>
    %425 = arith.subf %422, %424 : vector<2x8xf32>
    %cst_132 = arith.constant 4.000000e+00 : f32
    %426 = vector.broadcast %cst_132 : f32 to vector<2x8xf32>
    %427 = arith.mulf %425, %426 : vector<2x8xf32>
    %428 = vector.extract_strided_slice %427 {offsets = [0, 0], sizes = [2, 7], strides = [1, 1]} : vector<2x8xf32> to vector<2x7xf32>
    %429 = tpu.concatenate %7, %428 in 1 : vector<2x1xf32>, vector<2x7xf32> -> vector<2x8xf32>
    %430 = arith.subf %427, %429 : vector<2x8xf32>
    %431 = vector.extract_strided_slice %430 {offsets = [0, 0], sizes = [2, 7], strides = [1, 1]} : vector<2x8xf32> to vector<2x7xf32>
    %432 = vector.extract_strided_slice %422 {offsets = [0, 7], sizes = [2, 1], strides = [1, 1]} : vector<2x8xf32> to vector<2x1xf32>
    %433 = vector.extract_strided_slice %430 {offsets = [0, 0], sizes = [2, 7], strides = [1, 1]} : vector<2x8xf32> to vector<2x7xf32>
    %cst_133 = arith.constant dense<0.000000e+00> : vector<2xf32>
    %434 = vector.multi_reduction <add>, %433, %cst_133 [1] : vector<2x7xf32> to vector<2xf32>
    %435 = vector.shape_cast %434 : vector<2xf32> to vector<2x1xf32>
    %436 = arith.subf %432, %435 : vector<2x1xf32>
    %437 = tpu.concatenate %431, %436 in 1 : vector<2x7xf32>, vector<2x1xf32> -> vector<2x8xf32>
    %c1_134 = arith.constant 1 : index
    %c1_135 = arith.constant 1 : index
    %c0_136 = arith.constant 0 : index
    %c0_137 = arith.constant 0 : index
    %438 = vector.load %arg1[%c1_134, %c1_135, %c0_136, %c0_137] : memref<3x4x2x1xf32, #tpu.memory_space<vmem>>, vector<1x1x2x1xf32>
    %439 = vector.shape_cast %438 : vector<1x1x2x1xf32> to vector<2x1xf32>
    %440 = arith.mulf %421, %439 : vector<2x1xf32>
    %c1_138 = arith.constant 1 : index
    %c1_139 = arith.constant 1 : index
    %c0_140 = arith.constant 0 : index
    %c0_141 = arith.constant 0 : index
    %441 = vector.load %arg2[%c1_138, %c1_139, %c0_140, %c0_141] : memref<3x4x2x8xf32, #tpu.memory_space<vmem>>, vector<1x1x2x8xf32>
    %442 = vector.shape_cast %441 : vector<1x1x2x8xf32> to vector<2x8xf32>
    %443 = arith.mulf %442, %437 : vector<2x8xf32>
    %cst_142 = arith.constant dense<0.000000e+00> : vector<2xf32>
    %444 = vector.multi_reduction <add>, %443, %cst_142 [1] : vector<2x8xf32> to vector<2xf32>
    %445 = vector.shape_cast %444 : vector<2xf32> to vector<2x1xf32>
    %446 = arith.addf %440, %445 : vector<2x1xf32>
    %c1_143 = arith.constant 1 : index
    %c0_144 = arith.constant 0 : index
    %c1_145 = arith.constant 1 : index
    %447 = vector.load %arg6[%c1_143, %c0_144, %c1_145] : memref<3x2x4xf32, #tpu.memory_space<vmem>>, vector<1x2x1xf32>
    %448 = vector.shape_cast %447 : vector<1x2x1xf32> to vector<2x1xf32>
    %449 = vector.shape_cast %446 : vector<2x1xf32> to vector<1x2x1xf32>
    tpu.vector_store %arg6[%c1_143, %c0_144, %c1_145], %449 {strides = array<i32>} : memref<3x2x4xf32, #tpu.memory_space<vmem>>, vector<1x2x1xf32>,
    %450 = vector.extract_strided_slice %411 {offsets = [0, 0], sizes = [2, 128], strides = [1, 1]} : vector<2x137xf32> to vector<2x128xf32>
    %c6_146 = arith.constant 6 : index
    %c0_147 = arith.constant 0 : index
    %c0_148 = arith.constant 0 : index
    %451 = vector.load %arg0[%c6_146, %c0_147, %c0_148] : memref<8x2x128xf32, #tpu.memory_space<vmem>>, vector<1x2x128xf32>
    %452 = vector.shape_cast %451 : vector<1x2x128xf32> to vector<2x128xf32>
    %453 = arith.addf %450, %452 : vector<2x128xf32>
    %454 = vector.broadcast %446 : vector<2x1xf32> to vector<2x128xf32>
    %455 = arith.mulf %454, %6 : vector<2x128xf32>
    %456 = arith.addf %453, %455 : vector<2x128xf32>
    %457 = arith.negf %456 : vector<2x128xf32>
    %458 = math.exp %457 : vector<2x128xf32>
    %cst_149 = arith.constant 1.000000e+00 : f32
    %459 = vector.broadcast %cst_149 : f32 to vector<2x128xf32>
    %460 = arith.addf %459, %458 : vector<2x128xf32>
    %461 = arith.divf %459, %460 : vector<2x128xf32>
    %462 = vector.extract_strided_slice %461 {offsets = [0, 0], sizes = [2, 32], strides = [1, 1]} : vector<2x128xf32> to vector<2x32xf32>
    %463 = vector.extract_strided_slice %461 {offsets = [0, 32], sizes = [2, 32], strides = [1, 1]} : vector<2x128xf32> to vector<2x32xf32>
    %464 = vector.extract_strided_slice %461 {offsets = [0, 96], sizes = [2, 32], strides = [1, 1]} : vector<2x128xf32> to vector<2x32xf32>
    %465 = vector.extract_strided_slice %456 {offsets = [0, 64], sizes = [2, 32], strides = [1, 1]} : vector<2x128xf32> to vector<2x32xf32>
    %466 = math.tanh %465 : vector<2x32xf32>
    %467 = arith.mulf %463, %408 : vector<2x32xf32>
    %468 = arith.mulf %462, %466 : vector<2x32xf32>
    %469 = arith.addf %467, %468 : vector<2x32xf32>
    %470 = math.tanh %469 : vector<2x32xf32>
    %471 = arith.mulf %464, %470 : vector<2x32xf32>
    %cst_150 = arith.constant dense<0.000000e+00> : vector<2x137xf32>
    %472 = tpu.matmul %471, %0, %cst_150 {dimension_numbers = #tpu.dot_dimension_numbers<[1], [0], [0], [1], [0, 0, 1, 1], [], []>} : vector<2x32xf32>, vector<32x137xf32>, vector<2x137xf32> -> vector<2x137xf32>
    %473 = vector.extract_strided_slice %472 {offsets = [0, 128], sizes = [2, 9], strides = [1, 1]} : vector<2x137xf32> to vector<2x9xf32>
    %474 = arith.addf %473, %3 : vector<2x9xf32>
    %cst_151 = arith.constant 2.000000e+01 : f32
    %475 = vector.broadcast %cst_151 : f32 to vector<2x9xf32>
    %476 = arith.cmpf ogt, %474, %475 : vector<2x9xf32>
    %cst_152 = arith.constant 2.000000e+01 : f32
    %477 = vector.broadcast %cst_152 : f32 to vector<2x9xf32>
    %478 = arith.minimumf %474, %477 : vector<2x9xf32>
    %479 = math.exp %478 : vector<2x9xf32>
    %480 = math.log1p %479 : vector<2x9xf32>
    %481 = arith.select %476, %474, %480 : vector<2x9xi1>, vector<2x9xf32>
    %482 = vector.extract_strided_slice %481 {offsets = [0, 0], sizes = [2, 1], strides = [1, 1]} : vector<2x9xf32> to vector<2x1xf32>
    %483 = vector.extract_strided_slice %481 {offsets = [0, 1], sizes = [2, 8], strides = [1, 1]} : vector<2x9xf32> to vector<2x8xf32>
    %484 = vector.extract_strided_slice %483 {offsets = [0, 0], sizes = [2, 7], strides = [1, 1]} : vector<2x8xf32> to vector<2x7xf32>
    %485 = tpu.concatenate %482, %484 in 1 : vector<2x1xf32>, vector<2x7xf32> -> vector<2x8xf32>
    %486 = arith.subf %483, %485 : vector<2x8xf32>
    %cst_153 = arith.constant 4.000000e+00 : f32
    %487 = vector.broadcast %cst_153 : f32 to vector<2x8xf32>
    %488 = arith.mulf %486, %487 : vector<2x8xf32>
    %489 = vector.extract_strided_slice %488 {offsets = [0, 0], sizes = [2, 7], strides = [1, 1]} : vector<2x8xf32> to vector<2x7xf32>
    %490 = tpu.concatenate %7, %489 in 1 : vector<2x1xf32>, vector<2x7xf32> -> vector<2x8xf32>
    %491 = arith.subf %488, %490 : vector<2x8xf32>
    %492 = vector.extract_strided_slice %491 {offsets = [0, 0], sizes = [2, 7], strides = [1, 1]} : vector<2x8xf32> to vector<2x7xf32>
    %493 = vector.extract_strided_slice %483 {offsets = [0, 7], sizes = [2, 1], strides = [1, 1]} : vector<2x8xf32> to vector<2x1xf32>
    %494 = vector.extract_strided_slice %491 {offsets = [0, 0], sizes = [2, 7], strides = [1, 1]} : vector<2x8xf32> to vector<2x7xf32>
    %cst_154 = arith.constant dense<0.000000e+00> : vector<2xf32>
    %495 = vector.multi_reduction <add>, %494, %cst_154 [1] : vector<2x7xf32> to vector<2xf32>
    %496 = vector.shape_cast %495 : vector<2xf32> to vector<2x1xf32>
    %497 = arith.subf %493, %496 : vector<2x1xf32>
    %498 = tpu.concatenate %492, %497 in 1 : vector<2x7xf32>, vector<2x1xf32> -> vector<2x8xf32>
    %c1_155 = arith.constant 1 : index
    %c2_156 = arith.constant 2 : index
    %c0_157 = arith.constant 0 : index
    %c0_158 = arith.constant 0 : index
    %499 = vector.load %arg1[%c1_155, %c2_156, %c0_157, %c0_158] : memref<3x4x2x1xf32, #tpu.memory_space<vmem>>, vector<1x1x2x1xf32>
    %500 = vector.shape_cast %499 : vector<1x1x2x1xf32> to vector<2x1xf32>
    %501 = arith.mulf %482, %500 : vector<2x1xf32>
    %c1_159 = arith.constant 1 : index
    %c2_160 = arith.constant 2 : index
    %c0_161 = arith.constant 0 : index
    %c0_162 = arith.constant 0 : index
    %502 = vector.load %arg2[%c1_159, %c2_160, %c0_161, %c0_162] : memref<3x4x2x8xf32, #tpu.memory_space<vmem>>, vector<1x1x2x8xf32>
    %503 = vector.shape_cast %502 : vector<1x1x2x8xf32> to vector<2x8xf32>
    %504 = arith.mulf %503, %498 : vector<2x8xf32>
    %cst_163 = arith.constant dense<0.000000e+00> : vector<2xf32>
    %505 = vector.multi_reduction <add>, %504, %cst_163 [1] : vector<2x8xf32> to vector<2xf32>
    %506 = vector.shape_cast %505 : vector<2xf32> to vector<2x1xf32>
    %507 = arith.addf %501, %506 : vector<2x1xf32>
    %c1_164 = arith.constant 1 : index
    %c0_165 = arith.constant 0 : index
    %c2_166 = arith.constant 2 : index
    %508 = vector.load %arg6[%c1_164, %c0_165, %c2_166] : memref<3x2x4xf32, #tpu.memory_space<vmem>>, vector<1x2x1xf32>
    %509 = vector.shape_cast %508 : vector<1x2x1xf32> to vector<2x1xf32>
    %510 = vector.shape_cast %507 : vector<2x1xf32> to vector<1x2x1xf32>
    tpu.vector_store %arg6[%c1_164, %c0_165, %c2_166], %510 {strides = array<i32>} : memref<3x2x4xf32, #tpu.memory_space<vmem>>, vector<1x2x1xf32>,
    %511 = vector.extract_strided_slice %472 {offsets = [0, 0], sizes = [2, 128], strides = [1, 1]} : vector<2x137xf32> to vector<2x128xf32>
    %c7_167 = arith.constant 7 : index
    %c0_168 = arith.constant 0 : index
    %c0_169 = arith.constant 0 : index
    %512 = vector.load %arg0[%c7_167, %c0_168, %c0_169] : memref<8x2x128xf32, #tpu.memory_space<vmem>>, vector<1x2x128xf32>
    %513 = vector.shape_cast %512 : vector<1x2x128xf32> to vector<2x128xf32>
    %514 = arith.addf %511, %513 : vector<2x128xf32>
    %515 = vector.broadcast %507 : vector<2x1xf32> to vector<2x128xf32>
    %516 = arith.mulf %515, %6 : vector<2x128xf32>
    %517 = arith.addf %514, %516 : vector<2x128xf32>
    %518 = arith.negf %517 : vector<2x128xf32>
    %519 = math.exp %518 : vector<2x128xf32>
    %cst_170 = arith.constant 1.000000e+00 : f32
    %520 = vector.broadcast %cst_170 : f32 to vector<2x128xf32>
    %521 = arith.addf %520, %519 : vector<2x128xf32>
    %522 = arith.divf %520, %521 : vector<2x128xf32>
    %523 = vector.extract_strided_slice %522 {offsets = [0, 0], sizes = [2, 32], strides = [1, 1]} : vector<2x128xf32> to vector<2x32xf32>
    %524 = vector.extract_strided_slice %522 {offsets = [0, 32], sizes = [2, 32], strides = [1, 1]} : vector<2x128xf32> to vector<2x32xf32>
    %525 = vector.extract_strided_slice %522 {offsets = [0, 96], sizes = [2, 32], strides = [1, 1]} : vector<2x128xf32> to vector<2x32xf32>
    %526 = vector.extract_strided_slice %517 {offsets = [0, 64], sizes = [2, 32], strides = [1, 1]} : vector<2x128xf32> to vector<2x32xf32>
    %527 = math.tanh %526 : vector<2x32xf32>
    %528 = arith.mulf %524, %469 : vector<2x32xf32>
    %529 = arith.mulf %523, %527 : vector<2x32xf32>
    %530 = arith.addf %528, %529 : vector<2x32xf32>
    %531 = math.tanh %530 : vector<2x32xf32>
    %532 = arith.mulf %525, %531 : vector<2x32xf32>
    %cst_171 = arith.constant dense<0.000000e+00> : vector<2x137xf32>
    %533 = tpu.matmul %532, %0, %cst_171 {dimension_numbers = #tpu.dot_dimension_numbers<[1], [0], [0], [1], [0, 0, 1, 1], [], []>} : vector<2x32xf32>, vector<32x137xf32>, vector<2x137xf32> -> vector<2x137xf32>
    %534 = vector.extract_strided_slice %533 {offsets = [0, 128], sizes = [2, 9], strides = [1, 1]} : vector<2x137xf32> to vector<2x9xf32>
    %535 = arith.addf %534, %3 : vector<2x9xf32>
    %cst_172 = arith.constant 2.000000e+01 : f32
    %536 = vector.broadcast %cst_172 : f32 to vector<2x9xf32>
    %537 = arith.cmpf ogt, %535, %536 : vector<2x9xf32>
    %cst_173 = arith.constant 2.000000e+01 : f32
    %538 = vector.broadcast %cst_173 : f32 to vector<2x9xf32>
    %539 = arith.minimumf %535, %538 : vector<2x9xf32>
    %540 = math.exp %539 : vector<2x9xf32>
    %541 = math.log1p %540 : vector<2x9xf32>
    %542 = arith.select %537, %535, %541 : vector<2x9xi1>, vector<2x9xf32>
    %543 = vector.extract_strided_slice %542 {offsets = [0, 0], sizes = [2, 1], strides = [1, 1]} : vector<2x9xf32> to vector<2x1xf32>
    %544 = vector.extract_strided_slice %542 {offsets = [0, 1], sizes = [2, 8], strides = [1, 1]} : vector<2x9xf32> to vector<2x8xf32>
    %545 = vector.extract_strided_slice %544 {offsets = [0, 0], sizes = [2, 7], strides = [1, 1]} : vector<2x8xf32> to vector<2x7xf32>
    %546 = tpu.concatenate %543, %545 in 1 : vector<2x1xf32>, vector<2x7xf32> -> vector<2x8xf32>
    %547 = arith.subf %544, %546 : vector<2x8xf32>
    %cst_174 = arith.constant 4.000000e+00 : f32
    %548 = vector.broadcast %cst_174 : f32 to vector<2x8xf32>
    %549 = arith.mulf %547, %548 : vector<2x8xf32>
    %550 = vector.extract_strided_slice %549 {offsets = [0, 0], sizes = [2, 7], strides = [1, 1]} : vector<2x8xf32> to vector<2x7xf32>
    %551 = tpu.concatenate %7, %550 in 1 : vector<2x1xf32>, vector<2x7xf32> -> vector<2x8xf32>
    %552 = arith.subf %549, %551 : vector<2x8xf32>
    %553 = vector.extract_strided_slice %552 {offsets = [0, 0], sizes = [2, 7], strides = [1, 1]} : vector<2x8xf32> to vector<2x7xf32>
    %554 = vector.extract_strided_slice %544 {offsets = [0, 7], sizes = [2, 1], strides = [1, 1]} : vector<2x8xf32> to vector<2x1xf32>
    %555 = vector.extract_strided_slice %552 {offsets = [0, 0], sizes = [2, 7], strides = [1, 1]} : vector<2x8xf32> to vector<2x7xf32>
    %cst_175 = arith.constant dense<0.000000e+00> : vector<2xf32>
    %556 = vector.multi_reduction <add>, %555, %cst_175 [1] : vector<2x7xf32> to vector<2xf32>
    %557 = vector.shape_cast %556 : vector<2xf32> to vector<2x1xf32>
    %558 = arith.subf %554, %557 : vector<2x1xf32>
    %559 = tpu.concatenate %553, %558 in 1 : vector<2x7xf32>, vector<2x1xf32> -> vector<2x8xf32>
    %c1_176 = arith.constant 1 : index
    %c3_177 = arith.constant 3 : index
    %c0_178 = arith.constant 0 : index
    %c0_179 = arith.constant 0 : index
    %560 = vector.load %arg1[%c1_176, %c3_177, %c0_178, %c0_179] : memref<3x4x2x1xf32, #tpu.memory_space<vmem>>, vector<1x1x2x1xf32>
    %561 = vector.shape_cast %560 : vector<1x1x2x1xf32> to vector<2x1xf32>
    %562 = arith.mulf %543, %561 : vector<2x1xf32>
    %c1_180 = arith.constant 1 : index
    %c3_181 = arith.constant 3 : index
    %c0_182 = arith.constant 0 : index
    %c0_183 = arith.constant 0 : index
    %563 = vector.load %arg2[%c1_180, %c3_181, %c0_182, %c0_183] : memref<3x4x2x8xf32, #tpu.memory_space<vmem>>, vector<1x1x2x8xf32>
    %564 = vector.shape_cast %563 : vector<1x1x2x8xf32> to vector<2x8xf32>
    %565 = arith.mulf %564, %559 : vector<2x8xf32>
    %cst_184 = arith.constant dense<0.000000e+00> : vector<2xf32>
    %566 = vector.multi_reduction <add>, %565, %cst_184 [1] : vector<2x8xf32> to vector<2xf32>
    %567 = vector.shape_cast %566 : vector<2xf32> to vector<2x1xf32>
    %568 = arith.addf %562, %567 : vector<2x1xf32>
    %c1_185 = arith.constant 1 : index
    %c0_186 = arith.constant 0 : index
    %c3_187 = arith.constant 3 : index
    %569 = vector.load %arg6[%c1_185, %c0_186, %c3_187] : memref<3x2x4xf32, #tpu.memory_space<vmem>>, vector<1x2x1xf32>
    %570 = vector.shape_cast %569 : vector<1x2x1xf32> to vector<2x1xf32>
    %571 = vector.shape_cast %568 : vector<2x1xf32> to vector<1x2x1xf32>
    tpu.vector_store %arg6[%c1_185, %c0_186, %c3_187], %571 {strides = array<i32>} : memref<3x2x4xf32, #tpu.memory_space<vmem>>, vector<1x2x1xf32>,
    %572 = vector.extract_strided_slice %533 {offsets = [0, 0], sizes = [2, 128], strides = [1, 1]} : vector<2x137xf32> to vector<2x128xf32>
    %c4_188 = arith.constant 4 : index
    %c0_189 = arith.constant 0 : index
    %c0_190 = arith.constant 0 : index
    %573 = vector.load %arg0[%c4_188, %c0_189, %c0_190] : memref<8x2x128xf32, #tpu.memory_space<vmem>>, vector<1x2x128xf32>
    %574 = vector.shape_cast %573 : vector<1x2x128xf32> to vector<2x128xf32>
    %575 = arith.addf %572, %574 : vector<2x128xf32>
    %576 = arith.negf %575 : vector<2x128xf32>
    %577 = math.exp %576 : vector<2x128xf32>
    %cst_191 = arith.constant 1.000000e+00 : f32
    %578 = vector.broadcast %cst_191 : f32 to vector<2x128xf32>
    %579 = arith.addf %578, %577 : vector<2x128xf32>
    %580 = arith.divf %578, %579 : vector<2x128xf32>
    %581 = vector.extract_strided_slice %580 {offsets = [0, 0], sizes = [2, 32], strides = [1, 1]} : vector<2x128xf32> to vector<2x32xf32>
    %582 = vector.extract_strided_slice %580 {offsets = [0, 32], sizes = [2, 32], strides = [1, 1]} : vector<2x128xf32> to vector<2x32xf32>
    %583 = vector.extract_strided_slice %580 {offsets = [0, 96], sizes = [2, 32], strides = [1, 1]} : vector<2x128xf32> to vector<2x32xf32>
    %584 = vector.extract_strided_slice %575 {offsets = [0, 64], sizes = [2, 32], strides = [1, 1]} : vector<2x128xf32> to vector<2x32xf32>
    %585 = math.tanh %584 : vector<2x32xf32>
    %586 = arith.mulf %582, %530 : vector<2x32xf32>
    %587 = arith.mulf %581, %585 : vector<2x32xf32>
    %588 = arith.addf %586, %587 : vector<2x32xf32>
    %589 = math.tanh %588 : vector<2x32xf32>
    %590 = arith.mulf %583, %589 : vector<2x32xf32>
    %cst_192 = arith.constant dense<0.000000e+00> : vector<2x137xf32>
    %591 = tpu.matmul %590, %0, %cst_192 {dimension_numbers = #tpu.dot_dimension_numbers<[1], [0], [0], [1], [0, 0, 1, 1], [], []>} : vector<2x32xf32>, vector<32x137xf32>, vector<2x137xf32> -> vector<2x137xf32>
    %592 = vector.extract_strided_slice %591 {offsets = [0, 128], sizes = [2, 9], strides = [1, 1]} : vector<2x137xf32> to vector<2x9xf32>
    %593 = arith.addf %592, %3 : vector<2x9xf32>
    %cst_193 = arith.constant 2.000000e+01 : f32
    %594 = vector.broadcast %cst_193 : f32 to vector<2x9xf32>
    %595 = arith.cmpf ogt, %593, %594 : vector<2x9xf32>
    %cst_194 = arith.constant 2.000000e+01 : f32
    %596 = vector.broadcast %cst_194 : f32 to vector<2x9xf32>
    %597 = arith.minimumf %593, %596 : vector<2x9xf32>
    %598 = math.exp %597 : vector<2x9xf32>
    %599 = math.log1p %598 : vector<2x9xf32>
    %600 = arith.select %595, %593, %599 : vector<2x9xi1>, vector<2x9xf32>
    %601 = vector.extract_strided_slice %600 {offsets = [0, 0], sizes = [2, 1], strides = [1, 1]} : vector<2x9xf32> to vector<2x1xf32>
    %602 = vector.extract_strided_slice %600 {offsets = [0, 1], sizes = [2, 8], strides = [1, 1]} : vector<2x9xf32> to vector<2x8xf32>
    %603 = vector.extract_strided_slice %602 {offsets = [0, 0], sizes = [2, 7], strides = [1, 1]} : vector<2x8xf32> to vector<2x7xf32>
    %604 = tpu.concatenate %601, %603 in 1 : vector<2x1xf32>, vector<2x7xf32> -> vector<2x8xf32>
    %605 = arith.subf %602, %604 : vector<2x8xf32>
    %cst_195 = arith.constant 4.000000e+00 : f32
    %606 = vector.broadcast %cst_195 : f32 to vector<2x8xf32>
    %607 = arith.mulf %605, %606 : vector<2x8xf32>
    %608 = vector.extract_strided_slice %607 {offsets = [0, 0], sizes = [2, 7], strides = [1, 1]} : vector<2x8xf32> to vector<2x7xf32>
    %609 = tpu.concatenate %7, %608 in 1 : vector<2x1xf32>, vector<2x7xf32> -> vector<2x8xf32>
    %610 = arith.subf %607, %609 : vector<2x8xf32>
    %611 = vector.extract_strided_slice %610 {offsets = [0, 0], sizes = [2, 7], strides = [1, 1]} : vector<2x8xf32> to vector<2x7xf32>
    %612 = vector.extract_strided_slice %602 {offsets = [0, 7], sizes = [2, 1], strides = [1, 1]} : vector<2x8xf32> to vector<2x1xf32>
    %613 = vector.extract_strided_slice %610 {offsets = [0, 0], sizes = [2, 7], strides = [1, 1]} : vector<2x8xf32> to vector<2x7xf32>
    %cst_196 = arith.constant dense<0.000000e+00> : vector<2xf32>
    %614 = vector.multi_reduction <add>, %613, %cst_196 [1] : vector<2x7xf32> to vector<2xf32>
    %615 = vector.shape_cast %614 : vector<2xf32> to vector<2x1xf32>
    %616 = arith.subf %612, %615 : vector<2x1xf32>
    %617 = tpu.concatenate %611, %616 in 1 : vector<2x7xf32>, vector<2x1xf32> -> vector<2x8xf32>
    %c2_197 = arith.constant 2 : index
    %c0_198 = arith.constant 0 : index
    %c0_199 = arith.constant 0 : index
    %c0_200 = arith.constant 0 : index
    %618 = vector.load %arg1[%c2_197, %c0_198, %c0_199, %c0_200] : memref<3x4x2x1xf32, #tpu.memory_space<vmem>>, vector<1x1x2x1xf32>
    %619 = vector.shape_cast %618 : vector<1x1x2x1xf32> to vector<2x1xf32>
    %620 = arith.mulf %601, %619 : vector<2x1xf32>
    %c2_201 = arith.constant 2 : index
    %c0_202 = arith.constant 0 : index
    %c0_203 = arith.constant 0 : index
    %c0_204 = arith.constant 0 : index
    %621 = vector.load %arg2[%c2_201, %c0_202, %c0_203, %c0_204] : memref<3x4x2x8xf32, #tpu.memory_space<vmem>>, vector<1x1x2x8xf32>
    %622 = vector.shape_cast %621 : vector<1x1x2x8xf32> to vector<2x8xf32>
    %623 = arith.mulf %622, %617 : vector<2x8xf32>
    %cst_205 = arith.constant dense<0.000000e+00> : vector<2xf32>
    %624 = vector.multi_reduction <add>, %623, %cst_205 [1] : vector<2x8xf32> to vector<2xf32>
    %625 = vector.shape_cast %624 : vector<2xf32> to vector<2x1xf32>
    %626 = arith.addf %620, %625 : vector<2x1xf32>
    %c2_206 = arith.constant 2 : index
    %c0_207 = arith.constant 0 : index
    %c0_208 = arith.constant 0 : index
    %627 = vector.load %arg6[%c2_206, %c0_207, %c0_208] : memref<3x2x4xf32, #tpu.memory_space<vmem>>, vector<1x2x1xf32>
    %628 = vector.shape_cast %627 : vector<1x2x1xf32> to vector<2x1xf32>
    %629 = vector.shape_cast %626 : vector<2x1xf32> to vector<1x2x1xf32>
    tpu.vector_store %arg6[%c2_206, %c0_207, %c0_208], %629 {strides = array<i32>} : memref<3x2x4xf32, #tpu.memory_space<vmem>>, vector<1x2x1xf32>,
    %630 = vector.extract_strided_slice %591 {offsets = [0, 0], sizes = [2, 128], strides = [1, 1]} : vector<2x137xf32> to vector<2x128xf32>
    %c5_209 = arith.constant 5 : index
    %c0_210 = arith.constant 0 : index
    %c0_211 = arith.constant 0 : index
    %631 = vector.load %arg0[%c5_209, %c0_210, %c0_211] : memref<8x2x128xf32, #tpu.memory_space<vmem>>, vector<1x2x128xf32>
    %632 = vector.shape_cast %631 : vector<1x2x128xf32> to vector<2x128xf32>
    %633 = arith.addf %630, %632 : vector<2x128xf32>
    %634 = vector.broadcast %626 : vector<2x1xf32> to vector<2x128xf32>
    %635 = arith.mulf %634, %6 : vector<2x128xf32>
    %636 = arith.addf %633, %635 : vector<2x128xf32>
    %637 = arith.negf %636 : vector<2x128xf32>
    %638 = math.exp %637 : vector<2x128xf32>
    %cst_212 = arith.constant 1.000000e+00 : f32
    %639 = vector.broadcast %cst_212 : f32 to vector<2x128xf32>
    %640 = arith.addf %639, %638 : vector<2x128xf32>
    %641 = arith.divf %639, %640 : vector<2x128xf32>
    %642 = vector.extract_strided_slice %641 {offsets = [0, 0], sizes = [2, 32], strides = [1, 1]} : vector<2x128xf32> to vector<2x32xf32>
    %643 = vector.extract_strided_slice %641 {offsets = [0, 32], sizes = [2, 32], strides = [1, 1]} : vector<2x128xf32> to vector<2x32xf32>
    %644 = vector.extract_strided_slice %641 {offsets = [0, 96], sizes = [2, 32], strides = [1, 1]} : vector<2x128xf32> to vector<2x32xf32>
    %645 = vector.extract_strided_slice %636 {offsets = [0, 64], sizes = [2, 32], strides = [1, 1]} : vector<2x128xf32> to vector<2x32xf32>
    %646 = math.tanh %645 : vector<2x32xf32>
    %647 = arith.mulf %643, %588 : vector<2x32xf32>
    %648 = arith.mulf %642, %646 : vector<2x32xf32>
    %649 = arith.addf %647, %648 : vector<2x32xf32>
    %650 = math.tanh %649 : vector<2x32xf32>
    %651 = arith.mulf %644, %650 : vector<2x32xf32>
    %cst_213 = arith.constant dense<0.000000e+00> : vector<2x137xf32>
    %652 = tpu.matmul %651, %0, %cst_213 {dimension_numbers = #tpu.dot_dimension_numbers<[1], [0], [0], [1], [0, 0, 1, 1], [], []>} : vector<2x32xf32>, vector<32x137xf32>, vector<2x137xf32> -> vector<2x137xf32>
    %653 = vector.extract_strided_slice %652 {offsets = [0, 128], sizes = [2, 9], strides = [1, 1]} : vector<2x137xf32> to vector<2x9xf32>
    %654 = arith.addf %653, %3 : vector<2x9xf32>
    %cst_214 = arith.constant 2.000000e+01 : f32
    %655 = vector.broadcast %cst_214 : f32 to vector<2x9xf32>
    %656 = arith.cmpf ogt, %654, %655 : vector<2x9xf32>
    %cst_215 = arith.constant 2.000000e+01 : f32
    %657 = vector.broadcast %cst_215 : f32 to vector<2x9xf32>
    %658 = arith.minimumf %654, %657 : vector<2x9xf32>
    %659 = math.exp %658 : vector<2x9xf32>
    %660 = math.log1p %659 : vector<2x9xf32>
    %661 = arith.select %656, %654, %660 : vector<2x9xi1>, vector<2x9xf32>
    %662 = vector.extract_strided_slice %661 {offsets = [0, 0], sizes = [2, 1], strides = [1, 1]} : vector<2x9xf32> to vector<2x1xf32>
    %663 = vector.extract_strided_slice %661 {offsets = [0, 1], sizes = [2, 8], strides = [1, 1]} : vector<2x9xf32> to vector<2x8xf32>
    %664 = vector.extract_strided_slice %663 {offsets = [0, 0], sizes = [2, 7], strides = [1, 1]} : vector<2x8xf32> to vector<2x7xf32>
    %665 = tpu.concatenate %662, %664 in 1 : vector<2x1xf32>, vector<2x7xf32> -> vector<2x8xf32>
    %666 = arith.subf %663, %665 : vector<2x8xf32>
    %cst_216 = arith.constant 4.000000e+00 : f32
    %667 = vector.broadcast %cst_216 : f32 to vector<2x8xf32>
    %668 = arith.mulf %666, %667 : vector<2x8xf32>
    %669 = vector.extract_strided_slice %668 {offsets = [0, 0], sizes = [2, 7], strides = [1, 1]} : vector<2x8xf32> to vector<2x7xf32>
    %670 = tpu.concatenate %7, %669 in 1 : vector<2x1xf32>, vector<2x7xf32> -> vector<2x8xf32>
    %671 = arith.subf %668, %670 : vector<2x8xf32>
    %672 = vector.extract_strided_slice %671 {offsets = [0, 0], sizes = [2, 7], strides = [1, 1]} : vector<2x8xf32> to vector<2x7xf32>
    %673 = vector.extract_strided_slice %663 {offsets = [0, 7], sizes = [2, 1], strides = [1, 1]} : vector<2x8xf32> to vector<2x1xf32>
    %674 = vector.extract_strided_slice %671 {offsets = [0, 0], sizes = [2, 7], strides = [1, 1]} : vector<2x8xf32> to vector<2x7xf32>
    %cst_217 = arith.constant dense<0.000000e+00> : vector<2xf32>
    %675 = vector.multi_reduction <add>, %674, %cst_217 [1] : vector<2x7xf32> to vector<2xf32>
    %676 = vector.shape_cast %675 : vector<2xf32> to vector<2x1xf32>
    %677 = arith.subf %673, %676 : vector<2x1xf32>
    %678 = tpu.concatenate %672, %677 in 1 : vector<2x7xf32>, vector<2x1xf32> -> vector<2x8xf32>
    %c2_218 = arith.constant 2 : index
    %c1_219 = arith.constant 1 : index
    %c0_220 = arith.constant 0 : index
    %c0_221 = arith.constant 0 : index
    %679 = vector.load %arg1[%c2_218, %c1_219, %c0_220, %c0_221] : memref<3x4x2x1xf32, #tpu.memory_space<vmem>>, vector<1x1x2x1xf32>
    %680 = vector.shape_cast %679 : vector<1x1x2x1xf32> to vector<2x1xf32>
    %681 = arith.mulf %662, %680 : vector<2x1xf32>
    %c2_222 = arith.constant 2 : index
    %c1_223 = arith.constant 1 : index
    %c0_224 = arith.constant 0 : index
    %c0_225 = arith.constant 0 : index
    %682 = vector.load %arg2[%c2_222, %c1_223, %c0_224, %c0_225] : memref<3x4x2x8xf32, #tpu.memory_space<vmem>>, vector<1x1x2x8xf32>
    %683 = vector.shape_cast %682 : vector<1x1x2x8xf32> to vector<2x8xf32>
    %684 = arith.mulf %683, %678 : vector<2x8xf32>
    %cst_226 = arith.constant dense<0.000000e+00> : vector<2xf32>
    %685 = vector.multi_reduction <add>, %684, %cst_226 [1] : vector<2x8xf32> to vector<2xf32>
    %686 = vector.shape_cast %685 : vector<2xf32> to vector<2x1xf32>
    %687 = arith.addf %681, %686 : vector<2x1xf32>
    %c2_227 = arith.constant 2 : index
    %c0_228 = arith.constant 0 : index
    %c1_229 = arith.constant 1 : index
    %688 = vector.load %arg6[%c2_227, %c0_228, %c1_229] : memref<3x2x4xf32, #tpu.memory_space<vmem>>, vector<1x2x1xf32>
    %689 = vector.shape_cast %688 : vector<1x2x1xf32> to vector<2x1xf32>
    %690 = vector.shape_cast %687 : vector<2x1xf32> to vector<1x2x1xf32>
    tpu.vector_store %arg6[%c2_227, %c0_228, %c1_229], %690 {strides = array<i32>} : memref<3x2x4xf32, #tpu.memory_space<vmem>>, vector<1x2x1xf32>,
    %691 = vector.extract_strided_slice %652 {offsets = [0, 0], sizes = [2, 128], strides = [1, 1]} : vector<2x137xf32> to vector<2x128xf32>
    %c6_230 = arith.constant 6 : index
    %c0_231 = arith.constant 0 : index
    %c0_232 = arith.constant 0 : index
    %692 = vector.load %arg0[%c6_230, %c0_231, %c0_232] : memref<8x2x128xf32, #tpu.memory_space<vmem>>, vector<1x2x128xf32>
    %693 = vector.shape_cast %692 : vector<1x2x128xf32> to vector<2x128xf32>
    %694 = arith.addf %691, %693 : vector<2x128xf32>
    %695 = vector.broadcast %687 : vector<2x1xf32> to vector<2x128xf32>
    %696 = arith.mulf %695, %6 : vector<2x128xf32>
    %697 = arith.addf %694, %696 : vector<2x128xf32>
    %698 = arith.negf %697 : vector<2x128xf32>
    %699 = math.exp %698 : vector<2x128xf32>
    %cst_233 = arith.constant 1.000000e+00 : f32
    %700 = vector.broadcast %cst_233 : f32 to vector<2x128xf32>
    %701 = arith.addf %700, %699 : vector<2x128xf32>
    %702 = arith.divf %700, %701 : vector<2x128xf32>
    %703 = vector.extract_strided_slice %702 {offsets = [0, 0], sizes = [2, 32], strides = [1, 1]} : vector<2x128xf32> to vector<2x32xf32>
    %704 = vector.extract_strided_slice %702 {offsets = [0, 32], sizes = [2, 32], strides = [1, 1]} : vector<2x128xf32> to vector<2x32xf32>
    %705 = vector.extract_strided_slice %702 {offsets = [0, 96], sizes = [2, 32], strides = [1, 1]} : vector<2x128xf32> to vector<2x32xf32>
    %706 = vector.extract_strided_slice %697 {offsets = [0, 64], sizes = [2, 32], strides = [1, 1]} : vector<2x128xf32> to vector<2x32xf32>
    %707 = math.tanh %706 : vector<2x32xf32>
    %708 = arith.mulf %704, %649 : vector<2x32xf32>
    %709 = arith.mulf %703, %707 : vector<2x32xf32>
    %710 = arith.addf %708, %709 : vector<2x32xf32>
    %711 = math.tanh %710 : vector<2x32xf32>
    %712 = arith.mulf %705, %711 : vector<2x32xf32>
    %cst_234 = arith.constant dense<0.000000e+00> : vector<2x137xf32>
    %713 = tpu.matmul %712, %0, %cst_234 {dimension_numbers = #tpu.dot_dimension_numbers<[1], [0], [0], [1], [0, 0, 1, 1], [], []>} : vector<2x32xf32>, vector<32x137xf32>, vector<2x137xf32> -> vector<2x137xf32>
    %714 = vector.extract_strided_slice %713 {offsets = [0, 128], sizes = [2, 9], strides = [1, 1]} : vector<2x137xf32> to vector<2x9xf32>
    %715 = arith.addf %714, %3 : vector<2x9xf32>
    %cst_235 = arith.constant 2.000000e+01 : f32
    %716 = vector.broadcast %cst_235 : f32 to vector<2x9xf32>
    %717 = arith.cmpf ogt, %715, %716 : vector<2x9xf32>
    %cst_236 = arith.constant 2.000000e+01 : f32
    %718 = vector.broadcast %cst_236 : f32 to vector<2x9xf32>
    %719 = arith.minimumf %715, %718 : vector<2x9xf32>
    %720 = math.exp %719 : vector<2x9xf32>
    %721 = math.log1p %720 : vector<2x9xf32>
    %722 = arith.select %717, %715, %721 : vector<2x9xi1>, vector<2x9xf32>
    %723 = vector.extract_strided_slice %722 {offsets = [0, 0], sizes = [2, 1], strides = [1, 1]} : vector<2x9xf32> to vector<2x1xf32>
    %724 = vector.extract_strided_slice %722 {offsets = [0, 1], sizes = [2, 8], strides = [1, 1]} : vector<2x9xf32> to vector<2x8xf32>
    %725 = vector.extract_strided_slice %724 {offsets = [0, 0], sizes = [2, 7], strides = [1, 1]} : vector<2x8xf32> to vector<2x7xf32>
    %726 = tpu.concatenate %723, %725 in 1 : vector<2x1xf32>, vector<2x7xf32> -> vector<2x8xf32>
    %727 = arith.subf %724, %726 : vector<2x8xf32>
    %cst_237 = arith.constant 4.000000e+00 : f32
    %728 = vector.broadcast %cst_237 : f32 to vector<2x8xf32>
    %729 = arith.mulf %727, %728 : vector<2x8xf32>
    %730 = vector.extract_strided_slice %729 {offsets = [0, 0], sizes = [2, 7], strides = [1, 1]} : vector<2x8xf32> to vector<2x7xf32>
    %731 = tpu.concatenate %7, %730 in 1 : vector<2x1xf32>, vector<2x7xf32> -> vector<2x8xf32>
    %732 = arith.subf %729, %731 : vector<2x8xf32>
    %733 = vector.extract_strided_slice %732 {offsets = [0, 0], sizes = [2, 7], strides = [1, 1]} : vector<2x8xf32> to vector<2x7xf32>
    %734 = vector.extract_strided_slice %724 {offsets = [0, 7], sizes = [2, 1], strides = [1, 1]} : vector<2x8xf32> to vector<2x1xf32>
    %735 = vector.extract_strided_slice %732 {offsets = [0, 0], sizes = [2, 7], strides = [1, 1]} : vector<2x8xf32> to vector<2x7xf32>
    %cst_238 = arith.constant dense<0.000000e+00> : vector<2xf32>
    %736 = vector.multi_reduction <add>, %735, %cst_238 [1] : vector<2x7xf32> to vector<2xf32>
    %737 = vector.shape_cast %736 : vector<2xf32> to vector<2x1xf32>
    %738 = arith.subf %734, %737 : vector<2x1xf32>
    %739 = tpu.concatenate %733, %738 in 1 : vector<2x7xf32>, vector<2x1xf32> -> vector<2x8xf32>
    %c2_239 = arith.constant 2 : index
    %c2_240 = arith.constant 2 : index
    %c0_241 = arith.constant 0 : index
    %c0_242 = arith.constant 0 : index
    %740 = vector.load %arg1[%c2_239, %c2_240, %c0_241, %c0_242] : memref<3x4x2x1xf32, #tpu.memory_space<vmem>>, vector<1x1x2x1xf32>
    %741 = vector.shape_cast %740 : vector<1x1x2x1xf32> to vector<2x1xf32>
    %742 = arith.mulf %723, %741 : vector<2x1xf32>
    %c2_243 = arith.constant 2 : index
    %c2_244 = arith.constant 2 : index
    %c0_245 = arith.constant 0 : index
    %c0_246 = arith.constant 0 : index
    %743 = vector.load %arg2[%c2_243, %c2_244, %c0_245, %c0_246] : memref<3x4x2x8xf32, #tpu.memory_space<vmem>>, vector<1x1x2x8xf32>
    %744 = vector.shape_cast %743 : vector<1x1x2x8xf32> to vector<2x8xf32>
    %745 = arith.mulf %744, %739 : vector<2x8xf32>
    %cst_247 = arith.constant dense<0.000000e+00> : vector<2xf32>
    %746 = vector.multi_reduction <add>, %745, %cst_247 [1] : vector<2x8xf32> to vector<2xf32>
    %747 = vector.shape_cast %746 : vector<2xf32> to vector<2x1xf32>
    %748 = arith.addf %742, %747 : vector<2x1xf32>
    %c2_248 = arith.constant 2 : index
    %c0_249 = arith.constant 0 : index
    %c2_250 = arith.constant 2 : index
    %749 = vector.load %arg6[%c2_248, %c0_249, %c2_250] : memref<3x2x4xf32, #tpu.memory_space<vmem>>, vector<1x2x1xf32>
    %750 = vector.shape_cast %749 : vector<1x2x1xf32> to vector<2x1xf32>
    %751 = vector.shape_cast %748 : vector<2x1xf32> to vector<1x2x1xf32>
    tpu.vector_store %arg6[%c2_248, %c0_249, %c2_250], %751 {strides = array<i32>} : memref<3x2x4xf32, #tpu.memory_space<vmem>>, vector<1x2x1xf32>,
    %752 = vector.extract_strided_slice %713 {offsets = [0, 0], sizes = [2, 128], strides = [1, 1]} : vector<2x137xf32> to vector<2x128xf32>
    %c7_251 = arith.constant 7 : index
    %c0_252 = arith.constant 0 : index
    %c0_253 = arith.constant 0 : index
    %753 = vector.load %arg0[%c7_251, %c0_252, %c0_253] : memref<8x2x128xf32, #tpu.memory_space<vmem>>, vector<1x2x128xf32>
    %754 = vector.shape_cast %753 : vector<1x2x128xf32> to vector<2x128xf32>
    %755 = arith.addf %752, %754 : vector<2x128xf32>
    %756 = vector.broadcast %748 : vector<2x1xf32> to vector<2x128xf32>
    %757 = arith.mulf %756, %6 : vector<2x128xf32>
    %758 = arith.addf %755, %757 : vector<2x128xf32>
    %759 = arith.negf %758 : vector<2x128xf32>
    %760 = math.exp %759 : vector<2x128xf32>
    %cst_254 = arith.constant 1.000000e+00 : f32
    %761 = vector.broadcast %cst_254 : f32 to vector<2x128xf32>
    %762 = arith.addf %761, %760 : vector<2x128xf32>
    %763 = arith.divf %761, %762 : vector<2x128xf32>
    %764 = vector.extract_strided_slice %763 {offsets = [0, 0], sizes = [2, 32], strides = [1, 1]} : vector<2x128xf32> to vector<2x32xf32>
    %765 = vector.extract_strided_slice %763 {offsets = [0, 32], sizes = [2, 32], strides = [1, 1]} : vector<2x128xf32> to vector<2x32xf32>
    %766 = vector.extract_strided_slice %763 {offsets = [0, 96], sizes = [2, 32], strides = [1, 1]} : vector<2x128xf32> to vector<2x32xf32>
    %767 = vector.extract_strided_slice %758 {offsets = [0, 64], sizes = [2, 32], strides = [1, 1]} : vector<2x128xf32> to vector<2x32xf32>
    %768 = math.tanh %767 : vector<2x32xf32>
    %769 = arith.mulf %765, %710 : vector<2x32xf32>
    %770 = arith.mulf %764, %768 : vector<2x32xf32>
    %771 = arith.addf %769, %770 : vector<2x32xf32>
    %772 = math.tanh %771 : vector<2x32xf32>
    %773 = arith.mulf %766, %772 : vector<2x32xf32>
    %cst_255 = arith.constant dense<0.000000e+00> : vector<2x137xf32>
    %774 = tpu.matmul %773, %0, %cst_255 {dimension_numbers = #tpu.dot_dimension_numbers<[1], [0], [0], [1], [0, 0, 1, 1], [], []>} : vector<2x32xf32>, vector<32x137xf32>, vector<2x137xf32> -> vector<2x137xf32>
    %775 = vector.extract_strided_slice %774 {offsets = [0, 128], sizes = [2, 9], strides = [1, 1]} : vector<2x137xf32> to vector<2x9xf32>
    %776 = arith.addf %775, %3 : vector<2x9xf32>
    %cst_256 = arith.constant 2.000000e+01 : f32
    %777 = vector.broadcast %cst_256 : f32 to vector<2x9xf32>
    %778 = arith.cmpf ogt, %776, %777 : vector<2x9xf32>
    %cst_257 = arith.constant 2.000000e+01 : f32
    %779 = vector.broadcast %cst_257 : f32 to vector<2x9xf32>
    %780 = arith.minimumf %776, %779 : vector<2x9xf32>
    %781 = math.exp %780 : vector<2x9xf32>
    %782 = math.log1p %781 : vector<2x9xf32>
    %783 = arith.select %778, %776, %782 : vector<2x9xi1>, vector<2x9xf32>
    %784 = vector.extract_strided_slice %783 {offsets = [0, 0], sizes = [2, 1], strides = [1, 1]} : vector<2x9xf32> to vector<2x1xf32>
    %785 = vector.extract_strided_slice %783 {offsets = [0, 1], sizes = [2, 8], strides = [1, 1]} : vector<2x9xf32> to vector<2x8xf32>
    %786 = vector.extract_strided_slice %785 {offsets = [0, 0], sizes = [2, 7], strides = [1, 1]} : vector<2x8xf32> to vector<2x7xf32>
    %787 = tpu.concatenate %784, %786 in 1 : vector<2x1xf32>, vector<2x7xf32> -> vector<2x8xf32>
    %788 = arith.subf %785, %787 : vector<2x8xf32>
    %cst_258 = arith.constant 4.000000e+00 : f32
    %789 = vector.broadcast %cst_258 : f32 to vector<2x8xf32>
    %790 = arith.mulf %788, %789 : vector<2x8xf32>
    %791 = vector.extract_strided_slice %790 {offsets = [0, 0], sizes = [2, 7], strides = [1, 1]} : vector<2x8xf32> to vector<2x7xf32>
    %792 = tpu.concatenate %7, %791 in 1 : vector<2x1xf32>, vector<2x7xf32> -> vector<2x8xf32>
    %793 = arith.subf %790, %792 : vector<2x8xf32>
    %794 = vector.extract_strided_slice %793 {offsets = [0, 0], sizes = [2, 7], strides = [1, 1]} : vector<2x8xf32> to vector<2x7xf32>
    %795 = vector.extract_strided_slice %785 {offsets = [0, 7], sizes = [2, 1], strides = [1, 1]} : vector<2x8xf32> to vector<2x1xf32>
    %796 = vector.extract_strided_slice %793 {offsets = [0, 0], sizes = [2, 7], strides = [1, 1]} : vector<2x8xf32> to vector<2x7xf32>
    %cst_259 = arith.constant dense<0.000000e+00> : vector<2xf32>
    %797 = vector.multi_reduction <add>, %796, %cst_259 [1] : vector<2x7xf32> to vector<2xf32>
    %798 = vector.shape_cast %797 : vector<2xf32> to vector<2x1xf32>
    %799 = arith.subf %795, %798 : vector<2x1xf32>
    %800 = tpu.concatenate %794, %799 in 1 : vector<2x7xf32>, vector<2x1xf32> -> vector<2x8xf32>
    %c2_260 = arith.constant 2 : index
    %c3_261 = arith.constant 3 : index
    %c0_262 = arith.constant 0 : index
    %c0_263 = arith.constant 0 : index
    %801 = vector.load %arg1[%c2_260, %c3_261, %c0_262, %c0_263] : memref<3x4x2x1xf32, #tpu.memory_space<vmem>>, vector<1x1x2x1xf32>
    %802 = vector.shape_cast %801 : vector<1x1x2x1xf32> to vector<2x1xf32>
    %803 = arith.mulf %784, %802 : vector<2x1xf32>
    %c2_264 = arith.constant 2 : index
    %c3_265 = arith.constant 3 : index
    %c0_266 = arith.constant 0 : index
    %c0_267 = arith.constant 0 : index
    %804 = vector.load %arg2[%c2_264, %c3_265, %c0_266, %c0_267] : memref<3x4x2x8xf32, #tpu.memory_space<vmem>>, vector<1x1x2x8xf32>
    %805 = vector.shape_cast %804 : vector<1x1x2x8xf32> to vector<2x8xf32>
    %806 = arith.mulf %805, %800 : vector<2x8xf32>
    %cst_268 = arith.constant dense<0.000000e+00> : vector<2xf32>
    %807 = vector.multi_reduction <add>, %806, %cst_268 [1] : vector<2x8xf32> to vector<2xf32>
    %808 = vector.shape_cast %807 : vector<2xf32> to vector<2x1xf32>
    %809 = arith.addf %803, %808 : vector<2x1xf32>
    %c2_269 = arith.constant 2 : index
    %c0_270 = arith.constant 0 : index
    %c3_271 = arith.constant 3 : index
    %810 = vector.load %arg6[%c2_269, %c0_270, %c3_271] : memref<3x2x4xf32, #tpu.memory_space<vmem>>, vector<1x2x1xf32>
    %811 = vector.shape_cast %810 : vector<1x2x1xf32> to vector<2x1xf32>
    %812 = vector.shape_cast %809 : vector<2x1xf32> to vector<1x2x1xf32>
    tpu.vector_store %arg6[%c2_269, %c0_270, %c3_271], %812 {strides = array<i32>} : memref<3x2x4xf32, #tpu.memory_space<vmem>>, vector<1x2x1xf32>,
    return
  }
}

</mosaic_0001>

<llo_original>
// kernel: forward.1
$region0: #{forward.1}
  #allocation0 [shape = 'u32[]', space=smem, size = 0x4, offset = 0x4, fixed_abs, tag = 'smem constant byte address 0x4 - core index']
  #allocation1 [shape = 'u32[144,128]{1,0:T(1,128)}', space=vmem, size = 0x12000, scoped, tag = 'internal scratch']
  %s0 = inlined_call_operand.vmem [shape: f32[8,2,128], index: 0, kind: input, shape index: {}]
  %s1 = inlined_call_operand.vmem [shape: f32[3,4,2,1], index: 1, kind: input, shape index: {}]
  %s2 = inlined_call_operand.vmem [shape: f32[3,4,2,8], index: 2, kind: input, shape index: {}]
  %s3 = inlined_call_operand.vmem [shape: f32[1,128], index: 3, kind: input, shape index: {}]
  %s4 = inlined_call_operand.vmem [shape: f32[32,137], index: 4, kind: input, shape index: {}]
  %s5 = inlined_call_operand.vmem [shape: f32[1,9], index: 5, kind: input, shape index: {}]
  %s6 = inlined_call_operand.vmem [shape: f32[3,2,4], index: 6, kind: output, shape index: {}]
  %s7 = sld [smem:[#allocation0]]
  $region34: #{forward.1} parent=0
    _
  %s9 = ssub.s32 1, %s7
  %s10 = scalar_select 0, %s9, %s7
  // Predicated region
  $region2: #{forward.1} parent=0 // pred_check
    _
  $region3: #{forward.1} parent=0 // pred_check_branch
    %12 = sbr.rel (0) target = $region5
  $region4: #{forward.1} parent=0 // pred_region
    _
  $region5: #{forward.1} parent=0 // pred_fallthru
    _
  // Predicated region
  $region6: #{forward.1} parent=0 // pred_check
    _
  $region7: #{forward.1} parent=0 // pred_check_branch
    %14 = sbr.rel (0) target = $region9
  $region8: #{forward.1} parent=0 // pred_region
    _
  $region9: #{forward.1} parent=0 // pred_fallthru
    _
  // Predicated region
  $region10: #{forward.1} parent=0 // pred_check
    _
  $region11: #{forward.1} parent=0 // pred_check_branch
    %16 = sbr.rel (0) target = $region13
  $region12: #{forward.1} parent=0 // pred_region
    _
  $region13: #{forward.1} parent=0 // pred_fallthru
    _
  // Predicated region
  $region14: #{forward.1} parent=0 // pred_check
    _
  $region15: #{forward.1} parent=0 // pred_check_branch
    %18 = sbr.rel (0) target = $region17
  $region16: #{forward.1} parent=0 // pred_region
    _
  $region17: #{forward.1} parent=0 // pred_fallthru
    _
  // Predicated region
  $region18: #{forward.1} parent=0 // pred_check
    _
  $region19: #{forward.1} parent=0 // pred_check_branch
    %20 = sbr.rel (0) target = $region21
  $region20: #{forward.1} parent=0 // pred_region
    _
  $region21: #{forward.1} parent=0 // pred_fallthru
    _
  // Predicated region
  $region22: #{forward.1} parent=0 // pred_check
    _
  $region23: #{forward.1} parent=0 // pred_check_branch
    %22 = sbr.rel (0) target = $region25
  $region24: #{forward.1} parent=0 // pred_region
    _
  $region25: #{forward.1} parent=0 // pred_fallthru
    _
  %v23 = vld [vmem:[%s4] sm:$0xff]
  %v24 = vld [vmem:[%s4 + $0x8] sm:$0xff]
  %v25 = vld [vmem:[%s4 + $0x10] sm:$0xff]
  %v26 = vld [vmem:[%s4 + $0x18] sm:$0xff]
  %v27 = vld [vmem:[%s4 + $0x20] sm:$0xff]
  %v28 = vld [vmem:[%s4 + $0x28] sm:$0xff]
  %v29 = vld [vmem:[%s4 + $0x30] sm:$0xff]
  %v30 = vld [vmem:[%s4 + $0x38] sm:$0xff]
  %v31 = vld [vmem:[%s5] sm:$0x1]
  %v33 = vlaneseq
  %v34 = vshrl.u32 %v33, 7
  %v35 = vsub.s32 0, %v34
  %v36 = vrot.slane %v31, %v35
  %v38 = vld [vmem:[%s3] sm:$0x1]
  %v40 = vlaneseq
  %v41 = vshrl.u32 %v40, 7
  %v42 = vsub.s32 0, %v41
  %v43 = vrot.slane %v38, %v42
  %v45 = vld [vmem:[%s0] sm:$0x3]
  %v46 = vadd.f32 %v45, 0.0
  %v47 = vxor.u32 %v46, 2147483648
  %v48 = vmul.f32 %v47, 1.442695
  %v49 = vpow.pop %v48
  %v50 = vadd.f32 %v49, 1.0
  %v51 = vrcp.pop %v50
  %v52 = vmul.f32 1.0, %v51
  %v53 = vtanh.pop %v46
  %v54 = vmul.f32 %v52, 0.0
  %56 = vrot.lane.b32.xlu0 %v53, 64
  %v57 = vpop.permute.xlu0 %56
  %v59 = vmul.f32 %v52, %v57
  %61 = vrot.lane.b32.xlu0 %v59, 32
  %v62 = vpop.permute.xlu0 %61
  %v64 = vadd.f32 %v54, %v62
  %v65 = vtanh.pop %v64
  %67 = vrot.lane.b32.xlu0 %v65, 64
  %v68 = vpop.permute.xlu0 %67
  %v70 = vmul.f32 %v52, %v68
  %72 = vrot.lane.b32.xlu0 %v70, 32
  %v73 = vpop.permute.xlu0 %72
  %vm74 = vcmask 261120
  %v75 = vsel %vm74, %v73, 0
  %77 = vmatprep.subr.mxu0 %v24
  %78 = vmatpush1.msra.mxu0 %v23
  %79 = vmatprep.subr.mxu0 %v26
  %80 = vmatpush1.msra.mxu0 %v25
  %81 = vmatprep.subr.mxu0 %v28
  %82 = vmatpush1.msra.mxu0 %v27
  %83 = vmatprep.subr.mxu0 %v30
  %84 = vmatpush1.msra.mxu0 %v29
  %85 = vmatprep.subr.mxu0 0.0
  %86 = vmatpush1.msra.mxu0 0.0
  %87 = vmatprep.subr.mxu0 0.0
  %88 = vmatpush1.msra.mxu0 0.0
  %89 = vmatprep.subr.mxu0 0.0
  %90 = vmatpush1.msra.mxu0 0.0
  %91 = vmatprep.subr.mxu0 0.0
  %92 = vmatpush1.msra.mxu0 0.0
  %93 = vmatprep.subr.mxu0 0.0
  %94 = vmatpush1.msra.mxu0 0.0
  %95 = vmatprep.subr.mxu0 0.0
  %96 = vmatpush1.msra.mxu0 0.0
  %97 = vmatprep.subr.mxu0 0.0
  %98 = vmatpush1.msra.mxu0 0.0
  %99 = vmatprep.subr.mxu0 0.0
  %100 = vmatpush1.msra.mxu0 0.0
  %101 = vmatprep.subr.mxu0 0.0
  %102 = vmatpush1.msra.mxu0 0.0
  %103 = vmatprep.subr.mxu0 0.0
  %104 = vmatpush1.msra.mxu0 0.0
  %105 = vmatprep.subr.mxu0 0.0
  %106 = vmatpush1.msra.mxu0 0.0
  %107 = vmatprep.subr.mxu0 0.0
  %108 = vmatpush1.msra.mxu0 0.0
  %109 = vmatprep.subr.mxu0 0.0
  %110 = vmatpush1.msra.mxu0 0.0
  %111 = vmatprep.subr.mxu0 0.0
  %112 = vmatpush1.msra.mxu0 0.0
  %113 = vmatprep.subr.mxu0 0.0
  %114 = vmatpush1.msra.mxu0 0.0
  %115 = vmatprep.subr.mxu0 0.0
  %116 = vmatpush1.msra.mxu0 0.0
  %117 = vmatprep.subr.mxu0 0.0
  %118 = vmatpush1.msra.mxu0 0.0
  %119 = vmatprep.subr.mxu0 0.0
  %120 = vmatpush1.msra.mxu0 0.0
  %121 = vmatprep.subr.mxu0 0.0
  %122 = vmatpush1.msra.mxu0 0.0
  %123 = vmatprep.subr.mxu0 0.0
  %124 = vmatpush1.msra.mxu0 0.0
  %125 = vmatprep.subr.mxu0 0.0
  %126 = vmatpush1.msra.mxu0 0.0
  %127 = vmatprep.subr.mxu0 0.0
  %128 = vmatpush1.msra.mxu0 0.0
  %129 = vmatprep.subr.mxu0 0.0
  %130 = vmatpush1.msra.mxu0 0.0
  %131 = vmatprep.subr.mxu0 0.0
  %132 = vmatpush1.msra.mxu0 0.0
  %133 = vmatprep.subr.mxu0 0.0
  %134 = vmatpush1.msra.mxu0 0.0
  %135 = vmatprep.subr.mxu0 0.0
  %136 = vmatpush1.msra.mxu0 0.0
  %137 = vmatprep.subr.mxu0 0.0
  %138 = vmatpush1.msra.mxu0 0.0
  %139 = vmatprep.subr.mxu0 0.0
  %140 = vmatpush1.msra.mxu0 0.0
  %141 = vmatprep.mubr.f32.mxu0 0.0
  %142 = vmatmul.mubr.f32.gmra.mrb[0].mxu0 %v75
  %v143 = vpop.f32.mrb[0].mxu0
  %v144 = vadd.f32 0.0, %v143
  %v145 = vpop.f32.mrb[0].mxu0
  %146 = vdwg.mxu0
  %s147 = scalar_lea.vmem %s0, 2
  %v148 = vld [vmem:[%s147] sm:$0x3]
  %v149 = vadd.f32 %v144, %v148
  %v150 = vxor.u32 %v149, 2147483648
  %v151 = vmul.f32 %v150, 1.442695
  %v152 = vpow.pop %v151
  %v153 = vadd.f32 %v152, 1.0
  %v154 = vrcp.pop %v153
  %v155 = vmul.f32 1.0, %v154
  %v156 = vtanh.pop %v149
  %v157 = vmul.f32 %v155, %v64
  %159 = vrot.lane.b32.xlu0 %v156, 64
  %v160 = vpop.permute.xlu0 %159
  %v162 = vmul.f32 %v155, %v160
  %164 = vrot.lane.b32.xlu0 %v162, 32
  %v165 = vpop.permute.xlu0 %164
  %v167 = vadd.f32 %v157, %v165
  %v168 = vtanh.pop %v167
  %170 = vrot.lane.b32.xlu0 %v168, 64
  %v171 = vpop.permute.xlu0 %170
  %v173 = vmul.f32 %v155, %v171
  %175 = vrot.lane.b32.xlu0 %v173, 32
  %v176 = vpop.permute.xlu0 %175
  %v177 = vsel %vm74, %v176, 0
  %179 = vmatprep.subr.mxu0 %v24
  %180 = vmatpush1.msra.mxu0 %v23
  %181 = vmatprep.subr.mxu0 %v26
  %182 = vmatpush1.msra.mxu0 %v25
  %183 = vmatprep.subr.mxu0 %v28
  %184 = vmatpush1.msra.mxu0 %v27
  %185 = vmatprep.subr.mxu0 %v30
  %186 = vmatpush1.msra.mxu0 %v29
  %187 = vmatprep.subr.mxu0 0.0
  %188 = vmatpush1.msra.mxu0 0.0
  %189 = vmatprep.subr.mxu0 0.0
  %190 = vmatpush1.msra.mxu0 0.0
  %191 = vmatprep.subr.mxu0 0.0
  %192 = vmatpush1.msra.mxu0 0.0
  %193 = vmatprep.subr.mxu0 0.0
  %194 = vmatpush1.msra.mxu0 0.0
  %195 = vmatprep.subr.mxu0 0.0
  %196 = vmatpush1.msra.mxu0 0.0
  %197 = vmatprep.subr.mxu0 0.0
  %198 = vmatpush1.msra.mxu0 0.0
  %199 = vmatprep.subr.mxu0 0.0
  %200 = vmatpush1.msra.mxu0 0.0
  %201 = vmatprep.subr.mxu0 0.0
  %202 = vmatpush1.msra.mxu0 0.0
  %203 = vmatprep.subr.mxu0 0.0
  %204 = vmatpush1.msra.mxu0 0.0
  %205 = vmatprep.subr.mxu0 0.0
  %206 = vmatpush1.msra.mxu0 0.0
  %207 = vmatprep.subr.mxu0 0.0
  %208 = vmatpush1.msra.mxu0 0.0
  %209 = vmatprep.subr.mxu0 0.0
  %210 = vmatpush1.msra.mxu0 0.0
  %211 = vmatprep.subr.mxu0 0.0
  %212 = vmatpush1.msra.mxu0 0.0
  %213 = vmatprep.subr.mxu0 0.0
  %214 = vmatpush1.msra.mxu0 0.0
  %215 = vmatprep.subr.mxu0 0.0
  %216 = vmatpush1.msra.mxu0 0.0
  %217 = vmatprep.subr.mxu0 0.0
  %218 = vmatpush1.msra.mxu0 0.0
  %219 = vmatprep.subr.mxu0 0.0
  %220 = vmatpush1.msra.mxu0 0.0
  %221 = vmatprep.subr.mxu0 0.0
  %222 = vmatpush1.msra.mxu0 0.0
  %223 = vmatprep.subr.mxu0 0.0
  %224 = vmatpush1.msra.mxu0 0.0
  %225 = vmatprep.subr.mxu0 0.0
  %226 = vmatpush1.msra.mxu0 0.0
  %227 = vmatprep.subr.mxu0 0.0
  %228 = vmatpush1.msra.mxu0 0.0
  %229 = vmatprep.subr.mxu0 0.0
  %230 = vmatpush1.msra.mxu0 0.0
  %231 = vmatprep.subr.mxu0 0.0
  %232 = vmatpush1.msra.mxu0 0.0
  %233 = vmatprep.subr.mxu0 0.0
  %234 = vmatpush1.msra.mxu0 0.0
  %235 = vmatprep.subr.mxu0 0.0
  %236 = vmatpush1.msra.mxu0 0.0
  %237 = vmatprep.subr.mxu0 0.0
  %238 = vmatpush1.msra.mxu0 0.0
  %239 = vmatprep.subr.mxu0 0.0
  %240 = vmatpush1.msra.mxu0 0.0
  %241 = vmatprep.subr.mxu0 0.0
  %242 = vmatpush1.msra.mxu0 0.0
  %243 = vmatprep.mubr.f32.mxu0 0.0
  %244 = vmatmul.mubr.f32.gmra.mrb[0].mxu0 %v177
  %v245 = vpop.f32.mrb[0].mxu0
  %v246 = vadd.f32 0.0, %v245
  %v247 = vpop.f32.mrb[0].mxu0
  %248 = vdwg.mxu0
  %s249 = scalar_lea.vmem %s0, 4
  %v250 = vld [vmem:[%s249] sm:$0x3]
  %v251 = vadd.f32 %v246, %v250
  %v252 = vxor.u32 %v251, 2147483648
  %v253 = vmul.f32 %v252, 1.442695
  %v254 = vpow.pop %v253
  %v255 = vadd.f32 %v254, 1.0
  %v256 = vrcp.pop %v255
  %v257 = vmul.f32 1.0, %v256
  %v258 = vtanh.pop %v251
  %v259 = vmul.f32 %v257, %v167
  %261 = vrot.lane.b32.xlu0 %v258, 64
  %v262 = vpop.permute.xlu0 %261
  %v264 = vmul.f32 %v257, %v262
  %266 = vrot.lane.b32.xlu0 %v264, 32
  %v267 = vpop.permute.xlu0 %266
  %v269 = vadd.f32 %v259, %v267
  %v270 = vtanh.pop %v269
  %272 = vrot.lane.b32.xlu0 %v270, 64
  %v273 = vpop.permute.xlu0 %272
  %v275 = vmul.f32 %v257, %v273
  %277 = vrot.lane.b32.xlu0 %v275, 32
  %v278 = vpop.permute.xlu0 %277
  %v279 = vsel %vm74, %v278, 0
  %281 = vmatprep.subr.mxu0 %v24
  %282 = vmatpush1.msra.mxu0 %v23
  %283 = vmatprep.subr.mxu0 %v26
  %284 = vmatpush1.msra.mxu0 %v25
  %285 = vmatprep.subr.mxu0 %v28
  %286 = vmatpush1.msra.mxu0 %v27
  %287 = vmatprep.subr.mxu0 %v30
  %288 = vmatpush1.msra.mxu0 %v29
  %289 = vmatprep.subr.mxu0 0.0
  %290 = vmatpush1.msra.mxu0 0.0
  %291 = vmatprep.subr.mxu0 0.0
  %292 = vmatpush1.msra.mxu0 0.0
  %293 = vmatprep.subr.mxu0 0.0
  %294 = vmatpush1.msra.mxu0 0.0
  %295 = vmatprep.subr.mxu0 0.0
  %296 = vmatpush1.msra.mxu0 0.0
  %297 = vmatprep.subr.mxu0 0.0
  %298 = vmatpush1.msra.mxu0 0.0
  %299 = vmatprep.subr.mxu0 0.0
  %300 = vmatpush1.msra.mxu0 0.0
  %301 = vmatprep.subr.mxu0 0.0
  %302 = vmatpush1.msra.mxu0 0.0
  %303 = vmatprep.subr.mxu0 0.0
  %304 = vmatpush1.msra.mxu0 0.0
  %305 = vmatprep.subr.mxu0 0.0
  %306 = vmatpush1.msra.mxu0 0.0
  %307 = vmatprep.subr.mxu0 0.0
  %308 = vmatpush1.msra.mxu0 0.0
  %309 = vmatprep.subr.mxu0 0.0
  %310 = vmatpush1.msra.mxu0 0.0
  %311 = vmatprep.subr.mxu0 0.0
  %312 = vmatpush1.msra.mxu0 0.0
  %313 = vmatprep.subr.mxu0 0.0
  %314 = vmatpush1.msra.mxu0 0.0
  %315 = vmatprep.subr.mxu0 0.0
  %316 = vmatpush1.msra.mxu0 0.0
  %317 = vmatprep.subr.mxu0 0.0
  %318 = vmatpush1.msra.mxu0 0.0
  %319 = vmatprep.subr.mxu0 0.0
  %320 = vmatpush1.msra.mxu0 0.0
  %321 = vmatprep.subr.mxu0 0.0
  %322 = vmatpush1.msra.mxu0 0.0
  %323 = vmatprep.subr.mxu0 0.0
  %324 = vmatpush1.msra.mxu0 0.0
  %325 = vmatprep.subr.mxu0 0.0
  %326 = vmatpush1.msra.mxu0 0.0
  %327 = vmatprep.subr.mxu0 0.0
  %328 = vmatpush1.msra.mxu0 0.0
  %329 = vmatprep.subr.mxu0 0.0
  %330 = vmatpush1.msra.mxu0 0.0
  %331 = vmatprep.subr.mxu0 0.0
  %332 = vmatpush1.msra.mxu0 0.0
  %333 = vmatprep.subr.mxu0 0.0
  %334 = vmatpush1.msra.mxu0 0.0
  %335 = vmatprep.subr.mxu0 0.0
  %336 = vmatpush1.msra.mxu0 0.0
  %337 = vmatprep.subr.mxu0 0.0
  %338 = vmatpush1.msra.mxu0 0.0
  %339 = vmatprep.subr.mxu0 0.0
  %340 = vmatpush1.msra.mxu0 0.0
  %341 = vmatprep.subr.mxu0 0.0
  %342 = vmatpush1.msra.mxu0 0.0
  %343 = vmatprep.subr.mxu0 0.0
  %344 = vmatpush1.msra.mxu0 0.0
  %345 = vmatprep.mubr.f32.mxu0 0.0
  %346 = vmatmul.mubr.f32.gmra.mrb[0].mxu0 %v279
  %v347 = vpop.f32.mrb[0].mxu0
  %v348 = vadd.f32 0.0, %v347
  %v349 = vpop.f32.mrb[0].mxu0
  %350 = vdwg.mxu0
  %s351 = scalar_lea.vmem %s0, 6
  %v352 = vld [vmem:[%s351] sm:$0x3]
  %v353 = vadd.f32 %v348, %v352
  %v354 = vxor.u32 %v353, 2147483648
  %v355 = vmul.f32 %v354, 1.442695
  %v356 = vpow.pop %v355
  %v357 = vadd.f32 %v356, 1.0
  %v358 = vrcp.pop %v357
  %v359 = vmul.f32 1.0, %v358
  %v360 = vtanh.pop %v353
  %v361 = vmul.f32 %v359, %v269
  %363 = vrot.lane.b32.xlu0 %v360, 64
  %v364 = vpop.permute.xlu0 %363
  %v366 = vmul.f32 %v359, %v364
  %368 = vrot.lane.b32.xlu0 %v366, 32
  %v369 = vpop.permute.xlu0 %368
  %v371 = vadd.f32 %v361, %v369
  %v372 = vtanh.pop %v371
  %374 = vrot.lane.b32.xlu0 %v372, 64
  %v375 = vpop.permute.xlu0 %374
  %v377 = vmul.f32 %v359, %v375
  %379 = vrot.lane.b32.xlu0 %v377, 32
  %v380 = vpop.permute.xlu0 %379
  %v381 = vsel %vm74, %v380, 0
  %383 = vmatprep.subr.mxu0 %v24
  %384 = vmatpush1.msra.mxu0 %v23
  %385 = vmatprep.subr.mxu0 %v26
  %386 = vmatpush1.msra.mxu0 %v25
  %387 = vmatprep.subr.mxu0 %v28
  %388 = vmatpush1.msra.mxu0 %v27
  %389 = vmatprep.subr.mxu0 %v30
  %390 = vmatpush1.msra.mxu0 %v29
  %391 = vmatprep.subr.mxu0 0.0
  %392 = vmatpush1.msra.mxu0 0.0
  %393 = vmatprep.subr.mxu0 0.0
  %394 = vmatpush1.msra.mxu0 0.0
  %395 = vmatprep.subr.mxu0 0.0
  %396 = vmatpush1.msra.mxu0 0.0
  %397 = vmatprep.subr.mxu0 0.0
  %398 = vmatpush1.msra.mxu0 0.0
  %399 = vmatprep.subr.mxu0 0.0
  %400 = vmatpush1.msra.mxu0 0.0
  %401 = vmatprep.subr.mxu0 0.0
  %402 = vmatpush1.msra.mxu0 0.0
  %403 = vmatprep.subr.mxu0 0.0
  %404 = vmatpush1.msra.mxu0 0.0
  %405 = vmatprep.subr.mxu0 0.0
  %406 = vmatpush1.msra.mxu0 0.0
  %407 = vmatprep.subr.mxu0 0.0
  %408 = vmatpush1.msra.mxu0 0.0
  %409 = vmatprep.subr.mxu0 0.0
  %410 = vmatpush1.msra.mxu0 0.0
  %411 = vmatprep.subr.mxu0 0.0
  %412 = vmatpush1.msra.mxu0 0.0
  %413 = vmatprep.subr.mxu0 0.0
  %414 = vmatpush1.msra.mxu0 0.0
  %415 = vmatprep.subr.mxu0 0.0
  %416 = vmatpush1.msra.mxu0 0.0
  %417 = vmatprep.subr.mxu0 0.0
  %418 = vmatpush1.msra.mxu0 0.0
  %419 = vmatprep.subr.mxu0 0.0
  %420 = vmatpush1.msra.mxu0 0.0
  %421 = vmatprep.subr.mxu0 0.0
  %422 = vmatpush1.msra.mxu0 0.0
  %423 = vmatprep.subr.mxu0 0.0
  %424 = vmatpush1.msra.mxu0 0.0
  %425 = vmatprep.subr.mxu0 0.0
  %426 = vmatpush1.msra.mxu0 0.0
  %427 = vmatprep.subr.mxu0 0.0
  %428 = vmatpush1.msra.mxu0 0.0
  %429 = vmatprep.subr.mxu0 0.0
  %430 = vmatpush1.msra.mxu0 0.0
  %431 = vmatprep.subr.mxu0 0.0
  %432 = vmatpush1.msra.mxu0 0.0
  %433 = vmatprep.subr.mxu0 0.0
  %434 = vmatpush1.msra.mxu0 0.0
  %435 = vmatprep.subr.mxu0 0.0
  %436 = vmatpush1.msra.mxu0 0.0
  %437 = vmatprep.subr.mxu0 0.0
  %438 = vmatpush1.msra.mxu0 0.0
  %439 = vmatprep.subr.mxu0 0.0
  %440 = vmatpush1.msra.mxu0 0.0
  %441 = vmatprep.subr.mxu0 0.0
  %442 = vmatpush1.msra.mxu0 0.0
  %443 = vmatprep.subr.mxu0 0.0
  %444 = vmatpush1.msra.mxu0 0.0
  %445 = vmatprep.subr.mxu0 0.0
  %446 = vmatpush1.msra.mxu0 0.0
  %447 = vmatprep.mubr.f32.mxu0 0.0
  %448 = vmatmul.mubr.f32.gmra.mrb[0].mxu0 %v381
  %v449 = vpop.f32.mrb[0].mxu0
  %v450 = vadd.f32 0.0, %v449
  %v451 = vpop.f32.mrb[0].mxu0
  %452 = vdwg.mxu0
  %s453 = scalar_lea.vmem %s0, 8
  %v454 = vld [vmem:[%s453] sm:$0x3]
  %v455 = vadd.f32 %v450, %v454
  %v456 = vxor.u32 %v455, 2147483648
  %v457 = vmul.f32 %v456, 1.442695
  %v458 = vpow.pop %v457
  %v459 = vadd.f32 %v458, 1.0
  %v460 = vrcp.pop %v459
  %v461 = vmul.f32 1.0, %v460
  %v462 = vtanh.pop %v455
  %v463 = vmul.f32 %v461, %v371
  %465 = vrot.lane.b32.xlu0 %v462, 64
  %v466 = vpop.permute.xlu0 %465
  %v468 = vmul.f32 %v461, %v466
  %470 = vrot.lane.b32.xlu0 %v468, 32
  %v471 = vpop.permute.xlu0 %470
  %v473 = vadd.f32 %v463, %v471
  %v474 = vtanh.pop %v473
  %476 = vrot.lane.b32.xlu0 %v474, 64
  %v477 = vpop.permute.xlu0 %476
  %v479 = vmul.f32 %v461, %v477
  %481 = vrot.lane.b32.xlu0 %v479, 32
  %v482 = vpop.permute.xlu0 %481
  %v483 = vsel %vm74, %v482, 0
  %485 = vmatprep.subr.mxu0 %v24
  %486 = vmatpush1.msra.mxu0 %v23
  %487 = vmatprep.subr.mxu0 %v26
  %488 = vmatpush1.msra.mxu0 %v25
  %489 = vmatprep.subr.mxu0 %v28
  %490 = vmatpush1.msra.mxu0 %v27
  %491 = vmatprep.subr.mxu0 %v30
  %492 = vmatpush1.msra.mxu0 %v29
  %493 = vmatprep.subr.mxu0 0.0
  %494 = vmatpush1.msra.mxu0 0.0
  %495 = vmatprep.subr.mxu0 0.0
  %496 = vmatpush1.msra.mxu0 0.0
  %497 = vmatprep.subr.mxu0 0.0
  %498 = vmatpush1.msra.mxu0 0.0
  %499 = vmatprep.subr.mxu0 0.0
  %500 = vmatpush1.msra.mxu0 0.0
  %501 = vmatprep.subr.mxu0 0.0
  %502 = vmatpush1.msra.mxu0 0.0
  %503 = vmatprep.subr.mxu0 0.0
  %504 = vmatpush1.msra.mxu0 0.0
  %505 = vmatprep.subr.mxu0 0.0
  %506 = vmatpush1.msra.mxu0 0.0
  %507 = vmatprep.subr.mxu0 0.0
  %508 = vmatpush1.msra.mxu0 0.0
  %509 = vmatprep.subr.mxu0 0.0
  %510 = vmatpush1.msra.mxu0 0.0
  %511 = vmatprep.subr.mxu0 0.0
  %512 = vmatpush1.msra.mxu0 0.0
  %513 = vmatprep.subr.mxu0 0.0
  %514 = vmatpush1.msra.mxu0 0.0
  %515 = vmatprep.subr.mxu0 0.0
  %516 = vmatpush1.msra.mxu0 0.0
  %517 = vmatprep.subr.mxu0 0.0
  %518 = vmatpush1.msra.mxu0 0.0
  %519 = vmatprep.subr.mxu0 0.0
  %520 = vmatpush1.msra.mxu0 0.0
  %521 = vmatprep.subr.mxu0 0.0
  %522 = vmatpush1.msra.mxu0 0.0
  %523 = vmatprep.subr.mxu0 0.0
  %524 = vmatpush1.msra.mxu0 0.0
  %525 = vmatprep.subr.mxu0 0.0
  %526 = vmatpush1.msra.mxu0 0.0
  %527 = vmatprep.subr.mxu0 0.0
  %528 = vmatpush1.msra.mxu0 0.0
  %529 = vmatprep.subr.mxu0 0.0
  %530 = vmatpush1.msra.mxu0 0.0
  %531 = vmatprep.subr.mxu0 0.0
  %532 = vmatpush1.msra.mxu0 0.0
  %533 = vmatprep.subr.mxu0 0.0
  %534 = vmatpush1.msra.mxu0 0.0
  %535 = vmatprep.subr.mxu0 0.0
  %536 = vmatpush1.msra.mxu0 0.0
  %537 = vmatprep.subr.mxu0 0.0
  %538 = vmatpush1.msra.mxu0 0.0
  %539 = vmatprep.subr.mxu0 0.0
  %540 = vmatpush1.msra.mxu0 0.0
  %541 = vmatprep.subr.mxu0 0.0
  %542 = vmatpush1.msra.mxu0 0.0
  %543 = vmatprep.subr.mxu0 0.0
  %544 = vmatpush1.msra.mxu0 0.0
  %545 = vmatprep.subr.mxu0 0.0
  %546 = vmatpush1.msra.mxu0 0.0
  %547 = vmatprep.subr.mxu0 0.0
  %548 = vmatpush1.msra.mxu0 0.0
  %549 = vmatprep.mubr.f32.mxu0 0.0
  %550 = vmatmul.mubr.f32.gmra.mrb[0].mxu0 %v483
  %v551 = vpop.f32.mrb[0].mxu0
  %v552 = vadd.f32 0.0, %v551
  %v553 = vpop.f32.mrb[0].mxu0
  %v554 = vadd.f32 0.0, %v553
  %555 = vdwg.mxu0
  %v556 = vadd.f32 %v554, %v36
  %vm557 = vcmp.gt.f32.partialorder %v556, 20.0
  %v558 = vmin.f32 %v556, 20.0
  %v559 = vmul.f32 %v558, 1.442695
  %v560 = vpow.pop %v559
  %v561 = vadd.f32 %v560, 1.0
  %v562 = vlog2.pop %v561
  %v563 = vmul.f32 %v562, 0.6931472
  %v564 = vmul.f32 -0.5, %v560
  %v565 = vadd.f32 %v564, 1.0
  %v566 = vmul.f32 %v565, %v560
  %v567 = vand.u32 2147483647, %v560
  %vm568 = vcmp.lt.f32.partialorder %v567, 0.0004427343
  %v569 = vsel %vm568, %v566, %v563
  %v570 = vsel %vm557, %v556, %v569
  %572 = vrot.lane.b32.xlu0 %v570, 1
  %v573 = vpop.permute.xlu0 %572
  %v575 = vsub.f32 %v570, %v573
  %v576 = vmul.f32 %v575, 4.0
  %vm577 = vcmask 7168
  %v578 = vsel %vm577, 0.0, %v576
  %580 = vrot.lane.b32.xlu0 %v578, 1
  %v581 = vpop.permute.xlu0 %580
  %v583 = vsub.f32 %v576, %v581
  %585 = vrot.lane.b32.xlu0 %v583, 127
  %v586 = vpop.permute.xlu0 %585
  %vm588 = vcmask 50176
  %v589 = vsel %vm588, %v586, 0.0
  %590 = vadd.xlane.f32.xlu0 %v589
  %v591 = vpop.xlane.xlu0 %590
  %v592 = vsub.f32 %v570, %v591
  %594 = vrot.lane.b32.xlu0 %v592, 127
  %v595 = vpop.permute.xlu0 %594
  %vm597 = vcmask 56320
  %v598 = vsel %vm597, %v586, %v595
  %v599 = vld [vmem:[%s1] sm:$0x3]
  %v600 = vmul.f32 %v570, %v599
  %v601 = vld [vmem:[%s2] sm:$0x3]
  %v602 = vmul.f32 %v601, %v598
  %vm603 = vcmask 58368
  %v604 = vsel %vm603, %v602, 0.0
  %605 = vadd.xlane.f32.xlu0 %v604
  %v606 = vpop.xlane.xlu0 %605
  %v607 = vadd.f32 %v600, %v606
  %vm608 = vcmask 1024
  %609 = vst.msk [vmem:[%s6] sm:$0x3] %vm608, %v607
  %s610 = scalar_lea.vmem %s0, 10
  %v611 = vld [vmem:[%s610] sm:$0x3]
  %v612 = vadd.f32 %v552, %v611
  %614 = vset.pattern.permute.xlu0 0
  %615 = vperm.xlu0 %614, %v607
  %v616 = vpop.permute.xlu0 %615
  %v618 = vmul.f32 %v616, %v43
  %v619 = vadd.f32 %v612, %v618
  %v620 = vxor.u32 %v619, 2147483648
  %v621 = vmul.f32 %v620, 1.442695
  %v622 = vpow.pop %v621
  %v623 = vadd.f32 %v622, 1.0
  %v624 = vrcp.pop %v623
  %v625 = vmul.f32 1.0, %v624
  %v626 = vtanh.pop %v619
  %v627 = vmul.f32 %v625, %v473
  %629 = vrot.lane.b32.xlu0 %v626, 64
  %v630 = vpop.permute.xlu0 %629
  %v632 = vmul.f32 %v625, %v630
  %634 = vrot.lane.b32.xlu0 %v632, 32
  %v635 = vpop.permute.xlu0 %634
  %v637 = vadd.f32 %v627, %v635
  %v638 = vtanh.pop %v637
  %640 = vrot.lane.b32.xlu0 %v638, 64
  %v641 = vpop.permute.xlu0 %640
  %v643 = vmul.f32 %v625, %v641
  %645 = vrot.lane.b32.xlu0 %v643, 32
  %v646 = vpop.permute.xlu0 %645
  %v647 = vsel %vm74, %v646, 0
  %649 = vmatprep.subr.mxu0 %v24
  %650 = vmatpush1.msra.mxu0 %v23
  %651 = vmatprep.subr.mxu0 %v26
  %652 = vmatpush1.msra.mxu0 %v25
  %653 = vmatprep.subr.mxu0 %v28
  %654 = vmatpush1.msra.mxu0 %v27
  %655 = vmatprep.subr.mxu0 %v30
  %656 = vmatpush1.msra.mxu0 %v29
  %657 = vmatprep.subr.mxu0 0.0
  %658 = vmatpush1.msra.mxu0 0.0
  %659 = vmatprep.subr.mxu0 0.0
  %660 = vmatpush1.msra.mxu0 0.0
  %661 = vmatprep.subr.mxu0 0.0
  %662 = vmatpush1.msra.mxu0 0.0
  %663 = vmatprep.subr.mxu0 0.0
  %664 = vmatpush1.msra.mxu0 0.0
  %665 = vmatprep.subr.mxu0 0.0
  %666 = vmatpush1.msra.mxu0 0.0
  %667 = vmatprep.subr.mxu0 0.0
  %668 = vmatpush1.msra.mxu0 0.0
  %669 = vmatprep.subr.mxu0 0.0
  %670 = vmatpush1.msra.mxu0 0.0
  %671 = vmatprep.subr.mxu0 0.0
  %672 = vmatpush1.msra.mxu0 0.0
  %673 = vmatprep.subr.mxu0 0.0
  %674 = vmatpush1.msra.mxu0 0.0
  %675 = vmatprep.subr.mxu0 0.0
  %676 = vmatpush1.msra.mxu0 0.0
  %677 = vmatprep.subr.mxu0 0.0
  %678 = vmatpush1.msra.mxu0 0.0
  %679 = vmatprep.subr.mxu0 0.0
  %680 = vmatpush1.msra.mxu0 0.0
  %681 = vmatprep.subr.mxu0 0.0
  %682 = vmatpush1.msra.mxu0 0.0
  %683 = vmatprep.subr.mxu0 0.0
  %684 = vmatpush1.msra.mxu0 0.0
  %685 = vmatprep.subr.mxu0 0.0
  %686 = vmatpush1.msra.mxu0 0.0
  %687 = vmatprep.subr.mxu0 0.0
  %688 = vmatpush1.msra.mxu0 0.0
  %689 = vmatprep.subr.mxu0 0.0
  %690 = vmatpush1.msra.mxu0 0.0
  %691 = vmatprep.subr.mxu0 0.0
  %692 = vmatpush1.msra.mxu0 0.0
  %693 = vmatprep.subr.mxu0 0.0
  %694 = vmatpush1.msra.mxu0 0.0
  %695 = vmatprep.subr.mxu0 0.0
  %696 = vmatpush1.msra.mxu0 0.0
  %697 = vmatprep.subr.mxu0 0.0
  %698 = vmatpush1.msra.mxu0 0.0
  %699 = vmatprep.subr.mxu0 0.0
  %700 = vmatpush1.msra.mxu0 0.0
  %701 = vmatprep.subr.mxu0 0.0
  %702 = vmatpush1.msra.mxu0 0.0
  %703 = vmatprep.subr.mxu0 0.0
  %704 = vmatpush1.msra.mxu0 0.0
  %705 = vmatprep.subr.mxu0 0.0
  %706 = vmatpush1.msra.mxu0 0.0
  %707 = vmatprep.subr.mxu0 0.0
  %708 = vmatpush1.msra.mxu0 0.0
  %709 = vmatprep.subr.mxu0 0.0
  %710 = vmatpush1.msra.mxu0 0.0
  %711 = vmatprep.subr.mxu0 0.0
  %712 = vmatpush1.msra.mxu0 0.0
  %713 = vmatprep.mubr.f32.mxu0 0.0
  %714 = vmatmul.mubr.f32.gmra.mrb[0].mxu0 %v647
  %v715 = vpop.f32.mrb[0].mxu0
  %v716 = vadd.f32 0.0, %v715
  %v717 = vpop.f32.mrb[0].mxu0
  %v718 = vadd.f32 0.0, %v717
  %719 = vdwg.mxu0
  %v720 = vadd.f32 %v718, %v36
  %vm721 = vcmp.gt.f32.partialorder %v720, 20.0
  %v722 = vmin.f32 %v720, 20.0
  %v723 = vmul.f32 %v722, 1.442695
  %v724 = vpow.pop %v723
  %v725 = vadd.f32 %v724, 1.0
  %v726 = vlog2.pop %v725
  %v727 = vmul.f32 %v726, 0.6931472
  %v728 = vmul.f32 -0.5, %v724
  %v729 = vadd.f32 %v728, 1.0
  %v730 = vmul.f32 %v729, %v724
  %v731 = vand.u32 2147483647, %v724
  %vm732 = vcmp.lt.f32.partialorder %v731, 0.0004427343
  %v733 = vsel %vm732, %v730, %v727
  %v734 = vsel %vm721, %v720, %v733
  %736 = vrot.lane.b32.xlu0 %v734, 1
  %v737 = vpop.permute.xlu0 %736
  %v739 = vsub.f32 %v734, %v737
  %v740 = vmul.f32 %v739, 4.0
  %v741 = vsel %vm577, 0.0, %v740
  %743 = vrot.lane.b32.xlu0 %v741, 1
  %v744 = vpop.permute.xlu0 %743
  %v746 = vsub.f32 %v740, %v744
  %748 = vrot.lane.b32.xlu0 %v746, 127
  %v749 = vpop.permute.xlu0 %748
  %v751 = vsel %vm588, %v749, 0.0
  %752 = vadd.xlane.f32.xlu0 %v751
  %v753 = vpop.xlane.xlu0 %752
  %v754 = vsub.f32 %v734, %v753
  %756 = vrot.lane.b32.xlu0 %v754, 127
  %v757 = vpop.permute.xlu0 %756
  %v759 = vsel %vm597, %v749, %v757
  %s760 = scalar_lea.vmem %s1, 2
  %v761 = vld [vmem:[%s760] sm:$0x3]
  %v762 = vmul.f32 %v734, %v761
  %s763 = scalar_lea.vmem %s2, 2
  %v764 = vld [vmem:[%s763] sm:$0x3]
  %v765 = vmul.f32 %v764, %v759
  %v766 = vsel %vm603, %v765, 0.0
  %767 = vadd.xlane.f32.xlu0 %v766
  %v768 = vpop.xlane.xlu0 %767
  %v769 = vadd.f32 %v762, %v768
  %771 = vrot.lane.b32.xlu0 %v769, 1
  %v772 = vpop.permute.xlu0 %771
  %vm774 = vcmask 9224
  %775 = vst.msk [vmem:[%s6] sm:$0x3] %vm774, %v772
  %s776 = scalar_lea.vmem %s0, 12
  %v777 = vld [vmem:[%s776] sm:$0x3]
  %v778 = vadd.f32 %v716, %v777
  %779 = vset.pattern.permute.xlu0 0
  %780 = vperm.xlu0 %779, %v769
  %v781 = vpop.permute.xlu0 %780
  %v783 = vmul.f32 %v781, %v43
  %v784 = vadd.f32 %v778, %v783
  %v785 = vxor.u32 %v784, 2147483648
  %v786 = vmul.f32 %v785, 1.442695
  %v787 = vpow.pop %v786
  %v788 = vadd.f32 %v787, 1.0
  %v789 = vrcp.pop %v788
  %v790 = vmul.f32 1.0, %v789
  %v791 = vtanh.pop %v784
  %v792 = vmul.f32 %v790, %v637
  %794 = vrot.lane.b32.xlu0 %v791, 64
  %v795 = vpop.permute.xlu0 %794
  %v797 = vmul.f32 %v790, %v795
  %799 = vrot.lane.b32.xlu0 %v797, 32
  %v800 = vpop.permute.xlu0 %799
  %v802 = vadd.f32 %v792, %v800
  %v803 = vtanh.pop %v802
  %805 = vrot.lane.b32.xlu0 %v803, 64
  %v806 = vpop.permute.xlu0 %805
  %v808 = vmul.f32 %v790, %v806
  %810 = vrot.lane.b32.xlu0 %v808, 32
  %v811 = vpop.permute.xlu0 %810
  %v812 = vsel %vm74, %v811, 0
  %814 = vmatprep.subr.mxu0 %v24
  %815 = vmatpush1.msra.mxu0 %v23
  %816 = vmatprep.subr.mxu0 %v26
  %817 = vmatpush1.msra.mxu0 %v25
  %818 = vmatprep.subr.mxu0 %v28
  %819 = vmatpush1.msra.mxu0 %v27
  %820 = vmatprep.subr.mxu0 %v30
  %821 = vmatpush1.msra.mxu0 %v29
  %822 = vmatprep.subr.mxu0 0.0
  %823 = vmatpush1.msra.mxu0 0.0
  %824 = vmatprep.subr.mxu0 0.0
  %825 = vmatpush1.msra.mxu0 0.0
  %826 = vmatprep.subr.mxu0 0.0
  %827 = vmatpush1.msra.mxu0 0.0
  %828 = vmatprep.subr.mxu0 0.0
  %829 = vmatpush1.msra.mxu0 0.0
  %830 = vmatprep.subr.mxu0 0.0
  %831 = vmatpush1.msra.mxu0 0.0
  %832 = vmatprep.subr.mxu0 0.0
  %833 = vmatpush1.msra.mxu0 0.0
  %834 = vmatprep.subr.mxu0 0.0
  %835 = vmatpush1.msra.mxu0 0.0
  %836 = vmatprep.subr.mxu0 0.0
  %837 = vmatpush1.msra.mxu0 0.0
  %838 = vmatprep.subr.mxu0 0.0
  %839 = vmatpush1.msra.mxu0 0.0
  %840 = vmatprep.subr.mxu0 0.0
  %841 = vmatpush1.msra.mxu0 0.0
  %842 = vmatprep.subr.mxu0 0.0
  %843 = vmatpush1.msra.mxu0 0.0
  %844 = vmatprep.subr.mxu0 0.0
  %845 = vmatpush1.msra.mxu0 0.0
  %846 = vmatprep.subr.mxu0 0.0
  %847 = vmatpush1.msra.mxu0 0.0
  %848 = vmatprep.subr.mxu0 0.0
  %849 = vmatpush1.msra.mxu0 0.0
  %850 = vmatprep.subr.mxu0 0.0
  %851 = vmatpush1.msra.mxu0 0.0
  %852 = vmatprep.subr.mxu0 0.0
  %853 = vmatpush1.msra.mxu0 0.0
  %854 = vmatprep.subr.mxu0 0.0
  %855 = vmatpush1.msra.mxu0 0.0
  %856 = vmatprep.subr.mxu0 0.0
  %857 = vmatpush1.msra.mxu0 0.0
  %858 = vmatprep.subr.mxu0 0.0
  %859 = vmatpush1.msra.mxu0 0.0
  %860 = vmatprep.subr.mxu0 0.0
  %861 = vmatpush1.msra.mxu0 0.0
  %862 = vmatprep.subr.mxu0 0.0
  %863 = vmatpush1.msra.mxu0 0.0
  %864 = vmatprep.subr.mxu0 0.0
  %865 = vmatpush1.msra.mxu0 0.0
  %866 = vmatprep.subr.mxu0 0.0
  %867 = vmatpush1.msra.mxu0 0.0
  %868 = vmatprep.subr.mxu0 0.0
  %869 = vmatpush1.msra.mxu0 0.0
  %870 = vmatprep.subr.mxu0 0.0
  %871 = vmatpush1.msra.mxu0 0.0
  %872 = vmatprep.subr.mxu0 0.0
  %873 = vmatpush1.msra.mxu0 0.0
  %874 = vmatprep.subr.mxu0 0.0
  %875 = vmatpush1.msra.mxu0 0.0
  %876 = vmatprep.subr.mxu0 0.0
  %877 = vmatpush1.msra.mxu0 0.0
  %878 = vmatprep.mubr.f32.mxu0 0.0
  %879 = vmatmul.mubr.f32.gmra.mrb[0].mxu0 %v812
  %v880 = vpop.f32.mrb[0].mxu0
  %v881 = vadd.f32 0.0, %v880
  %v882 = vpop.f32.mrb[0].mxu0
  %v883 = vadd.f32 0.0, %v882
  %884 = vdwg.mxu0
  %v885 = vadd.f32 %v883, %v36
  %vm886 = vcmp.gt.f32.partialorder %v885, 20.0
  %v887 = vmin.f32 %v885, 20.0
  %v888 = vmul.f32 %v887, 1.442695
  %v889 = vpow.pop %v888
  %v890 = vadd.f32 %v889, 1.0
  %v891 = vlog2.pop %v890
  %v892 = vmul.f32 %v891, 0.6931472
  %v893 = vmul.f32 -0.5, %v889
  %v894 = vadd.f32 %v893, 1.0
  %v895 = vmul.f32 %v894, %v889
  %v896 = vand.u32 2147483647, %v889
  %vm897 = vcmp.lt.f32.partialorder %v896, 0.0004427343
  %v898 = vsel %vm897, %v895, %v892
  %v899 = vsel %vm886, %v885, %v898
  %901 = vrot.lane.b32.xlu0 %v899, 1
  %v902 = vpop.permute.xlu0 %901
  %v904 = vsub.f32 %v899, %v902
  %v905 = vmul.f32 %v904, 4.0
  %v906 = vsel %vm577, 0.0, %v905
  %908 = vrot.lane.b32.xlu0 %v906, 1
  %v909 = vpop.permute.xlu0 %908
  %v911 = vsub.f32 %v905, %v909
  %913 = vrot.lane.b32.xlu0 %v911, 127
  %v914 = vpop.permute.xlu0 %913
  %v916 = vsel %vm588, %v914, 0.0
  %917 = vadd.xlane.f32.xlu0 %v916
  %v918 = vpop.xlane.xlu0 %917
  %v919 = vsub.f32 %v899, %v918
  %921 = vrot.lane.b32.xlu0 %v919, 127
  %v922 = vpop.permute.xlu0 %921
  %v924 = vsel %vm597, %v914, %v922
  %s925 = scalar_lea.vmem %s1, 4
  %v926 = vld [vmem:[%s925] sm:$0x3]
  %v927 = vmul.f32 %v899, %v926
  %s928 = scalar_lea.vmem %s2, 4
  %v929 = vld [vmem:[%s928] sm:$0x3]
  %v930 = vmul.f32 %v929, %v924
  %v931 = vsel %vm603, %v930, 0.0
  %932 = vadd.xlane.f32.xlu0 %v931
  %v933 = vpop.xlane.xlu0 %932
  %v934 = vadd.f32 %v927, %v933
  %936 = vrot.lane.b32.xlu0 %v934, 2
  %v937 = vpop.permute.xlu0 %936
  %vm939 = vcmask 17424
  %940 = vst.msk [vmem:[%s6] sm:$0x3] %vm939, %v937
  %s941 = scalar_lea.vmem %s0, 14
  %v942 = vld [vmem:[%s941] sm:$0x3]
  %v943 = vadd.f32 %v881, %v942
  %944 = vset.pattern.permute.xlu0 0
  %945 = vperm.xlu0 %944, %v934
  %v946 = vpop.permute.xlu0 %945
  %v948 = vmul.f32 %v946, %v43
  %v949 = vadd.f32 %v943, %v948
  %v950 = vxor.u32 %v949, 2147483648
  %v951 = vmul.f32 %v950, 1.442695
  %v952 = vpow.pop %v951
  %v953 = vadd.f32 %v952, 1.0
  %v954 = vrcp.pop %v953
  %v955 = vmul.f32 1.0, %v954
  %v956 = vtanh.pop %v949
  %v957 = vmul.f32 %v955, %v802
  %959 = vrot.lane.b32.xlu0 %v956, 64
  %v960 = vpop.permute.xlu0 %959
  %v962 = vmul.f32 %v955, %v960
  %964 = vrot.lane.b32.xlu0 %v962, 32
  %v965 = vpop.permute.xlu0 %964
  %v967 = vadd.f32 %v957, %v965
  %v968 = vtanh.pop %v967
  %970 = vrot.lane.b32.xlu0 %v968, 64
  %v971 = vpop.permute.xlu0 %970
  %v973 = vmul.f32 %v955, %v971
  %975 = vrot.lane.b32.xlu0 %v973, 32
  %v976 = vpop.permute.xlu0 %975
  %v977 = vsel %vm74, %v976, 0
  %979 = vmatprep.subr.mxu0 %v24
  %980 = vmatpush1.msra.mxu0 %v23
  %981 = vmatprep.subr.mxu0 %v26
  %982 = vmatpush1.msra.mxu0 %v25
  %983 = vmatprep.subr.mxu0 %v28
  %984 = vmatpush1.msra.mxu0 %v27
  %985 = vmatprep.subr.mxu0 %v30
  %986 = vmatpush1.msra.mxu0 %v29
  %987 = vmatprep.subr.mxu0 0.0
  %988 = vmatpush1.msra.mxu0 0.0
  %989 = vmatprep.subr.mxu0 0.0
  %990 = vmatpush1.msra.mxu0 0.0
  %991 = vmatprep.subr.mxu0 0.0
  %992 = vmatpush1.msra.mxu0 0.0
  %993 = vmatprep.subr.mxu0 0.0
  %994 = vmatpush1.msra.mxu0 0.0
  %995 = vmatprep.subr.mxu0 0.0
  %996 = vmatpush1.msra.mxu0 0.0
  %997 = vmatprep.subr.mxu0 0.0
  %998 = vmatpush1.msra.mxu0 0.0
  %999 = vmatprep.subr.mxu0 0.0
  %1000 = vmatpush1.msra.mxu0 0.0
  %1001 = vmatprep.subr.mxu0 0.0
  %1002 = vmatpush1.msra.mxu0 0.0
  %1003 = vmatprep.subr.mxu0 0.0
  %1004 = vmatpush1.msra.mxu0 0.0
  %1005 = vmatprep.subr.mxu0 0.0
  %1006 = vmatpush1.msra.mxu0 0.0
  %1007 = vmatprep.subr.mxu0 0.0
  %1008 = vmatpush1.msra.mxu0 0.0
  %1009 = vmatprep.subr.mxu0 0.0
  %1010 = vmatpush1.msra.mxu0 0.0
  %1011 = vmatprep.subr.mxu0 0.0
  %1012 = vmatpush1.msra.mxu0 0.0
  %1013 = vmatprep.subr.mxu0 0.0
  %1014 = vmatpush1.msra.mxu0 0.0
  %1015 = vmatprep.subr.mxu0 0.0
  %1016 = vmatpush1.msra.mxu0 0.0
  %1017 = vmatprep.subr.mxu0 0.0
  %1018 = vmatpush1.msra.mxu0 0.0
  %1019 = vmatprep.subr.mxu0 0.0
  %1020 = vmatpush1.msra.mxu0 0.0
  %1021 = vmatprep.subr.mxu0 0.0
  %1022 = vmatpush1.msra.mxu0 0.0
  %1023 = vmatprep.subr.mxu0 0.0
  %1024 = vmatpush1.msra.mxu0 0.0
  %1025 = vmatprep.subr.mxu0 0.0
  %1026 = vmatpush1.msra.mxu0 0.0
  %1027 = vmatprep.subr.mxu0 0.0
  %1028 = vmatpush1.msra.mxu0 0.0
  %1029 = vmatprep.subr.mxu0 0.0
  %1030 = vmatpush1.msra.mxu0 0.0
  %1031 = vmatprep.subr.mxu0 0.0
  %1032 = vmatpush1.msra.mxu0 0.0
  %1033 = vmatprep.subr.mxu0 0.0
  %1034 = vmatpush1.msra.mxu0 0.0
  %1035 = vmatprep.subr.mxu0 0.0
  %1036 = vmatpush1.msra.mxu0 0.0
  %1037 = vmatprep.subr.mxu0 0.0
  %1038 = vmatpush1.msra.mxu0 0.0
  %1039 = vmatprep.subr.mxu0 0.0
  %1040 = vmatpush1.msra.mxu0 0.0
  %1041 = vmatprep.subr.mxu0 0.0
  %1042 = vmatpush1.msra.mxu0 0.0
  %1043 = vmatprep.mubr.f32.mxu0 0.0
  %1044 = vmatmul.mubr.f32.gmra.mrb[0].mxu0 %v977
  %v1045 = vpop.f32.mrb[0].mxu0
  %v1046 = vadd.f32 0.0, %v1045
  %v1047 = vpop.f32.mrb[0].mxu0
  %v1048 = vadd.f32 0.0, %v1047
  %1049 = vdwg.mxu0
  %v1050 = vadd.f32 %v1048, %v36
  %vm1051 = vcmp.gt.f32.partialorder %v1050, 20.0
  %v1052 = vmin.f32 %v1050, 20.0
  %v1053 = vmul.f32 %v1052, 1.442695
  %v1054 = vpow.pop %v1053
  %v1055 = vadd.f32 %v1054, 1.0
  %v1056 = vlog2.pop %v1055
  %v1057 = vmul.f32 %v1056, 0.6931472
  %v1058 = vmul.f32 -0.5, %v1054
  %v1059 = vadd.f32 %v1058, 1.0
  %v1060 = vmul.f32 %v1059, %v1054
  %v1061 = vand.u32 2147483647, %v1054
  %vm1062 = vcmp.lt.f32.partialorder %v1061, 0.0004427343
  %v1063 = vsel %vm1062, %v1060, %v1057
  %v1064 = vsel %vm1051, %v1050, %v1063
  %1066 = vrot.lane.b32.xlu0 %v1064, 1
  %v1067 = vpop.permute.xlu0 %1066
  %v1069 = vsub.f32 %v1064, %v1067
  %v1070 = vmul.f32 %v1069, 4.0
  %v1071 = vsel %vm577, 0.0, %v1070
  %1073 = vrot.lane.b32.xlu0 %v1071, 1
  %v1074 = vpop.permute.xlu0 %1073
  %v1076 = vsub.f32 %v1070, %v1074
  %1078 = vrot.lane.b32.xlu0 %v1076, 127
  %v1079 = vpop.permute.xlu0 %1078
  %v1081 = vsel %vm588, %v1079, 0.0
  %1082 = vadd.xlane.f32.xlu0 %v1081
  %v1083 = vpop.xlane.xlu0 %1082
  %v1084 = vsub.f32 %v1064, %v1083
  %1086 = vrot.lane.b32.xlu0 %v1084, 127
  %v1087 = vpop.permute.xlu0 %1086
  %v1089 = vsel %vm597, %v1079, %v1087
  %s1090 = scalar_lea.vmem %s1, 6
  %v1091 = vld [vmem:[%s1090] sm:$0x3]
  %v1092 = vmul.f32 %v1064, %v1091
  %s1093 = scalar_lea.vmem %s2, 6
  %v1094 = vld [vmem:[%s1093] sm:$0x3]
  %v1095 = vmul.f32 %v1094, %v1089
  %v1096 = vsel %vm603, %v1095, 0.0
  %1097 = vadd.xlane.f32.xlu0 %v1096
  %v1098 = vpop.xlane.xlu0 %1097
  %v1099 = vadd.f32 %v1092, %v1098
  %1101 = vrot.lane.b32.xlu0 %v1099, 3
  %v1102 = vpop.permute.xlu0 %1101
  %vm1104 = vcmask 25624
  %1105 = vst.msk [vmem:[%s6] sm:$0x3] %vm1104, %v1102
  %v1106 = vld [vmem:[%s453] sm:$0x3]
  %v1107 = vadd.f32 %v1046, %v1106
  %v1108 = vxor.u32 %v1107, 2147483648
  %v1109 = vmul.f32 %v1108, 1.442695
  %v1110 = vpow.pop %v1109
  %v1111 = vadd.f32 %v1110, 1.0
  %v1112 = vrcp.pop %v1111
  %v1113 = vmul.f32 1.0, %v1112
  %v1114 = vtanh.pop %v1107
  %v1115 = vmul.f32 %v1113, %v967
  %1117 = vrot.lane.b32.xlu0 %v1114, 64
  %v1118 = vpop.permute.xlu0 %1117
  %v1120 = vmul.f32 %v1113, %v1118
  %1122 = vrot.lane.b32.xlu0 %v1120, 32
  %v1123 = vpop.permute.xlu0 %1122
  %v1125 = vadd.f32 %v1115, %v1123
  %v1126 = vtanh.pop %v1125
  %1128 = vrot.lane.b32.xlu0 %v1126, 64
  %v1129 = vpop.permute.xlu0 %1128
  %v1131 = vmul.f32 %v1113, %v1129
  %1133 = vrot.lane.b32.xlu0 %v1131, 32
  %v1134 = vpop.permute.xlu0 %1133
  %v1135 = vsel %vm74, %v1134, 0
  %1137 = vmatprep.subr.mxu0 %v24
  %1138 = vmatpush1.msra.mxu0 %v23
  %1139 = vmatprep.subr.mxu0 %v26
  %1140 = vmatpush1.msra.mxu0 %v25
  %1141 = vmatprep.subr.mxu0 %v28
  %1142 = vmatpush1.msra.mxu0 %v27
  %1143 = vmatprep.subr.mxu0 %v30
  %1144 = vmatpush1.msra.mxu0 %v29
  %1145 = vmatprep.subr.mxu0 0.0
  %1146 = vmatpush1.msra.mxu0 0.0
  %1147 = vmatprep.subr.mxu0 0.0
  %1148 = vmatpush1.msra.mxu0 0.0
  %1149 = vmatprep.subr.mxu0 0.0
  %1150 = vmatpush1.msra.mxu0 0.0
  %1151 = vmatprep.subr.mxu0 0.0
  %1152 = vmatpush1.msra.mxu0 0.0
  %1153 = vmatprep.subr.mxu0 0.0
  %1154 = vmatpush1.msra.mxu0 0.0
  %1155 = vmatprep.subr.mxu0 0.0
  %1156 = vmatpush1.msra.mxu0 0.0
  %1157 = vmatprep.subr.mxu0 0.0
  %1158 = vmatpush1.msra.mxu0 0.0
  %1159 = vmatprep.subr.mxu0 0.0
  %1160 = vmatpush1.msra.mxu0 0.0
  %1161 = vmatprep.subr.mxu0 0.0
  %1162 = vmatpush1.msra.mxu0 0.0
  %1163 = vmatprep.subr.mxu0 0.0
  %1164 = vmatpush1.msra.mxu0 0.0
  %1165 = vmatprep.subr.mxu0 0.0
  %1166 = vmatpush1.msra.mxu0 0.0
  %1167 = vmatprep.subr.mxu0 0.0
  %1168 = vmatpush1.msra.mxu0 0.0
  %1169 = vmatprep.subr.mxu0 0.0
  %1170 = vmatpush1.msra.mxu0 0.0
  %1171 = vmatprep.subr.mxu0 0.0
  %1172 = vmatpush1.msra.mxu0 0.0
  %1173 = vmatprep.subr.mxu0 0.0
  %1174 = vmatpush1.msra.mxu0 0.0
  %1175 = vmatprep.subr.mxu0 0.0
  %1176 = vmatpush1.msra.mxu0 0.0
  %1177 = vmatprep.subr.mxu0 0.0
  %1178 = vmatpush1.msra.mxu0 0.0
  %1179 = vmatprep.subr.mxu0 0.0
  %1180 = vmatpush1.msra.mxu0 0.0
  %1181 = vmatprep.subr.mxu0 0.0
  %1182 = vmatpush1.msra.mxu0 0.0
  %1183 = vmatprep.subr.mxu0 0.0
  %1184 = vmatpush1.msra.mxu0 0.0
  %1185 = vmatprep.subr.mxu0 0.0
  %1186 = vmatpush1.msra.mxu0 0.0
  %1187 = vmatprep.subr.mxu0 0.0
  %1188 = vmatpush1.msra.mxu0 0.0
  %1189 = vmatprep.subr.mxu0 0.0
  %1190 = vmatpush1.msra.mxu0 0.0
  %1191 = vmatprep.subr.mxu0 0.0
  %1192 = vmatpush1.msra.mxu0 0.0
  %1193 = vmatprep.subr.mxu0 0.0
  %1194 = vmatpush1.msra.mxu0 0.0
  %1195 = vmatprep.subr.mxu0 0.0
  %1196 = vmatpush1.msra.mxu0 0.0
  %1197 = vmatprep.subr.mxu0 0.0
  %1198 = vmatpush1.msra.mxu0 0.0
  %1199 = vmatprep.subr.mxu0 0.0
  %1200 = vmatpush1.msra.mxu0 0.0
  %1201 = vmatprep.mubr.f32.mxu0 0.0
  %1202 = vmatmul.mubr.f32.gmra.mrb[0].mxu0 %v1135
  %v1203 = vpop.f32.mrb[0].mxu0
  %v1204 = vadd.f32 0.0, %v1203
  %v1205 = vpop.f32.mrb[0].mxu0
  %v1206 = vadd.f32 0.0, %v1205
  %1207 = vdwg.mxu0
  %v1208 = vadd.f32 %v1206, %v36
  %vm1209 = vcmp.gt.f32.partialorder %v1208, 20.0
  %v1210 = vmin.f32 %v1208, 20.0
  %v1211 = vmul.f32 %v1210, 1.442695
  %v1212 = vpow.pop %v1211
  %v1213 = vadd.f32 %v1212, 1.0
  %v1214 = vlog2.pop %v1213
  %v1215 = vmul.f32 %v1214, 0.6931472
  %v1216 = vmul.f32 -0.5, %v1212
  %v1217 = vadd.f32 %v1216, 1.0
  %v1218 = vmul.f32 %v1217, %v1212
  %v1219 = vand.u32 2147483647, %v1212
  %vm1220 = vcmp.lt.f32.partialorder %v1219, 0.0004427343
  %v1221 = vsel %vm1220, %v1218, %v1215
  %v1222 = vsel %vm1209, %v1208, %v1221
  %1224 = vrot.lane.b32.xlu0 %v1222, 1
  %v1225 = vpop.permute.xlu0 %1224
  %v1227 = vsub.f32 %v1222, %v1225
  %v1228 = vmul.f32 %v1227, 4.0
  %v1229 = vsel %vm577, 0.0, %v1228
  %1231 = vrot.lane.b32.xlu0 %v1229, 1
  %v1232 = vpop.permute.xlu0 %1231
  %v1234 = vsub.f32 %v1228, %v1232
  %1236 = vrot.lane.b32.xlu0 %v1234, 127
  %v1237 = vpop.permute.xlu0 %1236
  %v1239 = vsel %vm588, %v1237, 0.0
  %1240 = vadd.xlane.f32.xlu0 %v1239
  %v1241 = vpop.xlane.xlu0 %1240
  %v1242 = vsub.f32 %v1222, %v1241
  %1244 = vrot.lane.b32.xlu0 %v1242, 127
  %v1245 = vpop.permute.xlu0 %1244
  %v1247 = vsel %vm597, %v1237, %v1245
  %s1248 = scalar_lea.vmem %s1, 8
  %v1249 = vld [vmem:[%s1248] sm:$0x3]
  %v1250 = vmul.f32 %v1222, %v1249
  %s1251 = scalar_lea.vmem %s2, 8
  %v1252 = vld [vmem:[%s1251] sm:$0x3]
  %v1253 = vmul.f32 %v1252, %v1247
  %v1254 = vsel %vm603, %v1253, 0.0
  %1255 = vadd.xlane.f32.xlu0 %v1254
  %v1256 = vpop.xlane.xlu0 %1255
  %v1257 = vadd.f32 %v1250, %v1256
  %s1258 = scalar_lea.vmem %s6, 2
  %1259 = vst.msk [vmem:[%s1258] sm:$0x3] %vm608, %v1257
  %v1260 = vld [vmem:[%s610] sm:$0x3]
  %v1261 = vadd.f32 %v1204, %v1260
  %1263 = vset.pattern.permute.xlu0 0
  %1264 = vperm.xlu0 %1263, %v1257
  %v1265 = vpop.permute.xlu0 %1264
  %v1267 = vmul.f32 %v1265, %v43
  %v1268 = vadd.f32 %v1261, %v1267
  %v1269 = vxor.u32 %v1268, 2147483648
  %v1270 = vmul.f32 %v1269, 1.442695
  %v1271 = vpow.pop %v1270
  %v1272 = vadd.f32 %v1271, 1.0
  %v1273 = vrcp.pop %v1272
  %v1274 = vmul.f32 1.0, %v1273
  %v1275 = vtanh.pop %v1268
  %v1276 = vmul.f32 %v1274, %v1125
  %1278 = vrot.lane.b32.xlu0 %v1275, 64
  %v1279 = vpop.permute.xlu0 %1278
  %v1281 = vmul.f32 %v1274, %v1279
  %1283 = vrot.lane.b32.xlu0 %v1281, 32
  %v1284 = vpop.permute.xlu0 %1283
  %v1286 = vadd.f32 %v1276, %v1284
  %v1287 = vtanh.pop %v1286
  %1289 = vrot.lane.b32.xlu0 %v1287, 64
  %v1290 = vpop.permute.xlu0 %1289
  %v1292 = vmul.f32 %v1274, %v1290
  %1294 = vrot.lane.b32.xlu0 %v1292, 32
  %v1295 = vpop.permute.xlu0 %1294
  %v1296 = vsel %vm74, %v1295, 0
  %1298 = vmatprep.subr.mxu0 %v24
  %1299 = vmatpush1.msra.mxu0 %v23
  %1300 = vmatprep.subr.mxu0 %v26
  %1301 = vmatpush1.msra.mxu0 %v25
  %1302 = vmatprep.subr.mxu0 %v28
  %1303 = vmatpush1.msra.mxu0 %v27
  %1304 = vmatprep.subr.mxu0 %v30
  %1305 = vmatpush1.msra.mxu0 %v29
  %1306 = vmatprep.subr.mxu0 0.0
  %1307 = vmatpush1.msra.mxu0 0.0
  %1308 = vmatprep.subr.mxu0 0.0
  %1309 = vmatpush1.msra.mxu0 0.0
  %1310 = vmatprep.subr.mxu0 0.0
  %1311 = vmatpush1.msra.mxu0 0.0
  %1312 = vmatprep.subr.mxu0 0.0
  %1313 = vmatpush1.msra.mxu0 0.0
  %1314 = vmatprep.subr.mxu0 0.0
  %1315 = vmatpush1.msra.mxu0 0.0
  %1316 = vmatprep.subr.mxu0 0.0
  %1317 = vmatpush1.msra.mxu0 0.0
  %1318 = vmatprep.subr.mxu0 0.0
  %1319 = vmatpush1.msra.mxu0 0.0
  %1320 = vmatprep.subr.mxu0 0.0
  %1321 = vmatpush1.msra.mxu0 0.0
  %1322 = vmatprep.subr.mxu0 0.0
  %1323 = vmatpush1.msra.mxu0 0.0
  %1324 = vmatprep.subr.mxu0 0.0
  %1325 = vmatpush1.msra.mxu0 0.0
  %1326 = vmatprep.subr.mxu0 0.0
  %1327 = vmatpush1.msra.mxu0 0.0
  %1328 = vmatprep.subr.mxu0 0.0
  %1329 = vmatpush1.msra.mxu0 0.0
  %1330 = vmatprep.subr.mxu0 0.0
  %1331 = vmatpush1.msra.mxu0 0.0
  %1332 = vmatprep.subr.mxu0 0.0
  %1333 = vmatpush1.msra.mxu0 0.0
  %1334 = vmatprep.subr.mxu0 0.0
  %1335 = vmatpush1.msra.mxu0 0.0
  %1336 = vmatprep.subr.mxu0 0.0
  %1337 = vmatpush1.msra.mxu0 0.0
  %1338 = vmatprep.subr.mxu0 0.0
  %1339 = vmatpush1.msra.mxu0 0.0
  %1340 = vmatprep.subr.mxu0 0.0
  %1341 = vmatpush1.msra.mxu0 0.0
  %1342 = vmatprep.subr.mxu0 0.0
  %1343 = vmatpush1.msra.mxu0 0.0
  %1344 = vmatprep.subr.mxu0 0.0
  %1345 = vmatpush1.msra.mxu0 0.0
  %1346 = vmatprep.subr.mxu0 0.0
  %1347 = vmatpush1.msra.mxu0 0.0
  %1348 = vmatprep.subr.mxu0 0.0
  %1349 = vmatpush1.msra.mxu0 0.0
  %1350 = vmatprep.subr.mxu0 0.0
  %1351 = vmatpush1.msra.mxu0 0.0
  %1352 = vmatprep.subr.mxu0 0.0
  %1353 = vmatpush1.msra.mxu0 0.0
  %1354 = vmatprep.subr.mxu0 0.0
  %1355 = vmatpush1.msra.mxu0 0.0
  %1356 = vmatprep.subr.mxu0 0.0
  %1357 = vmatpush1.msra.mxu0 0.0
  %1358 = vmatprep.subr.mxu0 0.0
  %1359 = vmatpush1.msra.mxu0 0.0
  %1360 = vmatprep.subr.mxu0 0.0
  %1361 = vmatpush1.msra.mxu0 0.0
  %1362 = vmatprep.mubr.f32.mxu0 0.0
  %1363 = vmatmul.mubr.f32.gmra.mrb[0].mxu0 %v1296
  %v1364 = vpop.f32.mrb[0].mxu0
  %v1365 = vadd.f32 0.0, %v1364
  %v1366 = vpop.f32.mrb[0].mxu0
  %v1367 = vadd.f32 0.0, %v1366
  %1368 = vdwg.mxu0
  %v1369 = vadd.f32 %v1367, %v36
  %vm1370 = vcmp.gt.f32.partialorder %v1369, 20.0
  %v1371 = vmin.f32 %v1369, 20.0
  %v1372 = vmul.f32 %v1371, 1.442695
  %v1373 = vpow.pop %v1372
  %v1374 = vadd.f32 %v1373, 1.0
  %v1375 = vlog2.pop %v1374
  %v1376 = vmul.f32 %v1375, 0.6931472
  %v1377 = vmul.f32 -0.5, %v1373
  %v1378 = vadd.f32 %v1377, 1.0
  %v1379 = vmul.f32 %v1378, %v1373
  %v1380 = vand.u32 2147483647, %v1373
  %vm1381 = vcmp.lt.f32.partialorder %v1380, 0.0004427343
  %v1382 = vsel %vm1381, %v1379, %v1376
  %v1383 = vsel %vm1370, %v1369, %v1382
  %1385 = vrot.lane.b32.xlu0 %v1383, 1
  %v1386 = vpop.permute.xlu0 %1385
  %v1388 = vsub.f32 %v1383, %v1386
  %v1389 = vmul.f32 %v1388, 4.0
  %v1390 = vsel %vm577, 0.0, %v1389
  %1392 = vrot.lane.b32.xlu0 %v1390, 1
  %v1393 = vpop.permute.xlu0 %1392
  %v1395 = vsub.f32 %v1389, %v1393
  %1397 = vrot.lane.b32.xlu0 %v1395, 127
  %v1398 = vpop.permute.xlu0 %1397
  %v1400 = vsel %vm588, %v1398, 0.0
  %1401 = vadd.xlane.f32.xlu0 %v1400
  %v1402 = vpop.xlane.xlu0 %1401
  %v1403 = vsub.f32 %v1383, %v1402
  %1405 = vrot.lane.b32.xlu0 %v1403, 127
  %v1406 = vpop.permute.xlu0 %1405
  %v1408 = vsel %vm597, %v1398, %v1406
  %s1409 = scalar_lea.vmem %s1, 10
  %v1410 = vld [vmem:[%s1409] sm:$0x3]
  %v1411 = vmul.f32 %v1383, %v1410
  %s1412 = scalar_lea.vmem %s2, 10
  %v1413 = vld [vmem:[%s1412] sm:$0x3]
  %v1414 = vmul.f32 %v1413, %v1408
  %v1415 = vsel %vm603, %v1414, 0.0
  %1416 = vadd.xlane.f32.xlu0 %v1415
  %v1417 = vpop.xlane.xlu0 %1416
  %v1418 = vadd.f32 %v1411, %v1417
  %1420 = vrot.lane.b32.xlu0 %v1418, 1
  %v1421 = vpop.permute.xlu0 %1420
  %1423 = vst.msk [vmem:[%s1258] sm:$0x3] %vm774, %v1421
  %v1424 = vld [vmem:[%s776] sm:$0x3]
  %v1425 = vadd.f32 %v1365, %v1424
  %1426 = vset.pattern.permute.xlu0 0
  %1427 = vperm.xlu0 %1426, %v1418
  %v1428 = vpop.permute.xlu0 %1427
  %v1430 = vmul.f32 %v1428, %v43
  %v1431 = vadd.f32 %v1425, %v1430
  %v1432 = vxor.u32 %v1431, 2147483648
  %v1433 = vmul.f32 %v1432, 1.442695
  %v1434 = vpow.pop %v1433
  %v1435 = vadd.f32 %v1434, 1.0
  %v1436 = vrcp.pop %v1435
  %v1437 = vmul.f32 1.0, %v1436
  %v1438 = vtanh.pop %v1431
  %v1439 = vmul.f32 %v1437, %v1286
  %1441 = vrot.lane.b32.xlu0 %v1438, 64
  %v1442 = vpop.permute.xlu0 %1441
  %v1444 = vmul.f32 %v1437, %v1442
  %1446 = vrot.lane.b32.xlu0 %v1444, 32
  %v1447 = vpop.permute.xlu0 %1446
  %v1449 = vadd.f32 %v1439, %v1447
  %v1450 = vtanh.pop %v1449
  %1452 = vrot.lane.b32.xlu0 %v1450, 64
  %v1453 = vpop.permute.xlu0 %1452
  %v1455 = vmul.f32 %v1437, %v1453
  %1457 = vrot.lane.b32.xlu0 %v1455, 32
  %v1458 = vpop.permute.xlu0 %1457
  %v1459 = vsel %vm74, %v1458, 0
  %1461 = vmatprep.subr.mxu0 %v24
  %1462 = vmatpush1.msra.mxu0 %v23
  %1463 = vmatprep.subr.mxu0 %v26
  %1464 = vmatpush1.msra.mxu0 %v25
  %1465 = vmatprep.subr.mxu0 %v28
  %1466 = vmatpush1.msra.mxu0 %v27
  %1467 = vmatprep.subr.mxu0 %v30
  %1468 = vmatpush1.msra.mxu0 %v29
  %1469 = vmatprep.subr.mxu0 0.0
  %1470 = vmatpush1.msra.mxu0 0.0
  %1471 = vmatprep.subr.mxu0 0.0
  %1472 = vmatpush1.msra.mxu0 0.0
  %1473 = vmatprep.subr.mxu0 0.0
  %1474 = vmatpush1.msra.mxu0 0.0
  %1475 = vmatprep.subr.mxu0 0.0
  %1476 = vmatpush1.msra.mxu0 0.0
  %1477 = vmatprep.subr.mxu0 0.0
  %1478 = vmatpush1.msra.mxu0 0.0
  %1479 = vmatprep.subr.mxu0 0.0
  %1480 = vmatpush1.msra.mxu0 0.0
  %1481 = vmatprep.subr.mxu0 0.0
  %1482 = vmatpush1.msra.mxu0 0.0
  %1483 = vmatprep.subr.mxu0 0.0
  %1484 = vmatpush1.msra.mxu0 0.0
  %1485 = vmatprep.subr.mxu0 0.0
  %1486 = vmatpush1.msra.mxu0 0.0
  %1487 = vmatprep.subr.mxu0 0.0
  %1488 = vmatpush1.msra.mxu0 0.0
  %1489 = vmatprep.subr.mxu0 0.0
  %1490 = vmatpush1.msra.mxu0 0.0
  %1491 = vmatprep.subr.mxu0 0.0
  %1492 = vmatpush1.msra.mxu0 0.0
  %1493 = vmatprep.subr.mxu0 0.0
  %1494 = vmatpush1.msra.mxu0 0.0
  %1495 = vmatprep.subr.mxu0 0.0
  %1496 = vmatpush1.msra.mxu0 0.0
  %1497 = vmatprep.subr.mxu0 0.0
  %1498 = vmatpush1.msra.mxu0 0.0
  %1499 = vmatprep.subr.mxu0 0.0
  %1500 = vmatpush1.msra.mxu0 0.0
  %1501 = vmatprep.subr.mxu0 0.0
  %1502 = vmatpush1.msra.mxu0 0.0
  %1503 = vmatprep.subr.mxu0 0.0
  %1504 = vmatpush1.msra.mxu0 0.0
  %1505 = vmatprep.subr.mxu0 0.0
  %1506 = vmatpush1.msra.mxu0 0.0
  %1507 = vmatprep.subr.mxu0 0.0
  %1508 = vmatpush1.msra.mxu0 0.0
  %1509 = vmatprep.subr.mxu0 0.0
  %1510 = vmatpush1.msra.mxu0 0.0
  %1511 = vmatprep.subr.mxu0 0.0
  %1512 = vmatpush1.msra.mxu0 0.0
  %1513 = vmatprep.subr.mxu0 0.0
  %1514 = vmatpush1.msra.mxu0 0.0
  %1515 = vmatprep.subr.mxu0 0.0
  %1516 = vmatpush1.msra.mxu0 0.0
  %1517 = vmatprep.subr.mxu0 0.0
  %1518 = vmatpush1.msra.mxu0 0.0
  %1519 = vmatprep.subr.mxu0 0.0
  %1520 = vmatpush1.msra.mxu0 0.0
  %1521 = vmatprep.subr.mxu0 0.0
  %1522 = vmatpush1.msra.mxu0 0.0
  %1523 = vmatprep.subr.mxu0 0.0
  %1524 = vmatpush1.msra.mxu0 0.0
  %1525 = vmatprep.mubr.f32.mxu0 0.0
  %1526 = vmatmul.mubr.f32.gmra.mrb[0].mxu0 %v1459
  %v1527 = vpop.f32.mrb[0].mxu0
  %v1528 = vadd.f32 0.0, %v1527
  %v1529 = vpop.f32.mrb[0].mxu0
  %v1530 = vadd.f32 0.0, %v1529
  %1531 = vdwg.mxu0
  %v1532 = vadd.f32 %v1530, %v36
  %vm1533 = vcmp.gt.f32.partialorder %v1532, 20.0
  %v1534 = vmin.f32 %v1532, 20.0
  %v1535 = vmul.f32 %v1534, 1.442695
  %v1536 = vpow.pop %v1535
  %v1537 = vadd.f32 %v1536, 1.0
  %v1538 = vlog2.pop %v1537
  %v1539 = vmul.f32 %v1538, 0.6931472
  %v1540 = vmul.f32 -0.5, %v1536
  %v1541 = vadd.f32 %v1540, 1.0
  %v1542 = vmul.f32 %v1541, %v1536
  %v1543 = vand.u32 2147483647, %v1536
  %vm1544 = vcmp.lt.f32.partialorder %v1543, 0.0004427343
  %v1545 = vsel %vm1544, %v1542, %v1539
  %v1546 = vsel %vm1533, %v1532, %v1545
  %1548 = vrot.lane.b32.xlu0 %v1546, 1
  %v1549 = vpop.permute.xlu0 %1548
  %v1551 = vsub.f32 %v1546, %v1549
  %v1552 = vmul.f32 %v1551, 4.0
  %v1553 = vsel %vm577, 0.0, %v1552
  %1555 = vrot.lane.b32.xlu0 %v1553, 1
  %v1556 = vpop.permute.xlu0 %1555
  %v1558 = vsub.f32 %v1552, %v1556
  %1560 = vrot.lane.b32.xlu0 %v1558, 127
  %v1561 = vpop.permute.xlu0 %1560
  %v1563 = vsel %vm588, %v1561, 0.0
  %1564 = vadd.xlane.f32.xlu0 %v1563
  %v1565 = vpop.xlane.xlu0 %1564
  %v1566 = vsub.f32 %v1546, %v1565
  %1568 = vrot.lane.b32.xlu0 %v1566, 127
  %v1569 = vpop.permute.xlu0 %1568
  %v1571 = vsel %vm597, %v1561, %v1569
  %s1572 = scalar_lea.vmem %s1, 12
  %v1573 = vld [vmem:[%s1572] sm:$0x3]
  %v1574 = vmul.f32 %v1546, %v1573
  %s1575 = scalar_lea.vmem %s2, 12
  %v1576 = vld [vmem:[%s1575] sm:$0x3]
  %v1577 = vmul.f32 %v1576, %v1571
  %v1578 = vsel %vm603, %v1577, 0.0
  %1579 = vadd.xlane.f32.xlu0 %v1578
  %v1580 = vpop.xlane.xlu0 %1579
  %v1581 = vadd.f32 %v1574, %v1580
  %1583 = vrot.lane.b32.xlu0 %v1581, 2
  %v1584 = vpop.permute.xlu0 %1583
  %1586 = vst.msk [vmem:[%s1258] sm:$0x3] %vm939, %v1584
  %v1587 = vld [vmem:[%s941] sm:$0x3]
  %v1588 = vadd.f32 %v1528, %v1587
  %1589 = vset.pattern.permute.xlu0 0
  %1590 = vperm.xlu0 %1589, %v1581
  %v1591 = vpop.permute.xlu0 %1590
  %v1593 = vmul.f32 %v1591, %v43
  %v1594 = vadd.f32 %v1588, %v1593
  %v1595 = vxor.u32 %v1594, 2147483648
  %v1596 = vmul.f32 %v1595, 1.442695
  %v1597 = vpow.pop %v1596
  %v1598 = vadd.f32 %v1597, 1.0
  %v1599 = vrcp.pop %v1598
  %v1600 = vmul.f32 1.0, %v1599
  %v1601 = vtanh.pop %v1594
  %v1602 = vmul.f32 %v1600, %v1449
  %1604 = vrot.lane.b32.xlu0 %v1601, 64
  %v1605 = vpop.permute.xlu0 %1604
  %v1607 = vmul.f32 %v1600, %v1605
  %1609 = vrot.lane.b32.xlu0 %v1607, 32
  %v1610 = vpop.permute.xlu0 %1609
  %v1612 = vadd.f32 %v1602, %v1610
  %v1613 = vtanh.pop %v1612
  %1615 = vrot.lane.b32.xlu0 %v1613, 64
  %v1616 = vpop.permute.xlu0 %1615
  %v1618 = vmul.f32 %v1600, %v1616
  %1620 = vrot.lane.b32.xlu0 %v1618, 32
  %v1621 = vpop.permute.xlu0 %1620
  %v1622 = vsel %vm74, %v1621, 0
  %1624 = vmatprep.subr.mxu0 %v24
  %1625 = vmatpush1.msra.mxu0 %v23
  %1626 = vmatprep.subr.mxu0 %v26
  %1627 = vmatpush1.msra.mxu0 %v25
  %1628 = vmatprep.subr.mxu0 %v28
  %1629 = vmatpush1.msra.mxu0 %v27
  %1630 = vmatprep.subr.mxu0 %v30
  %1631 = vmatpush1.msra.mxu0 %v29
  %1632 = vmatprep.subr.mxu0 0.0
  %1633 = vmatpush1.msra.mxu0 0.0
  %1634 = vmatprep.subr.mxu0 0.0
  %1635 = vmatpush1.msra.mxu0 0.0
  %1636 = vmatprep.subr.mxu0 0.0
  %1637 = vmatpush1.msra.mxu0 0.0
  %1638 = vmatprep.subr.mxu0 0.0
  %1639 = vmatpush1.msra.mxu0 0.0
  %1640 = vmatprep.subr.mxu0 0.0
  %1641 = vmatpush1.msra.mxu0 0.0
  %1642 = vmatprep.subr.mxu0 0.0
  %1643 = vmatpush1.msra.mxu0 0.0
  %1644 = vmatprep.subr.mxu0 0.0
  %1645 = vmatpush1.msra.mxu0 0.0
  %1646 = vmatprep.subr.mxu0 0.0
  %1647 = vmatpush1.msra.mxu0 0.0
  %1648 = vmatprep.subr.mxu0 0.0
  %1649 = vmatpush1.msra.mxu0 0.0
  %1650 = vmatprep.subr.mxu0 0.0
  %1651 = vmatpush1.msra.mxu0 0.0
  %1652 = vmatprep.subr.mxu0 0.0
  %1653 = vmatpush1.msra.mxu0 0.0
  %1654 = vmatprep.subr.mxu0 0.0
  %1655 = vmatpush1.msra.mxu0 0.0
  %1656 = vmatprep.subr.mxu0 0.0
  %1657 = vmatpush1.msra.mxu0 0.0
  %1658 = vmatprep.subr.mxu0 0.0
  %1659 = vmatpush1.msra.mxu0 0.0
  %1660 = vmatprep.subr.mxu0 0.0
  %1661 = vmatpush1.msra.mxu0 0.0
  %1662 = vmatprep.subr.mxu0 0.0
  %1663 = vmatpush1.msra.mxu0 0.0
  %1664 = vmatprep.subr.mxu0 0.0
  %1665 = vmatpush1.msra.mxu0 0.0
  %1666 = vmatprep.subr.mxu0 0.0
  %1667 = vmatpush1.msra.mxu0 0.0
  %1668 = vmatprep.subr.mxu0 0.0
  %1669 = vmatpush1.msra.mxu0 0.0
  %1670 = vmatprep.subr.mxu0 0.0
  %1671 = vmatpush1.msra.mxu0 0.0
  %1672 = vmatprep.subr.mxu0 0.0
  %1673 = vmatpush1.msra.mxu0 0.0
  %1674 = vmatprep.subr.mxu0 0.0
  %1675 = vmatpush1.msra.mxu0 0.0
  %1676 = vmatprep.subr.mxu0 0.0
  %1677 = vmatpush1.msra.mxu0 0.0
  %1678 = vmatprep.subr.mxu0 0.0
  %1679 = vmatpush1.msra.mxu0 0.0
  %1680 = vmatprep.subr.mxu0 0.0
  %1681 = vmatpush1.msra.mxu0 0.0
  %1682 = vmatprep.subr.mxu0 0.0
  %1683 = vmatpush1.msra.mxu0 0.0
  %1684 = vmatprep.subr.mxu0 0.0
  %1685 = vmatpush1.msra.mxu0 0.0
  %1686 = vmatprep.subr.mxu0 0.0
  %1687 = vmatpush1.msra.mxu0 0.0
  %1688 = vmatprep.mubr.f32.mxu0 0.0
  %1689 = vmatmul.mubr.f32.gmra.mrb[0].mxu0 %v1622
  %v1690 = vpop.f32.mrb[0].mxu0
  %v1691 = vadd.f32 0.0, %v1690
  %v1692 = vpop.f32.mrb[0].mxu0
  %v1693 = vadd.f32 0.0, %v1692
  %1694 = vdwg.mxu0
  %v1695 = vadd.f32 %v1693, %v36
  %vm1696 = vcmp.gt.f32.partialorder %v1695, 20.0
  %v1697 = vmin.f32 %v1695, 20.0
  %v1698 = vmul.f32 %v1697, 1.442695
  %v1699 = vpow.pop %v1698
  %v1700 = vadd.f32 %v1699, 1.0
  %v1701 = vlog2.pop %v1700
  %v1702 = vmul.f32 %v1701, 0.6931472
  %v1703 = vmul.f32 -0.5, %v1699
  %v1704 = vadd.f32 %v1703, 1.0
  %v1705 = vmul.f32 %v1704, %v1699
  %v1706 = vand.u32 2147483647, %v1699
  %vm1707 = vcmp.lt.f32.partialorder %v1706, 0.0004427343
  %v1708 = vsel %vm1707, %v1705, %v1702
  %v1709 = vsel %vm1696, %v1695, %v1708
  %1711 = vrot.lane.b32.xlu0 %v1709, 1
  %v1712 = vpop.permute.xlu0 %1711
  %v1714 = vsub.f32 %v1709, %v1712
  %v1715 = vmul.f32 %v1714, 4.0
  %v1716 = vsel %vm577, 0.0, %v1715
  %1718 = vrot.lane.b32.xlu0 %v1716, 1
  %v1719 = vpop.permute.xlu0 %1718
  %v1721 = vsub.f32 %v1715, %v1719
  %1723 = vrot.lane.b32.xlu0 %v1721, 127
  %v1724 = vpop.permute.xlu0 %1723
  %v1726 = vsel %vm588, %v1724, 0.0
  %1727 = vadd.xlane.f32.xlu0 %v1726
  %v1728 = vpop.xlane.xlu0 %1727
  %v1729 = vsub.f32 %v1709, %v1728
  %1731 = vrot.lane.b32.xlu0 %v1729, 127
  %v1732 = vpop.permute.xlu0 %1731
  %v1734 = vsel %vm597, %v1724, %v1732
  %s1735 = scalar_lea.vmem %s1, 14
  %v1736 = vld [vmem:[%s1735] sm:$0x3]
  %v1737 = vmul.f32 %v1709, %v1736
  %s1738 = scalar_lea.vmem %s2, 14
  %v1739 = vld [vmem:[%s1738] sm:$0x3]
  %v1740 = vmul.f32 %v1739, %v1734
  %v1741 = vsel %vm603, %v1740, 0.0
  %1742 = vadd.xlane.f32.xlu0 %v1741
  %v1743 = vpop.xlane.xlu0 %1742
  %v1744 = vadd.f32 %v1737, %v1743
  %1746 = vrot.lane.b32.xlu0 %v1744, 3
  %v1747 = vpop.permute.xlu0 %1746
  %1749 = vst.msk [vmem:[%s1258] sm:$0x3] %vm1104, %v1747
  %v1750 = vld [vmem:[%s453] sm:$0x3]
  %v1751 = vadd.f32 %v1691, %v1750
  %v1752 = vxor.u32 %v1751, 2147483648
  %v1753 = vmul.f32 %v1752, 1.442695
  %v1754 = vpow.pop %v1753
  %v1755 = vadd.f32 %v1754, 1.0
  %v1756 = vrcp.pop %v1755
  %v1757 = vmul.f32 1.0, %v1756
  %v1758 = vtanh.pop %v1751
  %v1759 = vmul.f32 %v1757, %v1612
  %1761 = vrot.lane.b32.xlu0 %v1758, 64
  %v1762 = vpop.permute.xlu0 %1761
  %v1764 = vmul.f32 %v1757, %v1762
  %1766 = vrot.lane.b32.xlu0 %v1764, 32
  %v1767 = vpop.permute.xlu0 %1766
  %v1769 = vadd.f32 %v1759, %v1767
  %v1770 = vtanh.pop %v1769
  %1772 = vrot.lane.b32.xlu0 %v1770, 64
  %v1773 = vpop.permute.xlu0 %1772
  %v1775 = vmul.f32 %v1757, %v1773
  %1777 = vrot.lane.b32.xlu0 %v1775, 32
  %v1778 = vpop.permute.xlu0 %1777
  %v1779 = vsel %vm74, %v1778, 0
  %1781 = vmatprep.subr.mxu0 %v24
  %1782 = vmatpush1.msra.mxu0 %v23
  %1783 = vmatprep.subr.mxu0 %v26
  %1784 = vmatpush1.msra.mxu0 %v25
  %1785 = vmatprep.subr.mxu0 %v28
  %1786 = vmatpush1.msra.mxu0 %v27
  %1787 = vmatprep.subr.mxu0 %v30
  %1788 = vmatpush1.msra.mxu0 %v29
  %1789 = vmatprep.subr.mxu0 0.0
  %1790 = vmatpush1.msra.mxu0 0.0
  %1791 = vmatprep.subr.mxu0 0.0
  %1792 = vmatpush1.msra.mxu0 0.0
  %1793 = vmatprep.subr.mxu0 0.0
  %1794 = vmatpush1.msra.mxu0 0.0
  %1795 = vmatprep.subr.mxu0 0.0
  %1796 = vmatpush1.msra.mxu0 0.0
  %1797 = vmatprep.subr.mxu0 0.0
  %1798 = vmatpush1.msra.mxu0 0.0
  %1799 = vmatprep.subr.mxu0 0.0
  %1800 = vmatpush1.msra.mxu0 0.0
  %1801 = vmatprep.subr.mxu0 0.0
  %1802 = vmatpush1.msra.mxu0 0.0
  %1803 = vmatprep.subr.mxu0 0.0
  %1804 = vmatpush1.msra.mxu0 0.0
  %1805 = vmatprep.subr.mxu0 0.0
  %1806 = vmatpush1.msra.mxu0 0.0
  %1807 = vmatprep.subr.mxu0 0.0
  %1808 = vmatpush1.msra.mxu0 0.0
  %1809 = vmatprep.subr.mxu0 0.0
  %1810 = vmatpush1.msra.mxu0 0.0
  %1811 = vmatprep.subr.mxu0 0.0
  %1812 = vmatpush1.msra.mxu0 0.0
  %1813 = vmatprep.subr.mxu0 0.0
  %1814 = vmatpush1.msra.mxu0 0.0
  %1815 = vmatprep.subr.mxu0 0.0
  %1816 = vmatpush1.msra.mxu0 0.0
  %1817 = vmatprep.subr.mxu0 0.0
  %1818 = vmatpush1.msra.mxu0 0.0
  %1819 = vmatprep.subr.mxu0 0.0
  %1820 = vmatpush1.msra.mxu0 0.0
  %1821 = vmatprep.subr.mxu0 0.0
  %1822 = vmatpush1.msra.mxu0 0.0
  %1823 = vmatprep.subr.mxu0 0.0
  %1824 = vmatpush1.msra.mxu0 0.0
  %1825 = vmatprep.subr.mxu0 0.0
  %1826 = vmatpush1.msra.mxu0 0.0
  %1827 = vmatprep.subr.mxu0 0.0
  %1828 = vmatpush1.msra.mxu0 0.0
  %1829 = vmatprep.subr.mxu0 0.0
  %1830 = vmatpush1.msra.mxu0 0.0
  %1831 = vmatprep.subr.mxu0 0.0
  %1832 = vmatpush1.msra.mxu0 0.0
  %1833 = vmatprep.subr.mxu0 0.0
  %1834 = vmatpush1.msra.mxu0 0.0
  %1835 = vmatprep.subr.mxu0 0.0
  %1836 = vmatpush1.msra.mxu0 0.0
  %1837 = vmatprep.subr.mxu0 0.0
  %1838 = vmatpush1.msra.mxu0 0.0
  %1839 = vmatprep.subr.mxu0 0.0
  %1840 = vmatpush1.msra.mxu0 0.0
  %1841 = vmatprep.subr.mxu0 0.0
  %1842 = vmatpush1.msra.mxu0 0.0
  %1843 = vmatprep.subr.mxu0 0.0
  %1844 = vmatpush1.msra.mxu0 0.0
  %1845 = vmatprep.mubr.f32.mxu0 0.0
  %1846 = vmatmul.mubr.f32.gmra.mrb[0].mxu0 %v1779
  %v1847 = vpop.f32.mrb[0].mxu0
  %v1848 = vadd.f32 0.0, %v1847
  %v1849 = vpop.f32.mrb[0].mxu0
  %v1850 = vadd.f32 0.0, %v1849
  %1851 = vdwg.mxu0
  %v1852 = vadd.f32 %v1850, %v36
  %vm1853 = vcmp.gt.f32.partialorder %v1852, 20.0
  %v1854 = vmin.f32 %v1852, 20.0
  %v1855 = vmul.f32 %v1854, 1.442695
  %v1856 = vpow.pop %v1855
  %v1857 = vadd.f32 %v1856, 1.0
  %v1858 = vlog2.pop %v1857
  %v1859 = vmul.f32 %v1858, 0.6931472
  %v1860 = vmul.f32 -0.5, %v1856
  %v1861 = vadd.f32 %v1860, 1.0
  %v1862 = vmul.f32 %v1861, %v1856
  %v1863 = vand.u32 2147483647, %v1856
  %vm1864 = vcmp.lt.f32.partialorder %v1863, 0.0004427343
  %v1865 = vsel %vm1864, %v1862, %v1859
  %v1866 = vsel %vm1853, %v1852, %v1865
  %1868 = vrot.lane.b32.xlu0 %v1866, 1
  %v1869 = vpop.permute.xlu0 %1868
  %v1871 = vsub.f32 %v1866, %v1869
  %v1872 = vmul.f32 %v1871, 4.0
  %v1873 = vsel %vm577, 0.0, %v1872
  %1875 = vrot.lane.b32.xlu0 %v1873, 1
  %v1876 = vpop.permute.xlu0 %1875
  %v1878 = vsub.f32 %v1872, %v1876
  %1880 = vrot.lane.b32.xlu0 %v1878, 127
  %v1881 = vpop.permute.xlu0 %1880
  %v1883 = vsel %vm588, %v1881, 0.0
  %1884 = vadd.xlane.f32.xlu0 %v1883
  %v1885 = vpop.xlane.xlu0 %1884
  %v1886 = vsub.f32 %v1866, %v1885
  %1888 = vrot.lane.b32.xlu0 %v1886, 127
  %v1889 = vpop.permute.xlu0 %1888
  %v1891 = vsel %vm597, %v1881, %v1889
  %s1892 = scalar_lea.vmem %s1, 16
  %v1893 = vld [vmem:[%s1892] sm:$0x3]
  %v1894 = vmul.f32 %v1866, %v1893
  %s1895 = scalar_lea.vmem %s2, 16
  %v1896 = vld [vmem:[%s1895] sm:$0x3]
  %v1897 = vmul.f32 %v1896, %v1891
  %v1898 = vsel %vm603, %v1897, 0.0
  %1899 = vadd.xlane.f32.xlu0 %v1898
  %v1900 = vpop.xlane.xlu0 %1899
  %v1901 = vadd.f32 %v1894, %v1900
  %s1902 = scalar_lea.vmem %s6, 4
  %1903 = vst.msk [vmem:[%s1902] sm:$0x3] %vm608, %v1901
  %v1904 = vld [vmem:[%s610] sm:$0x3]
  %v1905 = vadd.f32 %v1848, %v1904
  %1907 = vset.pattern.permute.xlu0 0
  %1908 = vperm.xlu0 %1907, %v1901
  %v1909 = vpop.permute.xlu0 %1908
  %v1911 = vmul.f32 %v1909, %v43
  %v1912 = vadd.f32 %v1905, %v1911
  %v1913 = vxor.u32 %v1912, 2147483648
  %v1914 = vmul.f32 %v1913, 1.442695
  %v1915 = vpow.pop %v1914
  %v1916 = vadd.f32 %v1915, 1.0
  %v1917 = vrcp.pop %v1916
  %v1918 = vmul.f32 1.0, %v1917
  %v1919 = vtanh.pop %v1912
  %v1920 = vmul.f32 %v1918, %v1769
  %1922 = vrot.lane.b32.xlu0 %v1919, 64
  %v1923 = vpop.permute.xlu0 %1922
  %v1925 = vmul.f32 %v1918, %v1923
  %1927 = vrot.lane.b32.xlu0 %v1925, 32
  %v1928 = vpop.permute.xlu0 %1927
  %v1930 = vadd.f32 %v1920, %v1928
  %v1931 = vtanh.pop %v1930
  %1933 = vrot.lane.b32.xlu0 %v1931, 64
  %v1934 = vpop.permute.xlu0 %1933
  %v1936 = vmul.f32 %v1918, %v1934
  %1938 = vrot.lane.b32.xlu0 %v1936, 32
  %v1939 = vpop.permute.xlu0 %1938
  %v1940 = vsel %vm74, %v1939, 0
  %1942 = vmatprep.subr.mxu0 %v24
  %1943 = vmatpush1.msra.mxu0 %v23
  %1944 = vmatprep.subr.mxu0 %v26
  %1945 = vmatpush1.msra.mxu0 %v25
  %1946 = vmatprep.subr.mxu0 %v28
  %1947 = vmatpush1.msra.mxu0 %v27
  %1948 = vmatprep.subr.mxu0 %v30
  %1949 = vmatpush1.msra.mxu0 %v29
  %1950 = vmatprep.subr.mxu0 0.0
  %1951 = vmatpush1.msra.mxu0 0.0
  %1952 = vmatprep.subr.mxu0 0.0
  %1953 = vmatpush1.msra.mxu0 0.0
  %1954 = vmatprep.subr.mxu0 0.0
  %1955 = vmatpush1.msra.mxu0 0.0
  %1956 = vmatprep.subr.mxu0 0.0
  %1957 = vmatpush1.msra.mxu0 0.0
  %1958 = vmatprep.subr.mxu0 0.0
  %1959 = vmatpush1.msra.mxu0 0.0
  %1960 = vmatprep.subr.mxu0 0.0
  %1961 = vmatpush1.msra.mxu0 0.0
  %1962 = vmatprep.subr.mxu0 0.0
  %1963 = vmatpush1.msra.mxu0 0.0
  %1964 = vmatprep.subr.mxu0 0.0
  %1965 = vmatpush1.msra.mxu0 0.0
  %1966 = vmatprep.subr.mxu0 0.0
  %1967 = vmatpush1.msra.mxu0 0.0
  %1968 = vmatprep.subr.mxu0 0.0
  %1969 = vmatpush1.msra.mxu0 0.0
  %1970 = vmatprep.subr.mxu0 0.0
  %1971 = vmatpush1.msra.mxu0 0.0
  %1972 = vmatprep.subr.mxu0 0.0
  %1973 = vmatpush1.msra.mxu0 0.0
  %1974 = vmatprep.subr.mxu0 0.0
  %1975 = vmatpush1.msra.mxu0 0.0
  %1976 = vmatprep.subr.mxu0 0.0
  %1977 = vmatpush1.msra.mxu0 0.0
  %1978 = vmatprep.subr.mxu0 0.0
  %1979 = vmatpush1.msra.mxu0 0.0
  %1980 = vmatprep.subr.mxu0 0.0
  %1981 = vmatpush1.msra.mxu0 0.0
  %1982 = vmatprep.subr.mxu0 0.0
  %1983 = vmatpush1.msra.mxu0 0.0
  %1984 = vmatprep.subr.mxu0 0.0
  %1985 = vmatpush1.msra.mxu0 0.0
  %1986 = vmatprep.subr.mxu0 0.0
  %1987 = vmatpush1.msra.mxu0 0.0
  %1988 = vmatprep.subr.mxu0 0.0
  %1989 = vmatpush1.msra.mxu0 0.0
  %1990 = vmatprep.subr.mxu0 0.0
  %1991 = vmatpush1.msra.mxu0 0.0
  %1992 = vmatprep.subr.mxu0 0.0
  %1993 = vmatpush1.msra.mxu0 0.0
  %1994 = vmatprep.subr.mxu0 0.0
  %1995 = vmatpush1.msra.mxu0 0.0
  %1996 = vmatprep.subr.mxu0 0.0
  %1997 = vmatpush1.msra.mxu0 0.0
  %1998 = vmatprep.subr.mxu0 0.0
  %1999 = vmatpush1.msra.mxu0 0.0
  %2000 = vmatprep.subr.mxu0 0.0
  %2001 = vmatpush1.msra.mxu0 0.0
  %2002 = vmatprep.subr.mxu0 0.0
  %2003 = vmatpush1.msra.mxu0 0.0
  %2004 = vmatprep.subr.mxu0 0.0
  %2005 = vmatpush1.msra.mxu0 0.0
  %2006 = vmatprep.mubr.f32.mxu0 0.0
  %2007 = vmatmul.mubr.f32.gmra.mrb[0].mxu0 %v1940
  %v2008 = vpop.f32.mrb[0].mxu0
  %v2009 = vadd.f32 0.0, %v2008
  %v2010 = vpop.f32.mrb[0].mxu0
  %v2011 = vadd.f32 0.0, %v2010
  %2012 = vdwg.mxu0
  %v2013 = vadd.f32 %v2011, %v36
  %vm2014 = vcmp.gt.f32.partialorder %v2013, 20.0
  %v2015 = vmin.f32 %v2013, 20.0
  %v2016 = vmul.f32 %v2015, 1.442695
  %v2017 = vpow.pop %v2016
  %v2018 = vadd.f32 %v2017, 1.0
  %v2019 = vlog2.pop %v2018
  %v2020 = vmul.f32 %v2019, 0.6931472
  %v2021 = vmul.f32 -0.5, %v2017
  %v2022 = vadd.f32 %v2021, 1.0
  %v2023 = vmul.f32 %v2022, %v2017
  %v2024 = vand.u32 2147483647, %v2017
  %vm2025 = vcmp.lt.f32.partialorder %v2024, 0.0004427343
  %v2026 = vsel %vm2025, %v2023, %v2020
  %v2027 = vsel %vm2014, %v2013, %v2026
  %2029 = vrot.lane.b32.xlu0 %v2027, 1
  %v2030 = vpop.permute.xlu0 %2029
  %v2032 = vsub.f32 %v2027, %v2030
  %v2033 = vmul.f32 %v2032, 4.0
  %v2034 = vsel %vm577, 0.0, %v2033
  %2036 = vrot.lane.b32.xlu0 %v2034, 1
  %v2037 = vpop.permute.xlu0 %2036
  %v2039 = vsub.f32 %v2033, %v2037
  %2041 = vrot.lane.b32.xlu0 %v2039, 127
  %v2042 = vpop.permute.xlu0 %2041
  %v2044 = vsel %vm588, %v2042, 0.0
  %2045 = vadd.xlane.f32.xlu0 %v2044
  %v2046 = vpop.xlane.xlu0 %2045
  %v2047 = vsub.f32 %v2027, %v2046
  %2049 = vrot.lane.b32.xlu0 %v2047, 127
  %v2050 = vpop.permute.xlu0 %2049
  %v2052 = vsel %vm597, %v2042, %v2050
  %s2053 = scalar_lea.vmem %s1, 18
  %v2054 = vld [vmem:[%s2053] sm:$0x3]
  %v2055 = vmul.f32 %v2027, %v2054
  %s2056 = scalar_lea.vmem %s2, 18
  %v2057 = vld [vmem:[%s2056] sm:$0x3]
  %v2058 = vmul.f32 %v2057, %v2052
  %v2059 = vsel %vm603, %v2058, 0.0
  %2060 = vadd.xlane.f32.xlu0 %v2059
  %v2061 = vpop.xlane.xlu0 %2060
  %v2062 = vadd.f32 %v2055, %v2061
  %2064 = vrot.lane.b32.xlu0 %v2062, 1
  %v2065 = vpop.permute.xlu0 %2064
  %2067 = vst.msk [vmem:[%s1902] sm:$0x3] %vm774, %v2065
  %v2068 = vld [vmem:[%s776] sm:$0x3]
  %v2069 = vadd.f32 %v2009, %v2068
  %2070 = vset.pattern.permute.xlu0 0
  %2071 = vperm.xlu0 %2070, %v2062
  %v2072 = vpop.permute.xlu0 %2071
  %v2074 = vmul.f32 %v2072, %v43
  %v2075 = vadd.f32 %v2069, %v2074
  %v2076 = vxor.u32 %v2075, 2147483648
  %v2077 = vmul.f32 %v2076, 1.442695
  %v2078 = vpow.pop %v2077
  %v2079 = vadd.f32 %v2078, 1.0
  %v2080 = vrcp.pop %v2079
  %v2081 = vmul.f32 1.0, %v2080
  %v2082 = vtanh.pop %v2075
  %v2083 = vmul.f32 %v2081, %v1930
  %2085 = vrot.lane.b32.xlu0 %v2082, 64
  %v2086 = vpop.permute.xlu0 %2085
  %v2088 = vmul.f32 %v2081, %v2086
  %2090 = vrot.lane.b32.xlu0 %v2088, 32
  %v2091 = vpop.permute.xlu0 %2090
  %v2093 = vadd.f32 %v2083, %v2091
  %v2094 = vtanh.pop %v2093
  %2096 = vrot.lane.b32.xlu0 %v2094, 64
  %v2097 = vpop.permute.xlu0 %2096
  %v2099 = vmul.f32 %v2081, %v2097
  %2101 = vrot.lane.b32.xlu0 %v2099, 32
  %v2102 = vpop.permute.xlu0 %2101
  %v2103 = vsel %vm74, %v2102, 0
  %2105 = vmatprep.subr.mxu0 %v24
  %2106 = vmatpush1.msra.mxu0 %v23
  %2107 = vmatprep.subr.mxu0 %v26
  %2108 = vmatpush1.msra.mxu0 %v25
  %2109 = vmatprep.subr.mxu0 %v28
  %2110 = vmatpush1.msra.mxu0 %v27
  %2111 = vmatprep.subr.mxu0 %v30
  %2112 = vmatpush1.msra.mxu0 %v29
  %2113 = vmatprep.subr.mxu0 0.0
  %2114 = vmatpush1.msra.mxu0 0.0
  %2115 = vmatprep.subr.mxu0 0.0
  %2116 = vmatpush1.msra.mxu0 0.0
  %2117 = vmatprep.subr.mxu0 0.0
  %2118 = vmatpush1.msra.mxu0 0.0
  %2119 = vmatprep.subr.mxu0 0.0
  %2120 = vmatpush1.msra.mxu0 0.0
  %2121 = vmatprep.subr.mxu0 0.0
  %2122 = vmatpush1.msra.mxu0 0.0
  %2123 = vmatprep.subr.mxu0 0.0
  %2124 = vmatpush1.msra.mxu0 0.0
  %2125 = vmatprep.subr.mxu0 0.0
  %2126 = vmatpush1.msra.mxu0 0.0
  %2127 = vmatprep.subr.mxu0 0.0
  %2128 = vmatpush1.msra.mxu0 0.0
  %2129 = vmatprep.subr.mxu0 0.0
  %2130 = vmatpush1.msra.mxu0 0.0
  %2131 = vmatprep.subr.mxu0 0.0
  %2132 = vmatpush1.msra.mxu0 0.0
  %2133 = vmatprep.subr.mxu0 0.0
  %2134 = vmatpush1.msra.mxu0 0.0
  %2135 = vmatprep.subr.mxu0 0.0
  %2136 = vmatpush1.msra.mxu0 0.0
  %2137 = vmatprep.subr.mxu0 0.0
  %2138 = vmatpush1.msra.mxu0 0.0
  %2139 = vmatprep.subr.mxu0 0.0
  %2140 = vmatpush1.msra.mxu0 0.0
  %2141 = vmatprep.subr.mxu0 0.0
  %2142 = vmatpush1.msra.mxu0 0.0
  %2143 = vmatprep.subr.mxu0 0.0
  %2144 = vmatpush1.msra.mxu0 0.0
  %2145 = vmatprep.subr.mxu0 0.0
  %2146 = vmatpush1.msra.mxu0 0.0
  %2147 = vmatprep.subr.mxu0 0.0
  %2148 = vmatpush1.msra.mxu0 0.0
  %2149 = vmatprep.subr.mxu0 0.0
  %2150 = vmatpush1.msra.mxu0 0.0
  %2151 = vmatprep.subr.mxu0 0.0
  %2152 = vmatpush1.msra.mxu0 0.0
  %2153 = vmatprep.subr.mxu0 0.0
  %2154 = vmatpush1.msra.mxu0 0.0
  %2155 = vmatprep.subr.mxu0 0.0
  %2156 = vmatpush1.msra.mxu0 0.0
  %2157 = vmatprep.subr.mxu0 0.0
  %2158 = vmatpush1.msra.mxu0 0.0
  %2159 = vmatprep.subr.mxu0 0.0
  %2160 = vmatpush1.msra.mxu0 0.0
  %2161 = vmatprep.subr.mxu0 0.0
  %2162 = vmatpush1.msra.mxu0 0.0
  %2163 = vmatprep.subr.mxu0 0.0
  %2164 = vmatpush1.msra.mxu0 0.0
  %2165 = vmatprep.subr.mxu0 0.0
  %2166 = vmatpush1.msra.mxu0 0.0
  %2167 = vmatprep.subr.mxu0 0.0
  %2168 = vmatpush1.msra.mxu0 0.0
  %2169 = vmatprep.mubr.f32.mxu0 0.0
  %2170 = vmatmul.mubr.f32.gmra.mrb[0].mxu0 %v2103
  %v2171 = vpop.f32.mrb[0].mxu0
  %v2172 = vadd.f32 0.0, %v2171
  %v2173 = vpop.f32.mrb[0].mxu0
  %v2174 = vadd.f32 0.0, %v2173
  %2175 = vdwg.mxu0
  %v2176 = vadd.f32 %v2174, %v36
  %vm2177 = vcmp.gt.f32.partialorder %v2176, 20.0
  %v2178 = vmin.f32 %v2176, 20.0
  %v2179 = vmul.f32 %v2178, 1.442695
  %v2180 = vpow.pop %v2179
  %v2181 = vadd.f32 %v2180, 1.0
  %v2182 = vlog2.pop %v2181
  %v2183 = vmul.f32 %v2182, 0.6931472
  %v2184 = vmul.f32 -0.5, %v2180
  %v2185 = vadd.f32 %v2184, 1.0
  %v2186 = vmul.f32 %v2185, %v2180
  %v2187 = vand.u32 2147483647, %v2180
  %vm2188 = vcmp.lt.f32.partialorder %v2187, 0.0004427343
  %v2189 = vsel %vm2188, %v2186, %v2183
  %v2190 = vsel %vm2177, %v2176, %v2189
  %2192 = vrot.lane.b32.xlu0 %v2190, 1
  %v2193 = vpop.permute.xlu0 %2192
  %v2195 = vsub.f32 %v2190, %v2193
  %v2196 = vmul.f32 %v2195, 4.0
  %v2197 = vsel %vm577, 0.0, %v2196
  %2199 = vrot.lane.b32.xlu0 %v2197, 1
  %v2200 = vpop.permute.xlu0 %2199
  %v2202 = vsub.f32 %v2196, %v2200
  %2204 = vrot.lane.b32.xlu0 %v2202, 127
  %v2205 = vpop.permute.xlu0 %2204
  %v2207 = vsel %vm588, %v2205, 0.0
  %2208 = vadd.xlane.f32.xlu0 %v2207
  %v2209 = vpop.xlane.xlu0 %2208
  %v2210 = vsub.f32 %v2190, %v2209
  %2212 = vrot.lane.b32.xlu0 %v2210, 127
  %v2213 = vpop.permute.xlu0 %2212
  %v2215 = vsel %vm597, %v2205, %v2213
  %s2216 = scalar_lea.vmem %s1, 20
  %v2217 = vld [vmem:[%s2216] sm:$0x3]
  %v2218 = vmul.f32 %v2190, %v2217
  %s2219 = scalar_lea.vmem %s2, 20
  %v2220 = vld [vmem:[%s2219] sm:$0x3]
  %v2221 = vmul.f32 %v2220, %v2215
  %v2222 = vsel %vm603, %v2221, 0.0
  %2223 = vadd.xlane.f32.xlu0 %v2222
  %v2224 = vpop.xlane.xlu0 %2223
  %v2225 = vadd.f32 %v2218, %v2224
  %2227 = vrot.lane.b32.xlu0 %v2225, 2
  %v2228 = vpop.permute.xlu0 %2227
  %2230 = vst.msk [vmem:[%s1902] sm:$0x3] %vm939, %v2228
  %v2231 = vld [vmem:[%s941] sm:$0x3]
  %v2232 = vadd.f32 %v2172, %v2231
  %2233 = vset.pattern.permute.xlu0 0
  %2234 = vperm.xlu0 %2233, %v2225
  %v2235 = vpop.permute.xlu0 %2234
  %v2237 = vmul.f32 %v2235, %v43
  %v2238 = vadd.f32 %v2232, %v2237
  %v2239 = vxor.u32 %v2238, 2147483648
  %v2240 = vmul.f32 %v2239, 1.442695
  %v2241 = vpow.pop %v2240
  %v2242 = vadd.f32 %v2241, 1.0
  %v2243 = vrcp.pop %v2242
  %v2244 = vmul.f32 1.0, %v2243
  %v2245 = vtanh.pop %v2238
  %v2246 = vmul.f32 %v2244, %v2093
  %2248 = vrot.lane.b32.xlu0 %v2245, 64
  %v2249 = vpop.permute.xlu0 %2248
  %v2251 = vmul.f32 %v2244, %v2249
  %2253 = vrot.lane.b32.xlu0 %v2251, 32
  %v2254 = vpop.permute.xlu0 %2253
  %v2256 = vadd.f32 %v2246, %v2254
  %v2257 = vtanh.pop %v2256
  %2259 = vrot.lane.b32.xlu0 %v2257, 64
  %v2260 = vpop.permute.xlu0 %2259
  %v2262 = vmul.f32 %v2244, %v2260
  %2264 = vrot.lane.b32.xlu0 %v2262, 32
  %v2265 = vpop.permute.xlu0 %2264
  %v2266 = vsel %vm74, %v2265, 0
  %2268 = vmatprep.subr.mxu0 %v24
  %2269 = vmatpush1.msra.mxu0 %v23
  %2270 = vmatprep.subr.mxu0 %v26
  %2271 = vmatpush1.msra.mxu0 %v25
  %2272 = vmatprep.subr.mxu0 %v28
  %2273 = vmatpush1.msra.mxu0 %v27
  %2274 = vmatprep.subr.mxu0 %v30
  %2275 = vmatpush1.msra.mxu0 %v29
  %2276 = vmatprep.subr.mxu0 0.0
  %2277 = vmatpush1.msra.mxu0 0.0
  %2278 = vmatprep.subr.mxu0 0.0
  %2279 = vmatpush1.msra.mxu0 0.0
  %2280 = vmatprep.subr.mxu0 0.0
  %2281 = vmatpush1.msra.mxu0 0.0
  %2282 = vmatprep.subr.mxu0 0.0
  %2283 = vmatpush1.msra.mxu0 0.0
  %2284 = vmatprep.subr.mxu0 0.0
  %2285 = vmatpush1.msra.mxu0 0.0
  %2286 = vmatprep.subr.mxu0 0.0
  %2287 = vmatpush1.msra.mxu0 0.0
  %2288 = vmatprep.subr.mxu0 0.0
  %2289 = vmatpush1.msra.mxu0 0.0
  %2290 = vmatprep.subr.mxu0 0.0
  %2291 = vmatpush1.msra.mxu0 0.0
  %2292 = vmatprep.subr.mxu0 0.0
  %2293 = vmatpush1.msra.mxu0 0.0
  %2294 = vmatprep.subr.mxu0 0.0
  %2295 = vmatpush1.msra.mxu0 0.0
  %2296 = vmatprep.subr.mxu0 0.0
  %2297 = vmatpush1.msra.mxu0 0.0
  %2298 = vmatprep.subr.mxu0 0.0
  %2299 = vmatpush1.msra.mxu0 0.0
  %2300 = vmatprep.subr.mxu0 0.0
  %2301 = vmatpush1.msra.mxu0 0.0
  %2302 = vmatprep.subr.mxu0 0.0
  %2303 = vmatpush1.msra.mxu0 0.0
  %2304 = vmatprep.subr.mxu0 0.0
  %2305 = vmatpush1.msra.mxu0 0.0
  %2306 = vmatprep.subr.mxu0 0.0
  %2307 = vmatpush1.msra.mxu0 0.0
  %2308 = vmatprep.subr.mxu0 0.0
  %2309 = vmatpush1.msra.mxu0 0.0
  %2310 = vmatprep.subr.mxu0 0.0
  %2311 = vmatpush1.msra.mxu0 0.0
  %2312 = vmatprep.subr.mxu0 0.0
  %2313 = vmatpush1.msra.mxu0 0.0
  %2314 = vmatprep.subr.mxu0 0.0
  %2315 = vmatpush1.msra.mxu0 0.0
  %2316 = vmatprep.subr.mxu0 0.0
  %2317 = vmatpush1.msra.mxu0 0.0
  %2318 = vmatprep.subr.mxu0 0.0
  %2319 = vmatpush1.msra.mxu0 0.0
  %2320 = vmatprep.subr.mxu0 0.0
  %2321 = vmatpush1.msra.mxu0 0.0
  %2322 = vmatprep.subr.mxu0 0.0
  %2323 = vmatpush1.msra.mxu0 0.0
  %2324 = vmatprep.subr.mxu0 0.0
  %2325 = vmatpush1.msra.mxu0 0.0
  %2326 = vmatprep.subr.mxu0 0.0
  %2327 = vmatpush1.msra.mxu0 0.0
  %2328 = vmatprep.subr.mxu0 0.0
  %2329 = vmatpush1.msra.mxu0 0.0
  %2330 = vmatprep.subr.mxu0 0.0
  %2331 = vmatpush1.msra.mxu0 0.0
  %2332 = vmatprep.mubr.f32.mxu0 0.0
  %2333 = vmatmul.mubr.f32.gmra.mrb[0].mxu0 %v2266
  %v2334 = vpop.f32.mrb[0].mxu0
  %v2335 = vpop.f32.mrb[0].mxu0
  %v2336 = vadd.f32 0.0, %v2335
  %2337 = vdwg.mxu0
  %v2338 = vadd.f32 %v2336, %v36
  %vm2339 = vcmp.gt.f32.partialorder %v2338, 20.0
  %v2340 = vmin.f32 %v2338, 20.0
  %v2341 = vmul.f32 %v2340, 1.442695
  %v2342 = vpow.pop %v2341
  %v2343 = vadd.f32 %v2342, 1.0
  %v2344 = vlog2.pop %v2343
  %v2345 = vmul.f32 %v2344, 0.6931472
  %v2346 = vmul.f32 -0.5, %v2342
  %v2347 = vadd.f32 %v2346, 1.0
  %v2348 = vmul.f32 %v2347, %v2342
  %v2349 = vand.u32 2147483647, %v2342
  %vm2350 = vcmp.lt.f32.partialorder %v2349, 0.0004427343
  %v2351 = vsel %vm2350, %v2348, %v2345
  %v2352 = vsel %vm2339, %v2338, %v2351
  %2354 = vrot.lane.b32.xlu0 %v2352, 1
  %v2355 = vpop.permute.xlu0 %2354
  %v2357 = vsub.f32 %v2352, %v2355
  %v2358 = vmul.f32 %v2357, 4.0
  %v2359 = vsel %vm577, 0.0, %v2358
  %2361 = vrot.lane.b32.xlu0 %v2359, 1
  %v2362 = vpop.permute.xlu0 %2361
  %v2364 = vsub.f32 %v2358, %v2362
  %2366 = vrot.lane.b32.xlu0 %v2364, 127
  %v2367 = vpop.permute.xlu0 %2366
  %v2369 = vsel %vm588, %v2367, 0.0
  %2370 = vadd.xlane.f32.xlu0 %v2369
  %v2371 = vpop.xlane.xlu0 %2370
  %v2372 = vsub.f32 %v2352, %v2371
  %2374 = vrot.lane.b32.xlu0 %v2372, 127
  %v2375 = vpop.permute.xlu0 %2374
  %v2377 = vsel %vm597, %v2367, %v2375
  %s2378 = scalar_lea.vmem %s1, 22
  %v2379 = vld [vmem:[%s2378] sm:$0x3]
  %v2380 = vmul.f32 %v2352, %v2379
  %s2381 = scalar_lea.vmem %s2, 22
  %v2382 = vld [vmem:[%s2381] sm:$0x3]
  %v2383 = vmul.f32 %v2382, %v2377
  %v2384 = vsel %vm603, %v2383, 0.0
  %2385 = vadd.xlane.f32.xlu0 %v2384
  %v2386 = vpop.xlane.xlu0 %2385
  %v2387 = vadd.f32 %v2380, %v2386
  %2389 = vrot.lane.b32.xlu0 %v2387, 3
  %v2390 = vpop.permute.xlu0 %2389
  %2392 = vst.msk [vmem:[%s1902] sm:$0x3] %vm1104, %v2390
  // Predicated region
  $region26: #{forward.1} parent=0 // pred_check
    _
  $region27: #{forward.1} parent=0 // pred_check_branch
    %2394 = sbr.rel (0) target = $region29
  $region28: #{forward.1} parent=0 // pred_region
    _
  $region29: #{forward.1} parent=0 // pred_fallthru
    _
  // Predicated region
  $region30: #{forward.1} parent=0 // pred_check
    _
  $region31: #{forward.1} parent=0 // pred_check_branch
    %2396 = sbr.rel (0) target = $region33
  $region32: #{forward.1} parent=0 // pred_region
    _
  $region33: #{forward.1} parent=0 // pred_fallthru
    _

</llo_original>
